<compile_context>
chip_gen: v5e
topology: v5e:2x2
jax: 0.10.0
libtpu: 0.0.40
codegen_flags: <defaults>
</compile_context>

<pallas_src>
import functools

import jax
import jax.numpy as jnp
import numpy as np
from jax import lax
from jax.experimental import pallas as pl
from jax.experimental.pallas import tpu as pltpu


# ------------------------------------------------------------------ fused conv kernel

def conv3x3_fused_kernel(x_ref, w_ref, b_ref, o_ref, *, H, W, Wp, ntaps,
                         apply_relu, pool):
    """Fused 3x3 conv (+bias, +ReLU, +2x2 maxpool) for one image / one Cout block.

    x_ref: (1, L, K) bf16  flattened zero-padded activation (K = Cin, or 9*Cin for the
                           im2col'd first layer); L >= H*Wp + 2*Wp + 2.
    w_ref: (ntaps, K, CB) bf16
    b_ref: (1, CB) f32
    o_ref: (1, H, W, CB) or (1, H//2, W//2, CB) bf16
    """
    cb = o_ref.shape[-1]
    nrows = H * Wp                       # output "slab" rows (width includes 2 pad cols)
    x = x_ref[0]                         # (L, K) bf16 -- single load of the flat slab
    acc = jnp.zeros((nrows, cb), jnp.float32)
    for t in range(ntaps):               # 9 contiguous row-offset taps (1 for im2col)
        off = (t // 3) * Wp + (t % 3)
        acc = acc + jnp.dot(x[off:off + nrows], w_ref[t],
                            preferred_element_type=jnp.float32)
    acc = acc + b_ref[...]               # (1, CB) f32, broadcast over rows
    if apply_relu:
        acc = jnp.maximum(acc, 0.0)

    if pool:
        # slab row f = r*Wp + w ; columns [W, Wp) are wrap-around garbage (excluded).
        y4 = acc.reshape(H // 2, 2, Wp, cb)
        r = jnp.maximum(y4[:, 0], y4[:, 1])                 # 2-row max (major axis)
        c = jnp.maximum(r[:, 0:W:2, :], r[:, 1:W:2, :])     # 2-col max, drops garbage
        o_ref[0] = c.astype(o_ref.dtype)
    else:
        y = acc.reshape(H, Wp, cb)
        o_ref[0] = y[:, :W, :].astype(o_ref.dtype)          # single interior slice


# ------------------------------------------------------------------ layer wrapper

def _conv_stage(x, w, b, *, relu, pool):
    """x: (N, H, W, Cin) bf16 NHWC; w: (3, 3, Cin, Cout) f32 (HWIO); b: (Cout,) f32."""
    N, H, W, Cin = x.shape
    Cout = w.shape[-1]
    Wp = W + 2

    # Zero halo: 1 row top / 2 rows bottom / 1 col each side, then flatten H,W.
    # The extra bottom row keeps every contiguous tap slice (offset up to 2*Wp+2,
    # length H*Wp) in bounds; it only feeds the wrap-around columns that get dropped.
    xp = jnp.pad(x, ((0, 0), (1, 2), (1, 1), (0, 0)))
    xp = xp.reshape(N, (H + 3) * Wp, Cin)

    if Cin < 16:
        # First layer (Cin=3): im2col to a single K = 9*Cin matmul.
        nrows = H * Wp
        taps = [xp[:, dy * Wp + dx: dy * Wp + dx + nrows, :]
                for dy in range(3) for dx in range(3)]
        xk = jnp.concatenate(taps, axis=-1).astype(jnp.bfloat16)   # (N, H*Wp, 9*Cin)
        wk = w.reshape(1, 9 * Cin, Cout).astype(jnp.bfloat16)
        ntaps = 1
    else:
        xk = xp.astype(jnp.bfloat16)
        wk = w.reshape(9, Cin, Cout).astype(jnp.bfloat16)
        ntaps = 9

    L, K = xk.shape[1], xk.shape[2]
    bk = b.astype(jnp.float32).reshape(1, Cout)

    CB = Cout if Cout <= 256 else 256          # lane-dense Cout blocks (multiple of 128)
    J = Cout // CB
    Ho, Wo = (H // 2, W // 2) if pool else (H, W)

    kern = functools.partial(conv3x3_fused_kernel, H=H, W=W, Wp=Wp, ntaps=ntaps,
                             apply_relu=relu, pool=pool)

    # TODO(synk): add row-block spatial tiling (2-row halo) for real 224x224 inputs;
    # whole-image blocks are used here since the test shapes are small and fit VMEM.
    return pl.pallas_call(
        kern,
        out_shape=jax.ShapeDtypeStruct((N, Ho, Wo, Cout), jnp.bfloat16),
        grid=(J, N),                           # Cout-block outer -> weights stay resident
        in_specs=[
            pl.BlockSpec((1, L, K), lambda j, n: (n, 0, 0)),
            pl.BlockSpec((ntaps, K, CB), lambda j, n: (0, 0, j)),
            pl.BlockSpec((1, CB), lambda j, n: (0, j)),
        ],
        out_specs=pl.BlockSpec((1, Ho, Wo, CB), lambda j, n: (n, 0, 0, j)),
        compiler_params=pltpu.CompilerParams(
            dimension_semantics=("parallel", "parallel")),
    )(xk, wk, bk)


# ------------------------------------------------------------------ model plumbing

VGG19_CFG = [64, 64, 'M', 128, 128, 'M', 256, 256, 256, 256, 'M',
             512, 512, 512, 512, 'M', 512, 512, 512, 512, 'M']


def vgg19_feature_ops(layer):
    """Replicates torchvision.models.vgg19().features[:layer] op sequence."""
    ops, in_c = [], 3
    for v in VGG19_CFG:
        if v == 'M':
            ops.append(("maxpool",))
        else:
            ops.append(("conv", in_c, v))
            ops.append(("relu",))
            in_c = v
    return ops[:layer]


def plan_stages(ops):
    """Group the chopped op list into fused conv(+relu)(+maxpool) stages."""
    stages, k = [], 0
    while k < len(ops):
        assert ops[k][0] == "conv"     # a VGG prefix always starts each stage with conv
        cin, cout = ops[k][1], ops[k][2]
        relu = k + 1 < len(ops) and ops[k + 1][0] == "relu"
        pool = relu and k + 2 < len(ops) and ops[k + 2][0] == "maxpool"
        stages.append((cin, cout, relu, pool))
        k += 1 + int(relu) + int(pool)
    return stages


def init_params(stages, key):
    """Deterministic synthetic weights; conv weights stored as (3,3,Cin,Cout) = HWIO."""
    params = []
    for cin, cout, _, _ in stages:
        key, kw, kb = jax.random.split(key, 3)
        w = jax.random.normal(kw, (3, 3, cin, cout), jnp.float32) * 0.05
        b = jax.random.normal(kb, (cout,), jnp.float32) * 0.05
        params.append((w, b))
    return params


def chopped_vgg19_forward(x_nchw, params, stages):
    x = jnp.transpose(x_nchw, (0, 2, 3, 1)).astype(jnp.bfloat16)   # NCHW -> NHWC bf16
    for (w, b), (_, _, relu, pool) in zip(params, stages):
        x = _conv_stage(x, w, b, relu=relu, pool=pool)
    return jnp.transpose(x, (0, 3, 1, 2)).astype(jnp.float32)      # NHWC -> NCHW


# ------------------------------------------------------------------ pure-JAX reference

def reference_forward(x_nchw, params, stages):
    x = jnp.transpose(x_nchw, (0, 2, 3, 1)).astype(jnp.bfloat16)
    for (w, b), (_, _, relu, pool) in zip(params, stages):
        y = lax.conv_general_dilated(
            x, w.astype(jnp.bfloat16), (1, 1), "SAME",
            dimension_numbers=("NHWC", "HWIO", "NHWC"),
            preferred_element_type=jnp.float32)
        y = y + b.astype(jnp.float32)[None, None, None, :]
        if relu:
            y = jnp.maximum(y, 0.0)
        if pool:
            y = lax.reduce_window(y, -jnp.inf, lax.max,
                                  (1, 2, 2, 1), (1, 2, 2, 1), "VALID")
        x = y.astype(jnp.bfloat16)
    return jnp.transpose(x, (0, 3, 1, 2)).astype(jnp.float32)


# ------------------------------------------------------------------ main

if __name__ == "__main__":
    key = jax.random.PRNGKey(0)
    key, kx = jax.random.split(key)
    x = jax.random.normal(kx, (2, 3, 16, 16), jnp.float32)   # NCHW like PyTorch

    # layer=4: conv-relu-conv-relu (fused relu epilogue)
    # layer=5: conv-relu-conv-relu-maxpool (fused relu+pool epilogue)
    for layer in (4, 5):
        ops = vgg19_feature_ops(layer)
        stages = plan_stages(ops)
        params = init_params(stages, jax.random.PRNGKey(1))

        fwd = jax.jit(functools.partial(chopped_vgg19_forward, stages=stages))
        out = jax.block_until_ready(fwd(x, params))
        ref = jax.block_until_ready(reference_forward(x, params, stages))
        np.testing.assert_allclose(np.asarray(out), np.asarray(ref),
                                   rtol=2e-2, atol=2e-2)

    print("KERNEL_OK")
</pallas_src>

<mosaic_0001>
module attributes {stable_mosaic.version = 11 : i64} {
  func.func @conv3x3_fused_kernel(%arg0: i32, %arg1: i32, %arg2: memref<1x288x27xbf16, #tpu.memory_space<vmem>>, %arg3: memref<1x27x64xbf16, #tpu.memory_space<vmem>>, %arg4: memref<1x64xf32, #tpu.memory_space<vmem>>, %arg5: memref<1x16x16x64xbf16, #tpu.memory_space<vmem>>) attributes {dimension_semantics = [#tpu.dimension_semantics<parallel>, #tpu.dimension_semantics<parallel>], iteration_bounds = array<i64: 1, 2>, scalar_prefetch = 0 : i64, scratch_operands = 0 : i64, tpu.core_type = #tpu.core_type<tc>, window_params = [{transform_indices = @transform_0, window_bounds = array<i64: 1, 288, 27>}, {transform_indices = @transform_1, window_bounds = array<i64: 1, 27, 64>}, {transform_indices = @transform_2, window_bounds = array<i64: 1, 64>}, {transform_indices = @transform_3, window_bounds = array<i64: 1, 16, 16, 64>}]} {
    %c0 = arith.constant 0 : index
    %c0_0 = arith.constant 0 : index
    %c0_1 = arith.constant 0 : index
    %0 = vector.load %arg2[%c0, %c0_0, %c0_1] : memref<1x288x27xbf16, #tpu.memory_space<vmem>>, vector<1x288x27xbf16>
    %1 = vector.shape_cast %0 : vector<1x288x27xbf16> to vector<288x27xbf16>
    %cst = arith.constant 0.000000e+00 : f32
    %2 = vector.broadcast %cst : f32 to vector<288x64xf32>
    %c0_2 = arith.constant 0 : index
    %c0_3 = arith.constant 0 : index
    %c0_4 = arith.constant 0 : index
    %3 = vector.load %arg3[%c0_2, %c0_3, %c0_4] : memref<1x27x64xbf16, #tpu.memory_space<vmem>>, vector<1x27x64xbf16>
    %4 = vector.shape_cast %3 : vector<1x27x64xbf16> to vector<27x64xbf16>
    %cst_5 = arith.constant dense<0.000000e+00> : vector<288x64xf32>
    %5 = tpu.matmul %1, %4, %cst_5 {dimension_numbers = #tpu.dot_dimension_numbers<[1], [0], [0], [1], [0, 0, 1, 1], [], []>} : vector<288x27xbf16>, vector<27x64xbf16>, vector<288x64xf32> -> vector<288x64xf32>
    %6 = arith.addf %2, %5 : vector<288x64xf32>
    %c0_6 = arith.constant 0 : index
    %c0_7 = arith.constant 0 : index
    %7 = vector.load %arg4[%c0_6, %c0_7] : memref<1x64xf32, #tpu.memory_space<vmem>>, vector<1x64xf32>
    %8 = vector.broadcast %7 : vector<1x64xf32> to vector<288x64xf32>
    %9 = arith.addf %6, %8 : vector<288x64xf32>
    %cst_8 = arith.constant 0.000000e+00 : f32
    %10 = vector.broadcast %cst_8 : f32 to vector<288x64xf32>
    %11 = arith.maximumf %9, %10 : vector<288x64xf32>
    %12 = vector.shape_cast %11 : vector<288x64xf32> to vector<16x18x64xf32>
    %13 = vector.extract_strided_slice %12 {offsets = [0, 0, 0], sizes = [16, 16, 64], strides = [1, 1, 1]} : vector<16x18x64xf32> to vector<16x16x64xf32>
    %14 = arith.truncf %13 : vector<16x16x64xf32> to vector<16x16x64xbf16>
    %c0_9 = arith.constant 0 : index
    %c0_10 = arith.constant 0 : index
    %c0_11 = arith.constant 0 : index
    %c0_12 = arith.constant 0 : index
    %15 = vector.load %arg5[%c0_9, %c0_10, %c0_11, %c0_12] : memref<1x16x16x64xbf16, #tpu.memory_space<vmem>>, vector<1x16x16x64xbf16>
    %16 = vector.shape_cast %15 : vector<1x16x16x64xbf16> to vector<16x16x64xbf16>
    %17 = vector.shape_cast %14 : vector<16x16x64xbf16> to vector<1x16x16x64xbf16>
    tpu.vector_store %arg5[%c0_9, %c0_10, %c0_11, %c0_12], %17 {strides = array<i32>} : memref<1x16x16x64xbf16, #tpu.memory_space<vmem>>, vector<1x16x16x64xbf16>,
    return
  }
  func.func @transform_0(%arg0: i32, %arg1: i32) -> (i32, i32, i32) {
    %c0_i32 = arith.constant 0 : i32
    %c0_i32_0 = arith.constant 0 : i32
    %c0_i32_1 = arith.constant 0 : i32
    return %arg1, %c0_i32, %c0_i32_0 : i32, i32, i32
  }
  func.func @transform_1(%arg0: i32, %arg1: i32) -> (i32, i32, i32) {
    %c0_i32 = arith.constant 0 : i32
    %c0_i32_0 = arith.constant 0 : i32
    %c0_i32_1 = arith.constant 0 : i32
    return %c0_i32, %c0_i32_0, %arg0 : i32, i32, i32
  }
  func.func @transform_2(%arg0: i32, %arg1: i32) -> (i32, i32) {
    %c0_i32 = arith.constant 0 : i32
    %c0_i32_0 = arith.constant 0 : i32
    return %c0_i32, %arg0 : i32, i32
  }
  func.func @transform_3(%arg0: i32, %arg1: i32) -> (i32, i32, i32, i32) {
    %c0_i32 = arith.constant 0 : i32
    %c0_i32_0 = arith.constant 0 : i32
    %c0_i32_1 = arith.constant 0 : i32
    return %arg1, %c0_i32, %c0_i32_0, %arg0 : i32, i32, i32, i32
  }
}

module attributes {stable_mosaic.version = 11 : i64} {
  func.func @conv3x3_fused_kernel(%arg0: i32, %arg1: i32, %arg2: memref<1x342x64xbf16, #tpu.memory_space<vmem>>, %arg3: memref<9x64x64xbf16, #tpu.memory_space<vmem>>, %arg4: memref<1x64xf32, #tpu.memory_space<vmem>>, %arg5: memref<1x16x16x64xbf16, #tpu.memory_space<vmem>>) attributes {dimension_semantics = [#tpu.dimension_semantics<parallel>, #tpu.dimension_semantics<parallel>], iteration_bounds = array<i64: 1, 2>, scalar_prefetch = 0 : i64, scratch_operands = 0 : i64, tpu.core_type = #tpu.core_type<tc>, window_params = [{transform_indices = @transform_0, window_bounds = array<i64: 1, 342, 64>}, {transform_indices = @transform_1, window_bounds = array<i64: 9, 64, 64>}, {transform_indices = @transform_2, window_bounds = array<i64: 1, 64>}, {transform_indices = @transform_3, window_bounds = array<i64: 1, 16, 16, 64>}]} {
    %c0 = arith.constant 0 : index
    %c0_0 = arith.constant 0 : index
    %c0_1 = arith.constant 0 : index
    %0 = vector.load %arg2[%c0, %c0_0, %c0_1] : memref<1x342x64xbf16, #tpu.memory_space<vmem>>, vector<1x342x64xbf16>
    %1 = vector.shape_cast %0 : vector<1x342x64xbf16> to vector<342x64xbf16>
    %cst = arith.constant 0.000000e+00 : f32
    %2 = vector.broadcast %cst : f32 to vector<288x64xf32>
    %3 = vector.extract_strided_slice %1 {offsets = [0, 0], sizes = [288, 64], strides = [1, 1]} : vector<342x64xbf16> to vector<288x64xbf16>
    %c0_2 = arith.constant 0 : index
    %c0_3 = arith.constant 0 : index
    %c0_4 = arith.constant 0 : index
    %4 = vector.load %arg3[%c0_2, %c0_3, %c0_4] : memref<9x64x64xbf16, #tpu.memory_space<vmem>>, vector<1x64x64xbf16>
    %5 = vector.shape_cast %4 : vector<1x64x64xbf16> to vector<64x64xbf16>
    %cst_5 = arith.constant dense<0.000000e+00> : vector<288x64xf32>
    %6 = tpu.matmul %3, %5, %cst_5 {dimension_numbers = #tpu.dot_dimension_numbers<[1], [0], [0], [1], [0, 0, 1, 1], [], []>} : vector<288x64xbf16>, vector<64x64xbf16>, vector<288x64xf32> -> vector<288x64xf32>
    %7 = arith.addf %2, %6 : vector<288x64xf32>
    %8 = vector.extract_strided_slice %1 {offsets = [1, 0], sizes = [288, 64], strides = [1, 1]} : vector<342x64xbf16> to vector<288x64xbf16>
    %c1 = arith.constant 1 : index
    %c0_6 = arith.constant 0 : index
    %c0_7 = arith.constant 0 : index
    %9 = vector.load %arg3[%c1, %c0_6, %c0_7] : memref<9x64x64xbf16, #tpu.memory_space<vmem>>, vector<1x64x64xbf16>
    %10 = vector.shape_cast %9 : vector<1x64x64xbf16> to vector<64x64xbf16>
    %cst_8 = arith.constant dense<0.000000e+00> : vector<288x64xf32>
    %11 = tpu.matmul %8, %10, %cst_8 {dimension_numbers = #tpu.dot_dimension_numbers<[1], [0], [0], [1], [0, 0, 1, 1], [], []>} : vector<288x64xbf16>, vector<64x64xbf16>, vector<288x64xf32> -> vector<288x64xf32>
    %12 = arith.addf %7, %11 : vector<288x64xf32>
    %13 = vector.extract_strided_slice %1 {offsets = [2, 0], sizes = [288, 64], strides = [1, 1]} : vector<342x64xbf16> to vector<288x64xbf16>
    %c2 = arith.constant 2 : index
    %c0_9 = arith.constant 0 : index
    %c0_10 = arith.constant 0 : index
    %14 = vector.load %arg3[%c2, %c0_9, %c0_10] : memref<9x64x64xbf16, #tpu.memory_space<vmem>>, vector<1x64x64xbf16>
    %15 = vector.shape_cast %14 : vector<1x64x64xbf16> to vector<64x64xbf16>
    %cst_11 = arith.constant dense<0.000000e+00> : vector<288x64xf32>
    %16 = tpu.matmul %13, %15, %cst_11 {dimension_numbers = #tpu.dot_dimension_numbers<[1], [0], [0], [1], [0, 0, 1, 1], [], []>} : vector<288x64xbf16>, vector<64x64xbf16>, vector<288x64xf32> -> vector<288x64xf32>
    %17 = arith.addf %12, %16 : vector<288x64xf32>
    %18 = vector.extract_strided_slice %1 {offsets = [18, 0], sizes = [288, 64], strides = [1, 1]} : vector<342x64xbf16> to vector<288x64xbf16>
    %c3 = arith.constant 3 : index
    %c0_12 = arith.constant 0 : index
    %c0_13 = arith.constant 0 : index
    %19 = vector.load %arg3[%c3, %c0_12, %c0_13] : memref<9x64x64xbf16, #tpu.memory_space<vmem>>, vector<1x64x64xbf16>
    %20 = vector.shape_cast %19 : vector<1x64x64xbf16> to vector<64x64xbf16>
    %cst_14 = arith.constant dense<0.000000e+00> : vector<288x64xf32>
    %21 = tpu.matmul %18, %20, %cst_14 {dimension_numbers = #tpu.dot_dimension_numbers<[1], [0], [0], [1], [0, 0, 1, 1], [], []>} : vector<288x64xbf16>, vector<64x64xbf16>, vector<288x64xf32> -> vector<288x64xf32>
    %22 = arith.addf %17, %21 : vector<288x64xf32>
    %23 = vector.extract_strided_slice %1 {offsets = [19, 0], sizes = [288, 64], strides = [1, 1]} : vector<342x64xbf16> to vector<288x64xbf16>
    %c4 = arith.constant 4 : index
    %c0_15 = arith.constant 0 : index
    %c0_16 = arith.constant 0 : index
    %24 = vector.load %arg3[%c4, %c0_15, %c0_16] : memref<9x64x64xbf16, #tpu.memory_space<vmem>>, vector<1x64x64xbf16>
    %25 = vector.shape_cast %24 : vector<1x64x64xbf16> to vector<64x64xbf16>
    %cst_17 = arith.constant dense<0.000000e+00> : vector<288x64xf32>
    %26 = tpu.matmul %23, %25, %cst_17 {dimension_numbers = #tpu.dot_dimension_numbers<[1], [0], [0], [1], [0, 0, 1, 1], [], []>} : vector<288x64xbf16>, vector<64x64xbf16>, vector<288x64xf32> -> vector<288x64xf32>
    %27 = arith.addf %22, %26 : vector<288x64xf32>
    %28 = vector.extract_strided_slice %1 {offsets = [20, 0], sizes = [288, 64], strides = [1, 1]} : vector<342x64xbf16> to vector<288x64xbf16>
    %c5 = arith.constant 5 : index
    %c0_18 = arith.constant 0 : index
    %c0_19 = arith.constant 0 : index
    %29 = vector.load %arg3[%c5, %c0_18, %c0_19] : memref<9x64x64xbf16, #tpu.memory_space<vmem>>, vector<1x64x64xbf16>
    %30 = vector.shape_cast %29 : vector<1x64x64xbf16> to vector<64x64xbf16>
    %cst_20 = arith.constant dense<0.000000e+00> : vector<288x64xf32>
    %31 = tpu.matmul %28, %30, %cst_20 {dimension_numbers = #tpu.dot_dimension_numbers<[1], [0], [0], [1], [0, 0, 1, 1], [], []>} : vector<288x64xbf16>, vector<64x64xbf16>, vector<288x64xf32> -> vector<288x64xf32>
    %32 = arith.addf %27, %31 : vector<288x64xf32>
    %33 = vector.extract_strided_slice %1 {offsets = [36, 0], sizes = [288, 64], strides = [1, 1]} : vector<342x64xbf16> to vector<288x64xbf16>
    %c6 = arith.constant 6 : index
    %c0_21 = arith.constant 0 : index
    %c0_22 = arith.constant 0 : index
    %34 = vector.load %arg3[%c6, %c0_21, %c0_22] : memref<9x64x64xbf16, #tpu.memory_space<vmem>>, vector<1x64x64xbf16>
    %35 = vector.shape_cast %34 : vector<1x64x64xbf16> to vector<64x64xbf16>
    %cst_23 = arith.constant dense<0.000000e+00> : vector<288x64xf32>
    %36 = tpu.matmul %33, %35, %cst_23 {dimension_numbers = #tpu.dot_dimension_numbers<[1], [0], [0], [1], [0, 0, 1, 1], [], []>} : vector<288x64xbf16>, vector<64x64xbf16>, vector<288x64xf32> -> vector<288x64xf32>
    %37 = arith.addf %32, %36 : vector<288x64xf32>
    %38 = vector.extract_strided_slice %1 {offsets = [37, 0], sizes = [288, 64], strides = [1, 1]} : vector<342x64xbf16> to vector<288x64xbf16>
    %c7 = arith.constant 7 : index
    %c0_24 = arith.constant 0 : index
    %c0_25 = arith.constant 0 : index
    %39 = vector.load %arg3[%c7, %c0_24, %c0_25] : memref<9x64x64xbf16, #tpu.memory_space<vmem>>, vector<1x64x64xbf16>
    %40 = vector.shape_cast %39 : vector<1x64x64xbf16> to vector<64x64xbf16>
    %cst_26 = arith.constant dense<0.000000e+00> : vector<288x64xf32>
    %41 = tpu.matmul %38, %40, %cst_26 {dimension_numbers = #tpu.dot_dimension_numbers<[1], [0], [0], [1], [0, 0, 1, 1], [], []>} : vector<288x64xbf16>, vector<64x64xbf16>, vector<288x64xf32> -> vector<288x64xf32>
    %42 = arith.addf %37, %41 : vector<288x64xf32>
    %43 = vector.extract_strided_slice %1 {offsets = [38, 0], sizes = [288, 64], strides = [1, 1]} : vector<342x64xbf16> to vector<288x64xbf16>
    %c8 = arith.constant 8 : index
    %c0_27 = arith.constant 0 : index
    %c0_28 = arith.constant 0 : index
    %44 = vector.load %arg3[%c8, %c0_27, %c0_28] : memref<9x64x64xbf16, #tpu.memory_space<vmem>>, vector<1x64x64xbf16>
    %45 = vector.shape_cast %44 : vector<1x64x64xbf16> to vector<64x64xbf16>
    %cst_29 = arith.constant dense<0.000000e+00> : vector<288x64xf32>
    %46 = tpu.matmul %43, %45, %cst_29 {dimension_numbers = #tpu.dot_dimension_numbers<[1], [0], [0], [1], [0, 0, 1, 1], [], []>} : vector<288x64xbf16>, vector<64x64xbf16>, vector<288x64xf32> -> vector<288x64xf32>
    %47 = arith.addf %42, %46 : vector<288x64xf32>
    %c0_30 = arith.constant 0 : index
    %c0_31 = arith.constant 0 : index
    %48 = vector.load %arg4[%c0_30, %c0_31] : memref<1x64xf32, #tpu.memory_space<vmem>>, vector<1x64xf32>
    %49 = vector.broadcast %48 : vector<1x64xf32> to vector<288x64xf32>
    %50 = arith.addf %47, %49 : vector<288x64xf32>
    %cst_32 = arith.constant 0.000000e+00 : f32
    %51 = vector.broadcast %cst_32 : f32 to vector<288x64xf32>
    %52 = arith.maximumf %50, %51 : vector<288x64xf32>
    %53 = vector.shape_cast %52 : vector<288x64xf32> to vector<16x18x64xf32>
    %54 = vector.extract_strided_slice %53 {offsets = [0, 0, 0], sizes = [16, 16, 64], strides = [1, 1, 1]} : vector<16x18x64xf32> to vector<16x16x64xf32>
    %55 = arith.truncf %54 : vector<16x16x64xf32> to vector<16x16x64xbf16>
    %c0_33 = arith.constant 0 : index
    %c0_34 = arith.constant 0 : index
    %c0_35 = arith.constant 0 : index
    %c0_36 = arith.constant 0 : index
    %56 = vector.load %arg5[%c0_33, %c0_34, %c0_35, %c0_36] : memref<1x16x16x64xbf16, #tpu.memory_space<vmem>>, vector<1x16x16x64xbf16>
    %57 = vector.shape_cast %56 : vector<1x16x16x64xbf16> to vector<16x16x64xbf16>
    %58 = vector.shape_cast %55 : vector<16x16x64xbf16> to vector<1x16x16x64xbf16>
    tpu.vector_store %arg5[%c0_33, %c0_34, %c0_35, %c0_36], %58 {strides = array<i32>} : memref<1x16x16x64xbf16, #tpu.memory_space<vmem>>, vector<1x16x16x64xbf16>,
    return
  }
  func.func @transform_0(%arg0: i32, %arg1: i32) -> (i32, i32, i32) {
    %c0_i32 = arith.constant 0 : i32
    %c0_i32_0 = arith.constant 0 : i32
    %c0_i32_1 = arith.constant 0 : i32
    return %arg1, %c0_i32, %c0_i32_0 : i32, i32, i32
  }
  func.func @transform_1(%arg0: i32, %arg1: i32) -> (i32, i32, i32) {
    %c0_i32 = arith.constant 0 : i32
    %c0_i32_0 = arith.constant 0 : i32
    %c0_i32_1 = arith.constant 0 : i32
    return %c0_i32, %c0_i32_0, %arg0 : i32, i32, i32
  }
  func.func @transform_2(%arg0: i32, %arg1: i32) -> (i32, i32) {
    %c0_i32 = arith.constant 0 : i32
    %c0_i32_0 = arith.constant 0 : i32
    return %c0_i32, %arg0 : i32, i32
  }
  func.func @transform_3(%arg0: i32, %arg1: i32) -> (i32, i32, i32, i32) {
    %c0_i32 = arith.constant 0 : i32
    %c0_i32_0 = arith.constant 0 : i32
    %c0_i32_1 = arith.constant 0 : i32
    return %arg1, %c0_i32, %c0_i32_0, %arg0 : i32, i32, i32, i32
  }
}

</mosaic_0001>

<llo_original>
// kernel: chopped_vgg19_forward.2
$region0: #{chopped_vgg19_forward.2}
  #allocation0 [shape = 'u32[]', space=smem, size = 0x4, offset = 0x4, fixed_abs, tag = 'smem constant byte address 0x4 - core index']
  #allocation1 [shape = 'u32[72,128]{1,0:T(1,128)}', space=vmem, size = 0x9000, scoped, tag = 'internal scratch']
  %s0 = inlined_call_operand.vmem [shape: bf16[2,288,27], index: 0, kind: input, shape index: {}]
  %s1 = inlined_call_operand.vmem [shape: bf16[1,27,64], index: 1, kind: input, shape index: {}]
  %s2 = inlined_call_operand.vmem [shape: f32[1,64], index: 2, kind: input, shape index: {}]
  %s3 = inlined_call_operand.vmem [shape: bf16[2,16,16,64], index: 3, kind: output, shape index: {}]
  %s4 = sld [smem:[#allocation0]]
  $region45: #{chopped_vgg19_forward.2} parent=0
    _
  %s6 = ssub.s32 1, %s4
  %s7 = scalar_select 0, %s6, %s4
  loop: start=0, step=1, limit=4
  $region2: #{chopped_vgg19_forward.2} parent=0 // loop_pre_header
    _
  $region3: #{chopped_vgg19_forward.2} parent=0 // loop_header
    %s9 = sphi 0, %s13
    %p10 = scmp.ge.s32.totalorder %s9, 4
    %s16 = sphi 0, %s28
    %s17 = sphi 0, %s24
    %s18 = sphi 0, %s16
    %s19 = sphi 0, %s17
    %s20 = sphi 0, %s18
    %s21 = sphi 0, %s19
    %s31 = sphi 0, %s33
    %s34 = sphi 0, %s31
    %s35 = sphi 0, %s34
    %s51 = sphi 0, %s35
    %s57 = sphi 0, %s59
    %s60 = sphi 0, %s57
    %s61 = sphi 0, %s60
    %s77 = sphi 0, %s61
    %s83 = sphi 0, %s85
    %s86 = sphi 0, %s83
    %s87 = sphi 0, %s86
    %s103 = sphi 0, %s87
    %s111 = sphi 0, %s113
    %s114 = sphi 0, %s111
    %s115 = sphi 0, %s114
    %s131 = sphi 0, %s115
  $region4: #{chopped_vgg19_forward.2} parent=0 // loop_header_branch
    %12 = sbr.rel (%p10) target = $region8
  $region5: #{chopped_vgg19_forward.2} parent=0 // loop_body
    %s14 = ssub.s32 %s9, 1
    %s15 = ssub.s32 %s9, 2
    %s22 = sadd.s32 1, %s17
    %p23 = scmp.ge.s32.totalorder %s22, 2
    %s24 = scalar_select %p23, 0, %s22
    %s25 = sadd.s32 1, %s16
    %s26 = scalar_select %p23, %s25, %s16
    %p27 = scmp.ge.s32.totalorder %s26, 1
    %s28 = scalar_select %p27, 0, %s26
    %s29 = ssub.s32 %s17, %s24
    %p30 = scmp.eq.s32.totalorder %s29, 0
    %s32 = sadd.s32 %s31, 1
    %s33 = scalar_select %p30, %s31, %s32
    %p36 = pneg %p30
    %p37 = scmp.eq.s32.totalorder %s9, 1
    %p38 = por %p36, %p37
    %p39 = scmp.ne.s32.totalorder %s31, %s34
    %p40 = scmp.eq.s32.totalorder %s9, 0
    %p41 = por %p39, %p40
    %p42 = scmp.ne.s32.totalorder %s31, %s34
    %p43 = scmp.eq.s32.totalorder %s14, 1
    %p44 = por %p42, %p43
    %p45 = scmp.ne.s32.totalorder %s34, %s35
    %p46 = scmp.eq.s32.totalorder %s14, 0
    %p47 = por %p45, %p46
    %p48 = scmp.ne.s32.totalorder %s34, %s35
    %p49 = scmp.eq.s32.totalorder %s15, 1
    %p50 = por %p48, %p49
    %p52 = scmp.ne.s32.totalorder %s35, %s51
    %p53 = scmp.eq.s32.totalorder %s15, 0
    %p54 = por %p52, %p53
    %s55 = ssub.s32 %s16, %s28
    %p56 = scmp.eq.s32.totalorder %s55, 0
    %s58 = sadd.s32 %s57, 1
    %s59 = scalar_select %p56, %s57, %s58
    %p62 = pneg %p56
    %p63 = scmp.eq.s32.totalorder %s9, 1
    %p64 = por %p62, %p63
    %p65 = scmp.ne.s32.totalorder %s57, %s60
    %p66 = scmp.eq.s32.totalorder %s9, 0
    %p67 = por %p65, %p66
    %p68 = scmp.ne.s32.totalorder %s57, %s60
    %p69 = scmp.eq.s32.totalorder %s14, 1
    %p70 = por %p68, %p69
    %p71 = scmp.ne.s32.totalorder %s60, %s61
    %p72 = scmp.eq.s32.totalorder %s14, 0
    %p73 = por %p71, %p72
    %p74 = scmp.ne.s32.totalorder %s60, %s61
    %p75 = scmp.eq.s32.totalorder %s15, 1
    %p76 = por %p74, %p75
    %p78 = scmp.ne.s32.totalorder %s61, %s77
    %p79 = scmp.eq.s32.totalorder %s15, 0
    %p80 = por %p78, %p79
    %s81 = ssub.s32 %s16, %s28
    %p82 = scmp.eq.s32.totalorder %s81, 0
    %s84 = sadd.s32 %s83, 1
    %s85 = scalar_select %p82, %s83, %s84
    %p88 = pneg %p82
    %p89 = scmp.eq.s32.totalorder %s9, 1
    %p90 = por %p88, %p89
    %p91 = scmp.ne.s32.totalorder %s83, %s86
    %p92 = scmp.eq.s32.totalorder %s9, 0
    %p93 = por %p91, %p92
    %p94 = scmp.ne.s32.totalorder %s83, %s86
    %p95 = scmp.eq.s32.totalorder %s14, 1
    %p96 = por %p94, %p95
    %p97 = scmp.ne.s32.totalorder %s86, %s87
    %p98 = scmp.eq.s32.totalorder %s14, 0
    %p99 = por %p97, %p98
    %p100 = scmp.ne.s32.totalorder %s86, %s87
    %p101 = scmp.eq.s32.totalorder %s15, 1
    %p102 = por %p100, %p101
    %p104 = scmp.ne.s32.totalorder %s87, %s103
    %p105 = scmp.eq.s32.totalorder %s15, 0
    %p106 = por %p104, %p105
    %s107 = ssub.s32 %s17, %s24
    %s108 = ssub.s32 %s16, %s28
    %s109 = sor.u32 %s107, %s108
    %p110 = scmp.eq.s32.totalorder %s109, 0
    %s112 = sadd.s32 %s111, 1
    %s113 = scalar_select %p110, %s111, %s112
    %p116 = pneg %p110
    %p117 = scmp.eq.s32.totalorder %s9, 1
    %p118 = por %p116, %p117
    %p119 = scmp.ne.s32.totalorder %s111, %s114
    %p120 = scmp.eq.s32.totalorder %s9, 0
    %p121 = por %p119, %p120
    %p122 = scmp.ne.s32.totalorder %s111, %s114
    %p123 = scmp.eq.s32.totalorder %s14, 1
    %p124 = por %p122, %p123
    %p125 = scmp.ne.s32.totalorder %s114, %s115
    %p126 = scmp.eq.s32.totalorder %s14, 0
    %p127 = por %p125, %p126
    %p128 = scmp.ne.s32.totalorder %s114, %s115
    %p129 = scmp.eq.s32.totalorder %s15, 1
    %p130 = por %p128, %p129
    %p132 = scmp.ne.s32.totalorder %s115, %s131
    %p133 = scmp.eq.s32.totalorder %s15, 0
    %p134 = por %p132, %p133
    %p135 = scmp.le.s32.totalorder 1, %s9
    %p136 = scmp.lt.s32.totalorder %s9, 3
    %p137 = pnand %p135, %p136
    %p138 = pneg %p137
    // Predicated region
    $region9: #{chopped_vgg19_forward.2} parent=5 // pred_check
      _
    $region10: #{chopped_vgg19_forward.2} parent=5 // pred_check_branch
      %140 = sbr.rel (%p137) target = $region12
    $region11: #{chopped_vgg19_forward.2} parent=5 // pred_region
      %s141 = ssub.s32 %s9, 1
      // Predicated region
      $region13: #{chopped_vgg19_forward.2} parent=11 // pred_check
        %p142 = pneg %p73
      $region14: #{chopped_vgg19_forward.2} parent=11 // pred_check_branch
        %144 = sbr.rel (%p142) target = $region16
      $region15: #{chopped_vgg19_forward.2} parent=11 // pred_region
        %p145 = scmp.lt.s32.totalorder %s18, 0
        %s146 = scalar_select %p145, %s18, 0
        %s147 = smul.addr %s146, 4
        %s148 = scalar_lea.vmem %s1, %s147
      $region16: #{chopped_vgg19_forward.2} parent=11 // pred_fallthru
        _
      // Predicated region
      $region17: #{chopped_vgg19_forward.2} parent=11 // pred_check
        %p149 = pneg %p99
      $region18: #{chopped_vgg19_forward.2} parent=11 // pred_check_branch
        %151 = sbr.rel (%p149) target = $region20
      $region19: #{chopped_vgg19_forward.2} parent=11 // pred_region
        %p152 = scmp.lt.s32.totalorder %s18, 0
        %s153 = scalar_select %p152, %s18, 0
        %s154 = scalar_lea.vmem %s2, %s153
      $region20: #{chopped_vgg19_forward.2} parent=11 // pred_fallthru
        _
    $region12: #{chopped_vgg19_forward.2} parent=5 // pred_fallthru
      _
    %p155 = scmp.lt.s32.totalorder %s9, 2
    // Predicated region
    $region21: #{chopped_vgg19_forward.2} parent=5 // pred_check
      %p156 = pneg %p155
    $region22: #{chopped_vgg19_forward.2} parent=5 // pred_check_branch
      %158 = sbr.rel (%p156) target = $region24
    $region23: #{chopped_vgg19_forward.2} parent=5 // pred_region
      // Predicated region
      $region25: #{chopped_vgg19_forward.2} parent=23 // pred_check
        %p159 = pneg %p41
      $region26: #{chopped_vgg19_forward.2} parent=23 // pred_check_branch
        %161 = sbr.rel (%p159) target = $region28
      $region27: #{chopped_vgg19_forward.2} parent=23 // pred_region
        %p162 = scmp.lt.s32.totalorder %s17, 1
        %s163 = scalar_select %p162, %s17, 1
        %s164 = smul.addr %s163, 36
        %s165 = smul.addr %s164, 4
        %s166 = scalar_lea.vmem %s0, %s165
      $region28: #{chopped_vgg19_forward.2} parent=23 // pred_fallthru
        _
    $region24: #{chopped_vgg19_forward.2} parent=5 // pred_fallthru
      _
    %p167 = scmp.le.s32.totalorder 1, %s9
    %p168 = scmp.lt.s32.totalorder %s9, 3
    %p169 = pnand %p167, %p168
    %p170 = pneg %p169
    // Predicated region
    $region29: #{chopped_vgg19_forward.2} parent=5 // pred_check
      _
    $region30: #{chopped_vgg19_forward.2} parent=5 // pred_check_branch
      %172 = sbr.rel (%p169) target = $region32
    $region31: #{chopped_vgg19_forward.2} parent=5 // pred_region
      %s173 = ssub.s32 %s9, 1
      %p174 = scmp.lt.s32.totalorder %s19, 1
      %s175 = scalar_select %p174, %s19, 1
      %s176 = smul.addr %s175, 36
      %s177 = smul.addr %s176, 4
      %s178 = scalar_lea.vmem %s0, %s177
      %p179 = pneg %p47
      %p180 = pneg %p44
      %p181 = scmp.lt.s32.totalorder %s18, 0
      %s182 = scalar_select %p181, %s18, 0
      %s183 = smul.addr %s182, 4
      %s184 = scalar_lea.vmem %s1, %s183
      %p185 = pneg %p73
      %p186 = pneg %p70
      %p187 = scmp.lt.s32.totalorder %s18, 0
      %s188 = scalar_select %p187, %s18, 0
      %s189 = scalar_lea.vmem %s2, %s188
      %p190 = pneg %p99
      %p191 = pneg %p96
      %p192 = pneg %p127
      %p193 = pneg %p124
      %p194 = scmp.lt.s32.totalorder %s19, 1
      %s195 = scalar_select %p194, %s19, 1
      %p196 = scmp.lt.s32.totalorder %s18, 0
      %s197 = scalar_select %p196, %s18, 0
      %s198 = smul.addr %s195, 32
      %s199 = sadd.s32 %s197, %s198
      %s200 = smul.addr %s199, 4
      %s201 = scalar_lea.vmem %s3, %s200
      %p202 = scmp.lt.s32.totalorder %s19, 1
      %s203 = scalar_select %p202, %s19, 1
      %s204 = smul.addr %s203, 36
      %s205 = smul.addr %s204, 4
      %s206 = scalar_lea.vmem %s0, %s205
      %p207 = scmp.lt.s32.totalorder %s18, 0
      %s208 = scalar_select %p207, %s18, 0
      %s209 = smul.addr %s208, 4
      %s210 = scalar_lea.vmem %s1, %s209
      %p211 = scmp.lt.s32.totalorder %s18, 0
      %s212 = scalar_select %p211, %s18, 0
      %s213 = scalar_lea.vmem %s2, %s212
      %p214 = scmp.lt.s32.totalorder %s19, 1
      %s215 = scalar_select %p214, %s19, 1
      %p216 = scmp.lt.s32.totalorder %s18, 0
      %s217 = scalar_select %p216, %s18, 0
      %s218 = smul.addr %s215, 32
      %s219 = sadd.s32 %s217, %s218
      %s220 = smul.addr %s219, 4
      %s221 = scalar_lea.vmem %s3, %s220
      %v223 = vld [vmem:[%s206] sm:$0xf]
      %v224 = vld [vmem:[%s206 + $0x4] sm:$0xf]
      %v225 = vld [vmem:[%s206 + $0x8] sm:$0xf]
      %v226 = vld [vmem:[%s206 + $0xc] sm:$0xf]
      %v227 = vld [vmem:[%s206 + $0x10] sm:$0xf]
      %v228 = vld [vmem:[%s206 + $0x14] sm:$0xf]
      %v229 = vld [vmem:[%s206 + $0x18] sm:$0xf]
      %v230 = vld [vmem:[%s206 + $0x1c] sm:$0xf]
      %v231 = vld [vmem:[%s206 + $0x20] sm:$0xf]
      %v232 = vld [vmem:[%s206 + $0x24] sm:$0xf]
      %v233 = vld [vmem:[%s206 + $0x28] sm:$0xf]
      %v234 = vld [vmem:[%s206 + $0x2c] sm:$0xf]
      %v235 = vld [vmem:[%s206 + $0x30] sm:$0xf]
      %v236 = vld [vmem:[%s206 + $0x34] sm:$0xf]
      %v237 = vld [vmem:[%s206 + $0x38] sm:$0xf]
      %v238 = vld [vmem:[%s206 + $0x3c] sm:$0xf]
      %v239 = vld [vmem:[%s206 + $0x40] sm:$0xf]
      %v240 = vld [vmem:[%s206 + $0x44] sm:$0xf]
      %v241 = vld [vmem:[%s206 + $0x48] sm:$0xf]
      %v242 = vld [vmem:[%s206 + $0x4c] sm:$0xf]
      %v243 = vld [vmem:[%s206 + $0x50] sm:$0xf]
      %v244 = vld [vmem:[%s206 + $0x54] sm:$0xf]
      %v245 = vld [vmem:[%s206 + $0x58] sm:$0xf]
      %v246 = vld [vmem:[%s206 + $0x5c] sm:$0xf]
      %v247 = vld [vmem:[%s206 + $0x60] sm:$0xf]
      %v248 = vld [vmem:[%s206 + $0x64] sm:$0xf]
      %v249 = vld [vmem:[%s206 + $0x68] sm:$0xf]
      %v250 = vld [vmem:[%s206 + $0x6c] sm:$0xf]
      %v251 = vld [vmem:[%s206 + $0x70] sm:$0xf]
      %v252 = vld [vmem:[%s206 + $0x74] sm:$0xf]
      %v253 = vld [vmem:[%s206 + $0x78] sm:$0xf]
      %v254 = vld [vmem:[%s206 + $0x7c] sm:$0xf]
      %v255 = vld [vmem:[%s206 + $0x80] sm:$0xf]
      %v256 = vld [vmem:[%s206 + $0x84] sm:$0xf]
      %v257 = vld [vmem:[%s206 + $0x88] sm:$0xf]
      %v258 = vld [vmem:[%s206 + $0x8c] sm:$0xf]
      %v259 = vld [vmem:[%s210] sm:$0xf]
      %v260 = vld [vmem:[%s210 + $0x4] sm:$0xf]
      %v261 = vld [vmem:[%s210 + $0x8] sm:$0xf]
      %v262 = vld [vmem:[%s210 + $0xc] sm:$0x3]
      %v263 = vld [vmem:[%s213] sm:$0x1]
      %v265 = vperm.slane %v263, 0
      %v303 = vunpack.c.l.b16 %v223
      %v304 = vunpack.c.l.b16 %v224
      %v305 = vunpack.c.l.b16 %v225
      %v306 = vunpack.c.l.b16 %v226
      %v307 = vunpack.c.l.b16 %v227
      %v308 = vunpack.c.l.b16 %v228
      %v309 = vunpack.c.l.b16 %v229
      %v310 = vunpack.c.l.b16 %v230
      %v311 = vunpack.c.l.b16 %v231
      %v312 = vunpack.c.l.b16 %v232
      %v313 = vunpack.c.l.b16 %v233
      %v314 = vunpack.c.l.b16 %v234
      %v315 = vunpack.c.l.b16 %v235
      %v316 = vunpack.c.l.b16 %v236
      %v317 = vunpack.c.l.b16 %v237
      %v318 = vunpack.c.l.b16 %v238
      %v319 = vunpack.c.l.b16 %v239
      %v320 = vunpack.c.l.b16 %v240
      %v321 = vunpack.c.l.b16 %v241
      %v322 = vunpack.c.l.b16 %v242
      %v323 = vunpack.c.l.b16 %v243
      %v324 = vunpack.c.l.b16 %v244
      %v325 = vunpack.c.l.b16 %v245
      %v326 = vunpack.c.l.b16 %v246
      %v327 = vunpack.c.l.b16 %v247
      %v328 = vunpack.c.l.b16 %v248
      %v329 = vunpack.c.l.b16 %v249
      %v330 = vunpack.c.l.b16 %v250
      %v331 = vunpack.c.l.b16 %v251
      %v332 = vunpack.c.l.b16 %v252
      %v333 = vunpack.c.l.b16 %v253
      %v334 = vunpack.c.l.b16 %v254
      %v335 = vunpack.c.l.b16 %v255
      %v336 = vunpack.c.l.b16 %v256
      %v337 = vunpack.c.l.b16 %v257
      %v338 = vunpack.c.l.b16 %v258
      %v339 = vpack.c.b16 %v304, %v303
      %v340 = vpack.c.b16 %v306, %v305
      %v341 = vpack.c.b16 %v308, %v307
      %v342 = vpack.c.b16 %v310, %v309
      %v343 = vpack.c.b16 %v312, %v311
      %v344 = vpack.c.b16 %v314, %v313
      %v345 = vpack.c.b16 %v316, %v315
      %v346 = vpack.c.b16 %v318, %v317
      %v347 = vpack.c.b16 %v320, %v319
      %v348 = vpack.c.b16 %v322, %v321
      %v349 = vpack.c.b16 %v324, %v323
      %v350 = vpack.c.b16 %v326, %v325
      %v351 = vpack.c.b16 %v328, %v327
      %v352 = vpack.c.b16 %v330, %v329
      %v353 = vpack.c.b16 %v332, %v331
      %v354 = vpack.c.b16 %v334, %v333
      %v355 = vpack.c.b16 %v336, %v335
      %v356 = vpack.c.b16 %v338, %v337
      %v361 = vunpack.c.l.b16 %v259
      %v362 = vunpack.c.l.b16 %v260
      %v363 = vunpack.c.l.b16 %v261
      %v364 = vunpack.c.l.b16 %v262
      %v365 = vpack.c.b16 %v362, %v361
      %v366 = vpack.c.b16 %v364, %v363
      %vm368 = vcmask 220160
      %v370 = vsel %vm368, %v339, 0
      %v373 = vsel %vm368, %v340, 0
      %v376 = vsel %vm368, %v341, 0
      %v379 = vsel %vm368, %v342, 0
      %v382 = vsel %vm368, %v343, 0
      %v385 = vsel %vm368, %v344, 0
      %v388 = vsel %vm368, %v345, 0
      %v391 = vsel %vm368, %v346, 0
      %v394 = vsel %vm368, %v347, 0
      %v397 = vsel %vm368, %v348, 0
      %v400 = vsel %vm368, %v349, 0
      %v403 = vsel %vm368, %v350, 0
      %v406 = vsel %vm368, %v351, 0
      %v409 = vsel %vm368, %v352, 0
      %v412 = vsel %vm368, %v353, 0
      %v415 = vsel %vm368, %v354, 0
      %v418 = vsel %vm368, %v355, 0
      %v421 = vsel %vm368, %v356, 0
      %vm423 = vcmask 1044480
      %vm424 = vcmask 1045504
      %v425 = vsel %vm423, 4294967295, 65535
      %v426 = vsel %vm424, %v425, 0
      %v428 = vand.u32 %v366, %v426
      %430 = vmatpush.bf16.msra.mxu0 0
      %431 = vmatpush.bf16.msra.mxu0 0
      %432 = vmatpush.bf16.msra.mxu0 0
      %433 = vmatpush.bf16.msra.mxu0 0
      %434 = vmatpush.bf16.msra.mxu0 0
      %435 = vmatpush.bf16.msra.mxu0 0
      %436 = vmatpush.bf16.msra.mxu0 %v428
      %437 = vmatpush.bf16.msra.mxu0 %v365
      %438 = vmatmul.bf16.gmra.mxu0 %v370
      %v439 = vpop.f32.mrf.mxu0
      %v440 = vadd.f32 %v265, %v439
      %v441 = vpop.f32.mrf.mxu0
      %v442 = vadd.f32 %v265, %v441
      %443 = vmatmul.bf16.gmra.mxu0 %v373
      %v444 = vpop.f32.mrf.mxu0
      %v445 = vadd.f32 %v265, %v444
      %v446 = vpop.f32.mrf.mxu0
      %v447 = vadd.f32 %v265, %v446
      %448 = vmatmul.bf16.gmra.mxu0 %v376
      %v449 = vpop.f32.mrf.mxu0
      %v450 = vadd.f32 %v265, %v449
      %v451 = vpop.f32.mrf.mxu0
      %v452 = vadd.f32 %v265, %v451
      %453 = vmatmul.bf16.gmra.mxu0 %v379
      %v454 = vpop.f32.mrf.mxu0
      %v455 = vadd.f32 %v265, %v454
      %v456 = vpop.f32.mrf.mxu0
      %v457 = vadd.f32 %v265, %v456
      %458 = vmatmul.bf16.gmra.mxu0 %v382
      %v459 = vpop.f32.mrf.mxu0
      %v460 = vadd.f32 %v265, %v459
      %v461 = vpop.f32.mrf.mxu0
      %v462 = vadd.f32 %v265, %v461
      %463 = vmatmul.bf16.gmra.mxu0 %v385
      %v464 = vpop.f32.mrf.mxu0
      %v465 = vadd.f32 %v265, %v464
      %v466 = vpop.f32.mrf.mxu0
      %v467 = vadd.f32 %v265, %v466
      %468 = vmatmul.bf16.gmra.mxu0 %v388
      %v469 = vpop.f32.mrf.mxu0
      %v470 = vadd.f32 %v265, %v469
      %v471 = vpop.f32.mrf.mxu0
      %v472 = vadd.f32 %v265, %v471
      %473 = vmatmul.bf16.gmra.mxu0 %v391
      %v474 = vpop.f32.mrf.mxu0
      %v475 = vadd.f32 %v265, %v474
      %v476 = vpop.f32.mrf.mxu0
      %v477 = vadd.f32 %v265, %v476
      %478 = vmatmul.bf16.gmra.mxu0 %v394
      %v479 = vpop.f32.mrf.mxu0
      %v480 = vadd.f32 %v265, %v479
      %v481 = vpop.f32.mrf.mxu0
      %v482 = vadd.f32 %v265, %v481
      %483 = vmatmul.bf16.gmra.mxu0 %v397
      %v484 = vpop.f32.mrf.mxu0
      %v485 = vadd.f32 %v265, %v484
      %v486 = vpop.f32.mrf.mxu0
      %v487 = vadd.f32 %v265, %v486
      %488 = vmatmul.bf16.gmra.mxu0 %v400
      %v489 = vpop.f32.mrf.mxu0
      %v490 = vadd.f32 %v265, %v489
      %v491 = vpop.f32.mrf.mxu0
      %v492 = vadd.f32 %v265, %v491
      %493 = vmatmul.bf16.gmra.mxu0 %v403
      %v494 = vpop.f32.mrf.mxu0
      %v495 = vadd.f32 %v265, %v494
      %v496 = vpop.f32.mrf.mxu0
      %v497 = vadd.f32 %v265, %v496
      %498 = vmatmul.bf16.gmra.mxu0 %v406
      %v499 = vpop.f32.mrf.mxu0
      %v500 = vadd.f32 %v265, %v499
      %v501 = vpop.f32.mrf.mxu0
      %v502 = vadd.f32 %v265, %v501
      %503 = vmatmul.bf16.gmra.mxu0 %v409
      %v504 = vpop.f32.mrf.mxu0
      %v505 = vadd.f32 %v265, %v504
      %v506 = vpop.f32.mrf.mxu0
      %v507 = vadd.f32 %v265, %v506
      %508 = vmatmul.bf16.gmra.mxu0 %v412
      %v509 = vpop.f32.mrf.mxu0
      %v510 = vadd.f32 %v265, %v509
      %v511 = vpop.f32.mrf.mxu0
      %v512 = vadd.f32 %v265, %v511
      %513 = vmatmul.bf16.gmra.mxu0 %v415
      %v514 = vpop.f32.mrf.mxu0
      %v515 = vadd.f32 %v265, %v514
      %v516 = vpop.f32.mrf.mxu0
      %v517 = vadd.f32 %v265, %v516
      %518 = vmatmul.bf16.gmra.mxu0 %v418
      %v519 = vpop.f32.mrf.mxu0
      %v520 = vadd.f32 %v265, %v519
      %v521 = vpop.f32.mrf.mxu0
      %v522 = vadd.f32 %v265, %v521
      %523 = vmatmul.bf16.gmra.mxu0 %v421
      %v524 = vpop.f32.mrf.mxu0
      %v525 = vadd.f32 %v265, %v524
      %v526 = vpop.f32.mrf.mxu0
      %v527 = vadd.f32 %v265, %v526
      %528 = vdwg.mxu0
      %v529 = vmax.f32 %v440, 0.0
      %v530 = vmax.f32 %v442, 0.0
      %v531 = vmax.f32 %v445, 0.0
      %v532 = vmax.f32 %v447, 0.0
      %v533 = vmax.f32 %v450, 0.0
      %v534 = vmax.f32 %v452, 0.0
      %v535 = vmax.f32 %v455, 0.0
      %v536 = vmax.f32 %v457, 0.0
      %v537 = vmax.f32 %v460, 0.0
      %v538 = vmax.f32 %v462, 0.0
      %v539 = vmax.f32 %v465, 0.0
      %v540 = vmax.f32 %v467, 0.0
      %v541 = vmax.f32 %v470, 0.0
      %v542 = vmax.f32 %v472, 0.0
      %v543 = vmax.f32 %v475, 0.0
      %v544 = vmax.f32 %v477, 0.0
      %v545 = vmax.f32 %v480, 0.0
      %v546 = vmax.f32 %v482, 0.0
      %v547 = vmax.f32 %v485, 0.0
      %v548 = vmax.f32 %v487, 0.0
      %v549 = vmax.f32 %v490, 0.0
      %v550 = vmax.f32 %v492, 0.0
      %v551 = vmax.f32 %v495, 0.0
      %v552 = vmax.f32 %v497, 0.0
      %v553 = vmax.f32 %v500, 0.0
      %v554 = vmax.f32 %v502, 0.0
      %v555 = vmax.f32 %v505, 0.0
      %v556 = vmax.f32 %v507, 0.0
      %v557 = vmax.f32 %v510, 0.0
      %v558 = vmax.f32 %v512, 0.0
      %v559 = vmax.f32 %v515, 0.0
      %v560 = vmax.f32 %v517, 0.0
      %v561 = vmax.f32 %v520, 0.0
      %v562 = vmax.f32 %v522, 0.0
      %v563 = vmax.f32 %v525, 0.0
      %v564 = vmax.f32 %v527, 0.0
      %v601 = vrot.slane %v529, 2
      %v602 = vrot.slane %v529, 4
      %v603 = vrot.slane %v529, 6
      %v604 = vrot.slane %v530, 2
      %v605 = vrot.slane %v530, 4
      %v606 = vrot.slane %v530, 6
      %v607 = vrot.slane %v531, 2
      %v608 = vrot.slane %v531, 4
      %v609 = vrot.slane %v531, 6
      %v610 = vrot.slane %v532, 2
      %v611 = vrot.slane %v532, 4
      %v612 = vrot.slane %v532, 6
      %v613 = vrot.slane %v533, 4
      %v614 = vrot.slane %v533, 6
      %v615 = vrot.slane %v534, 2
      %v616 = vrot.slane %v534, 4
      %v617 = vrot.slane %v534, 6
      %v618 = vrot.slane %v535, 2
      %v619 = vrot.slane %v535, 6
      %v620 = vrot.slane %v536, 2
      %v621 = vrot.slane %v536, 4
      %v622 = vrot.slane %v536, 6
      %v623 = vrot.slane %v537, 2
      %v624 = vrot.slane %v537, 4
      %v625 = vrot.slane %v538, 2
      %v626 = vrot.slane %v538, 4
      %v627 = vrot.slane %v538, 6
      %v628 = vrot.slane %v539, 2
      %v629 = vrot.slane %v539, 4
      %v630 = vrot.slane %v539, 6
      %v631 = vrot.slane %v540, 2
      %v632 = vrot.slane %v540, 4
      %v633 = vrot.slane %v540, 6
      %v634 = vrot.slane %v541, 2
      %v635 = vrot.slane %v541, 4
      %v636 = vrot.slane %v541, 6
      %v637 = vrot.slane %v542, 4
      %v638 = vrot.slane %v542, 6
      %v639 = vrot.slane %v543, 2
      %v640 = vrot.slane %v543, 4
      %v641 = vrot.slane %v543, 6
      %v642 = vrot.slane %v544, 2
      %v643 = vrot.slane %v544, 6
      %v644 = vrot.slane %v545, 2
      %v645 = vrot.slane %v545, 4
      %v646 = vrot.slane %v545, 6
      %v647 = vrot.slane %v546, 2
      %v648 = vrot.slane %v546, 4
      %v649 = vrot.slane %v547, 2
      %v650 = vrot.slane %v547, 4
      %v651 = vrot.slane %v547, 6
      %v652 = vrot.slane %v548, 2
      %v653 = vrot.slane %v548, 4
      %v654 = vrot.slane %v548, 6
      %v655 = vrot.slane %v549, 2
      %v656 = vrot.slane %v549, 4
      %v657 = vrot.slane %v549, 6
      %v658 = vrot.slane %v550, 2
      %v659 = vrot.slane %v550, 4
      %v660 = vrot.slane %v550, 6
      %v661 = vrot.slane %v551, 4
      %v662 = vrot.slane %v551, 6
      %v663 = vrot.slane %v552, 2
      %v664 = vrot.slane %v552, 4
      %v665 = vrot.slane %v552, 6
      %v666 = vrot.slane %v553, 2
      %v667 = vrot.slane %v553, 6
      %v668 = vrot.slane %v554, 2
      %v669 = vrot.slane %v554, 4
      %v670 = vrot.slane %v554, 6
      %v671 = vrot.slane %v555, 2
      %v672 = vrot.slane %v555, 4
      %v673 = vrot.slane %v556, 2
      %v674 = vrot.slane %v556, 4
      %v675 = vrot.slane %v556, 6
      %v676 = vrot.slane %v557, 2
      %v677 = vrot.slane %v557, 4
      %v678 = vrot.slane %v557, 6
      %v679 = vrot.slane %v558, 2
      %v680 = vrot.slane %v558, 4
      %v681 = vrot.slane %v558, 6
      %v682 = vrot.slane %v559, 2
      %v683 = vrot.slane %v559, 4
      %v684 = vrot.slane %v559, 6
      %v685 = vrot.slane %v560, 4
      %v686 = vrot.slane %v560, 6
      %v687 = vrot.slane %v561, 2
      %v688 = vrot.slane %v561, 4
      %v689 = vrot.slane %v561, 6
      %v690 = vrot.slane %v562, 2
      %v691 = vrot.slane %v562, 6
      %v692 = vrot.slane %v563, 2
      %v693 = vrot.slane %v563, 4
      %v694 = vrot.slane %v563, 6
      %v695 = vrot.slane %v564, 2
      %v696 = vrot.slane %v564, 4
      %697 = vst [vmem:[#allocation1] ss:$4 sm:$0xff] %v529
      %s698 = scalar_lea.vmem [#allocation1], 1
      %699 = vst [vmem:[%s698] ss:$4 sm:$0xff] %v601
      %s700 = scalar_lea.vmem [#allocation1], 2
      %701 = vst [vmem:[%s700] ss:$4 sm:$0xff] %v602
      %s702 = scalar_lea.vmem [#allocation1], 3
      %703 = vst [vmem:[%s702] ss:$4 sm:$0xff] %v603
      %s704 = scalar_lea.vmem [#allocation1], 32
      %705 = vst [vmem:[%s704] ss:$4 sm:$0xff] %v530
      %s706 = scalar_lea.vmem [#allocation1], 33
      %707 = vst [vmem:[%s706] ss:$4 sm:$0xff] %v604
      %s708 = scalar_lea.vmem [#allocation1], 34
      %709 = vst [vmem:[%s708] ss:$4 sm:$0xff] %v605
      %s710 = scalar_lea.vmem [#allocation1], 35
      %711 = vst [vmem:[%s710] ss:$4 sm:$0xff] %v606
      %v712 = vld.sshfl [vmem:[#allocation1] sm:$0xff pattern:$0x73625140]
      %v713 = vld.sshfl [vmem:[#allocation1 + $0x20] sm:$0xff pattern:$0x73625140]
      %714 = vst [vmem:[#allocation1] ss:$4 sm:$0xff] %v607
      %715 = vst [vmem:[%s698] ss:$4 sm:$0xff] %v608
      %716 = vst [vmem:[%s700] ss:$4 sm:$0xff] %v609
      %717 = vst [vmem:[%s702] ss:$4 sm:$0xff] %v532
      %718 = vst [vmem:[%s704] ss:$4 sm:$0xff] %v610
      %719 = vst [vmem:[%s706] ss:$4 sm:$0xff] %v611
      %720 = vst [vmem:[%s708] ss:$4 sm:$0xff] %v612
      %721 = vst [vmem:[%s710] ss:$4 sm:$0xff] %v533
      %v722 = vld.sshfl [vmem:[#allocation1] sm:$0xff pattern:$0x73625140]
      %v723 = vld.sshfl [vmem:[#allocation1 + $0x20] sm:$0xff pattern:$0x73625140]
      %724 = vst [vmem:[#allocation1] ss:$4 sm:$0xff] %v613
      %725 = vst [vmem:[%s698] ss:$4 sm:$0xff] %v614
      %726 = vst [vmem:[%s700] ss:$4 sm:$0xff] %v534
      %727 = vst [vmem:[%s702] ss:$4 sm:$0xff] %v615
      %728 = vst [vmem:[%s704] ss:$4 sm:$0xff] %v616
      %729 = vst [vmem:[%s706] ss:$4 sm:$0xff] %v617
      %730 = vst [vmem:[%s708] ss:$4 sm:$0xff] %v535
      %731 = vst [vmem:[%s710] ss:$4 sm:$0xff] %v618
      %v732 = vld.sshfl [vmem:[#allocation1] sm:$0xff pattern:$0x73625140]
      %v733 = vld.sshfl [vmem:[#allocation1 + $0x20] sm:$0xff pattern:$0x73625140]
      %734 = vst [vmem:[#allocation1] ss:$4 sm:$0xff] %v619
      %735 = vst [vmem:[%s698] ss:$4 sm:$0xff] %v536
      %736 = vst [vmem:[%s700] ss:$4 sm:$0xff] %v620
      %737 = vst [vmem:[%s702] ss:$4 sm:$0xff] %v621
      %738 = vst [vmem:[%s704] ss:$4 sm:$0xff] %v622
      %739 = vst [vmem:[%s706] ss:$4 sm:$0xff] %v537
      %740 = vst [vmem:[%s708] ss:$4 sm:$0xff] %v623
      %741 = vst [vmem:[%s710] ss:$4 sm:$0xff] %v624
      %v742 = vld.sshfl [vmem:[#allocation1] sm:$0xff pattern:$0x73625140]
      %v743 = vld.sshfl [vmem:[#allocation1 + $0x20] sm:$0xff pattern:$0x73625140]
      %744 = vst [vmem:[#allocation1] ss:$4 sm:$0xff] %v538
      %745 = vst [vmem:[%s698] ss:$4 sm:$0xff] %v625
      %746 = vst [vmem:[%s700] ss:$4 sm:$0xff] %v626
      %747 = vst [vmem:[%s702] ss:$4 sm:$0xff] %v627
      %748 = vst [vmem:[%s704] ss:$4 sm:$0xff] %v539
      %749 = vst [vmem:[%s706] ss:$4 sm:$0xff] %v628
      %750 = vst [vmem:[%s708] ss:$4 sm:$0xff] %v629
      %751 = vst [vmem:[%s710] ss:$4 sm:$0xff] %v630
      %v752 = vld.sshfl [vmem:[#allocation1] sm:$0xff pattern:$0x73625140]
      %v753 = vld.sshfl [vmem:[#allocation1 + $0x20] sm:$0xff pattern:$0x73625140]
      %754 = vst [vmem:[#allocation1] ss:$4 sm:$0xff] %v631
      %755 = vst [vmem:[%s698] ss:$4 sm:$0xff] %v632
      %756 = vst [vmem:[%s700] ss:$4 sm:$0xff] %v633
      %757 = vst [vmem:[%s702] ss:$4 sm:$0xff] %v541
      %758 = vst [vmem:[%s704] ss:$4 sm:$0xff] %v634
      %759 = vst [vmem:[%s706] ss:$4 sm:$0xff] %v635
      %760 = vst [vmem:[%s708] ss:$4 sm:$0xff] %v636
      %761 = vst [vmem:[%s710] ss:$4 sm:$0xff] %v542
      %v762 = vld.sshfl [vmem:[#allocation1] sm:$0xff pattern:$0x73625140]
      %v763 = vld.sshfl [vmem:[#allocation1 + $0x20] sm:$0xff pattern:$0x73625140]
      %764 = vst [vmem:[#allocation1] ss:$4 sm:$0xff] %v637
      %765 = vst [vmem:[%s698] ss:$4 sm:$0xff] %v638
      %766 = vst [vmem:[%s700] ss:$4 sm:$0xff] %v543
      %767 = vst [vmem:[%s702] ss:$4 sm:$0xff] %v639
      %768 = vst [vmem:[%s704] ss:$4 sm:$0xff] %v640
      %769 = vst [vmem:[%s706] ss:$4 sm:$0xff] %v641
      %770 = vst [vmem:[%s708] ss:$4 sm:$0xff] %v544
      %771 = vst [vmem:[%s710] ss:$4 sm:$0xff] %v642
      %v772 = vld.sshfl [vmem:[#allocation1] sm:$0xff pattern:$0x73625140]
      %v773 = vld.sshfl [vmem:[#allocation1 + $0x20] sm:$0xff pattern:$0x73625140]
      %774 = vst [vmem:[#allocation1] ss:$4 sm:$0xff] %v643
      %775 = vst [vmem:[%s698] ss:$4 sm:$0xff] %v545
      %776 = vst [vmem:[%s700] ss:$4 sm:$0xff] %v644
      %777 = vst [vmem:[%s702] ss:$4 sm:$0xff] %v645
      %778 = vst [vmem:[%s704] ss:$4 sm:$0xff] %v646
      %779 = vst [vmem:[%s706] ss:$4 sm:$0xff] %v546
      %780 = vst [vmem:[%s708] ss:$4 sm:$0xff] %v647
      %781 = vst [vmem:[%s710] ss:$4 sm:$0xff] %v648
      %v782 = vld.sshfl [vmem:[#allocation1] sm:$0xff pattern:$0x73625140]
      %v783 = vld.sshfl [vmem:[#allocation1 + $0x20] sm:$0xff pattern:$0x73625140]
      %784 = vst [vmem:[#allocation1] ss:$4 sm:$0xff] %v547
      %785 = vst [vmem:[%s698] ss:$4 sm:$0xff] %v649
      %786 = vst [vmem:[%s700] ss:$4 sm:$0xff] %v650
      %787 = vst [vmem:[%s702] ss:$4 sm:$0xff] %v651
      %788 = vst [vmem:[%s704] ss:$4 sm:$0xff] %v548
      %789 = vst [vmem:[%s706] ss:$4 sm:$0xff] %v652
      %790 = vst [vmem:[%s708] ss:$4 sm:$0xff] %v653
      %791 = vst [vmem:[%s710] ss:$4 sm:$0xff] %v654
      %v792 = vld.sshfl [vmem:[#allocation1] sm:$0xff pattern:$0x73625140]
      %v793 = vld.sshfl [vmem:[#allocation1 + $0x20] sm:$0xff pattern:$0x73625140]
      %794 = vst [vmem:[#allocation1] ss:$4 sm:$0xff] %v655
      %795 = vst [vmem:[%s698] ss:$4 sm:$0xff] %v656
      %796 = vst [vmem:[%s700] ss:$4 sm:$0xff] %v657
      %797 = vst [vmem:[%s702] ss:$4 sm:$0xff] %v550
      %798 = vst [vmem:[%s704] ss:$4 sm:$0xff] %v658
      %799 = vst [vmem:[%s706] ss:$4 sm:$0xff] %v659
      %800 = vst [vmem:[%s708] ss:$4 sm:$0xff] %v660
      %801 = vst [vmem:[%s710] ss:$4 sm:$0xff] %v551
      %v802 = vld.sshfl [vmem:[#allocation1] sm:$0xff pattern:$0x73625140]
      %v803 = vld.sshfl [vmem:[#allocation1 + $0x20] sm:$0xff pattern:$0x73625140]
      %804 = vst [vmem:[#allocation1] ss:$4 sm:$0xff] %v661
      %805 = vst [vmem:[%s698] ss:$4 sm:$0xff] %v662
      %806 = vst [vmem:[%s700] ss:$4 sm:$0xff] %v552
      %807 = vst [vmem:[%s702] ss:$4 sm:$0xff] %v663
      %808 = vst [vmem:[%s704] ss:$4 sm:$0xff] %v664
      %809 = vst [vmem:[%s706] ss:$4 sm:$0xff] %v665
      %810 = vst [vmem:[%s708] ss:$4 sm:$0xff] %v553
      %811 = vst [vmem:[%s710] ss:$4 sm:$0xff] %v666
      %v812 = vld.sshfl [vmem:[#allocation1] sm:$0xff pattern:$0x73625140]
      %v813 = vld.sshfl [vmem:[#allocation1 + $0x20] sm:$0xff pattern:$0x73625140]
      %814 = vst [vmem:[#allocation1] ss:$4 sm:$0xff] %v667
      %815 = vst [vmem:[%s698] ss:$4 sm:$0xff] %v554
      %816 = vst [vmem:[%s700] ss:$4 sm:$0xff] %v668
      %817 = vst [vmem:[%s702] ss:$4 sm:$0xff] %v669
      %818 = vst [vmem:[%s704] ss:$4 sm:$0xff] %v670
      %819 = vst [vmem:[%s706] ss:$4 sm:$0xff] %v555
      %820 = vst [vmem:[%s708] ss:$4 sm:$0xff] %v671
      %821 = vst [vmem:[%s710] ss:$4 sm:$0xff] %v672
      %v822 = vld.sshfl [vmem:[#allocation1] sm:$0xff pattern:$0x73625140]
      %v823 = vld.sshfl [vmem:[#allocation1 + $0x20] sm:$0xff pattern:$0x73625140]
      %824 = vst [vmem:[#allocation1] ss:$4 sm:$0xff] %v556
      %825 = vst [vmem:[%s698] ss:$4 sm:$0xff] %v673
      %826 = vst [vmem:[%s700] ss:$4 sm:$0xff] %v674
      %827 = vst [vmem:[%s702] ss:$4 sm:$0xff] %v675
      %828 = vst [vmem:[%s704] ss:$4 sm:$0xff] %v557
      %829 = vst [vmem:[%s706] ss:$4 sm:$0xff] %v676
      %830 = vst [vmem:[%s708] ss:$4 sm:$0xff] %v677
      %831 = vst [vmem:[%s710] ss:$4 sm:$0xff] %v678
      %v832 = vld.sshfl [vmem:[#allocation1] sm:$0xff pattern:$0x73625140]
      %v833 = vld.sshfl [vmem:[#allocation1 + $0x20] sm:$0xff pattern:$0x73625140]
      %834 = vst [vmem:[#allocation1] ss:$4 sm:$0xff] %v679
      %835 = vst [vmem:[%s698] ss:$4 sm:$0xff] %v680
      %836 = vst [vmem:[%s700] ss:$4 sm:$0xff] %v681
      %837 = vst [vmem:[%s702] ss:$4 sm:$0xff] %v559
      %838 = vst [vmem:[%s704] ss:$4 sm:$0xff] %v682
      %839 = vst [vmem:[%s706] ss:$4 sm:$0xff] %v683
      %840 = vst [vmem:[%s708] ss:$4 sm:$0xff] %v684
      %841 = vst [vmem:[%s710] ss:$4 sm:$0xff] %v560
      %v842 = vld.sshfl [vmem:[#allocation1] sm:$0xff pattern:$0x73625140]
      %v843 = vld.sshfl [vmem:[#allocation1 + $0x20] sm:$0xff pattern:$0x73625140]
      %844 = vst [vmem:[#allocation1] ss:$4 sm:$0xff] %v685
      %845 = vst [vmem:[%s698] ss:$4 sm:$0xff] %v686
      %846 = vst [vmem:[%s700] ss:$4 sm:$0xff] %v561
      %847 = vst [vmem:[%s702] ss:$4 sm:$0xff] %v687
      %848 = vst [vmem:[%s704] ss:$4 sm:$0xff] %v688
      %849 = vst [vmem:[%s706] ss:$4 sm:$0xff] %v689
      %850 = vst [vmem:[%s708] ss:$4 sm:$0xff] %v562
      %851 = vst [vmem:[%s710] ss:$4 sm:$0xff] %v690
      %v852 = vld.sshfl [vmem:[#allocation1] sm:$0xff pattern:$0x73625140]
      %v853 = vld.sshfl [vmem:[#allocation1 + $0x20] sm:$0xff pattern:$0x73625140]
      %854 = vst [vmem:[#allocation1] ss:$4 sm:$0xff] %v691
      %855 = vst [vmem:[%s698] ss:$4 sm:$0xff] %v563
      %856 = vst [vmem:[%s700] ss:$4 sm:$0xff] %v692
      %857 = vst [vmem:[%s702] ss:$4 sm:$0xff] %v693
      %858 = vst [vmem:[%s704] ss:$4 sm:$0xff] %v694
      %859 = vst [vmem:[%s706] ss:$4 sm:$0xff] %v564
      %860 = vst [vmem:[%s708] ss:$4 sm:$0xff] %v695
      %861 = vst [vmem:[%s710] ss:$4 sm:$0xff] %v696
      %v862 = vld.sshfl [vmem:[#allocation1] sm:$0xff pattern:$0x73625140]
      %v863 = vld.sshfl [vmem:[#allocation1 + $0x20] sm:$0xff pattern:$0x73625140]
      %v896 = vpack.c.bf16 %v712, %v712
      %v897 = vpack.c.bf16 %v713, %v713
      %v898 = vpack.c.bf16 %v722, %v722
      %v899 = vpack.c.bf16 %v723, %v723
      %v900 = vpack.c.bf16 %v732, %v732
      %v901 = vpack.c.bf16 %v733, %v733
      %v902 = vpack.c.bf16 %v742, %v742
      %v903 = vpack.c.bf16 %v743, %v743
      %v904 = vpack.c.bf16 %v752, %v752
      %v905 = vpack.c.bf16 %v753, %v753
      %v906 = vpack.c.bf16 %v762, %v762
      %v907 = vpack.c.bf16 %v763, %v763
      %v908 = vpack.c.bf16 %v772, %v772
      %v909 = vpack.c.bf16 %v773, %v773
      %v910 = vpack.c.bf16 %v782, %v782
      %v911 = vpack.c.bf16 %v783, %v783
      %v912 = vpack.c.bf16 %v792, %v792
      %v913 = vpack.c.bf16 %v793, %v793
      %v914 = vpack.c.bf16 %v802, %v802
      %v915 = vpack.c.bf16 %v803, %v803
      %v916 = vpack.c.bf16 %v812, %v812
      %v917 = vpack.c.bf16 %v813, %v813
      %v918 = vpack.c.bf16 %v822, %v822
      %v919 = vpack.c.bf16 %v823, %v823
      %v920 = vpack.c.bf16 %v832, %v832
      %v921 = vpack.c.bf16 %v833, %v833
      %v922 = vpack.c.bf16 %v842, %v842
      %v923 = vpack.c.bf16 %v843, %v843
      %v924 = vpack.c.bf16 %v852, %v852
      %v925 = vpack.c.bf16 %v853, %v853
      %v926 = vpack.c.bf16 %v862, %v862
      %v927 = vpack.c.bf16 %v863, %v863
      %vm928 = vcmask 519168
      %929 = vst.msk [vmem:[%s221] sm:$0xf] %vm928, %v896
      %930 = vst.msk [vmem:[%s221 + $0x4] sm:$0xf] %vm928, %v897
      %931 = vst.msk [vmem:[%s221 + $0x8] sm:$0xf] %vm928, %v898
      %932 = vst.msk [vmem:[%s221 + $0xc] sm:$0xf] %vm928, %v899
      %933 = vst.msk [vmem:[%s221 + $0x10] sm:$0xf] %vm928, %v900
      %934 = vst.msk [vmem:[%s221 + $0x14] sm:$0xf] %vm928, %v901
      %935 = vst.msk [vmem:[%s221 + $0x18] sm:$0xf] %vm928, %v902
      %936 = vst.msk [vmem:[%s221 + $0x1c] sm:$0xf] %vm928, %v903
      %937 = vst.msk [vmem:[%s221 + $0x20] sm:$0xf] %vm928, %v904
      %938 = vst.msk [vmem:[%s221 + $0x24] sm:$0xf] %vm928, %v905
      %939 = vst.msk [vmem:[%s221 + $0x28] sm:$0xf] %vm928, %v906
      %940 = vst.msk [vmem:[%s221 + $0x2c] sm:$0xf] %vm928, %v907
      %941 = vst.msk [vmem:[%s221 + $0x30] sm:$0xf] %vm928, %v908
      %942 = vst.msk [vmem:[%s221 + $0x34] sm:$0xf] %vm928, %v909
      %943 = vst.msk [vmem:[%s221 + $0x38] sm:$0xf] %vm928, %v910
      %944 = vst.msk [vmem:[%s221 + $0x3c] sm:$0xf] %vm928, %v911
      %945 = vst.msk [vmem:[%s221 + $0x40] sm:$0xf] %vm928, %v912
      %946 = vst.msk [vmem:[%s221 + $0x44] sm:$0xf] %vm928, %v913
      %947 = vst.msk [vmem:[%s221 + $0x48] sm:$0xf] %vm928, %v914
      %948 = vst.msk [vmem:[%s221 + $0x4c] sm:$0xf] %vm928, %v915
      %949 = vst.msk [vmem:[%s221 + $0x50] sm:$0xf] %vm928, %v916
      %950 = vst.msk [vmem:[%s221 + $0x54] sm:$0xf] %vm928, %v917
      %951 = vst.msk [vmem:[%s221 + $0x58] sm:$0xf] %vm928, %v918
      %952 = vst.msk [vmem:[%s221 + $0x5c] sm:$0xf] %vm928, %v919
      %953 = vst.msk [vmem:[%s221 + $0x60] sm:$0xf] %vm928, %v920
      %954 = vst.msk [vmem:[%s221 + $0x64] sm:$0xf] %vm928, %v921
      %955 = vst.msk [vmem:[%s221 + $0x68] sm:$0xf] %vm928, %v922
      %956 = vst.msk [vmem:[%s221 + $0x6c] sm:$0xf] %vm928, %v923
      %957 = vst.msk [vmem:[%s221 + $0x70] sm:$0xf] %vm928, %v924
      %958 = vst.msk [vmem:[%s221 + $0x74] sm:$0xf] %vm928, %v925
      %959 = vst.msk [vmem:[%s221 + $0x78] sm:$0xf] %vm928, %v926
      %960 = vst.msk [vmem:[%s221 + $0x7c] sm:$0xf] %vm928, %v927
      %p961 = scmp.lt.s32.totalorder %s19, 1
      %s962 = scalar_select %p961, %s19, 1
      %p963 = scmp.lt.s32.totalorder %s18, 0
      %s964 = scalar_select %p963, %s18, 0
      %s965 = smul.addr %s962, 32
      %s966 = sadd.s32 %s964, %s965
      %s967 = smul.addr %s966, 4
      %s968 = scalar_lea.vmem %s3, %s967
      // Predicated region
      $region33: #{chopped_vgg19_forward.2} parent=31 // pred_check
        %p969 = pneg %p124
      $region34: #{chopped_vgg19_forward.2} parent=31 // pred_check_branch
        %971 = sbr.rel (%p969) target = $region36
      $region35: #{chopped_vgg19_forward.2} parent=31 // pred_region
        _
      $region36: #{chopped_vgg19_forward.2} parent=31 // pred_fallthru
        _
    $region32: #{chopped_vgg19_forward.2} parent=5 // pred_fallthru
      _
    %p972 = scmp.le.s32.totalorder 2, %s9
    // Predicated region
    $region37: #{chopped_vgg19_forward.2} parent=5 // pred_check
      %p973 = pneg %p972
    $region38: #{chopped_vgg19_forward.2} parent=5 // pred_check_branch
      %975 = sbr.rel (%p973) target = $region40
    $region39: #{chopped_vgg19_forward.2} parent=5 // pred_region
      %s976 = ssub.s32 %s9, 2
      // Predicated region
      $region41: #{chopped_vgg19_forward.2} parent=39 // pred_check
        %p977 = pneg %p130
      $region42: #{chopped_vgg19_forward.2} parent=39 // pred_check_branch
        %979 = sbr.rel (%p977) target = $region44
      $region43: #{chopped_vgg19_forward.2} parent=39 // pred_region
        %p980 = scmp.lt.s32.totalorder %s21, 1
        %s981 = scalar_select %p980, %s21, 1
        %p982 = scmp.lt.s32.totalorder %s20, 0
        %s983 = scalar_select %p982, %s20, 0
        %s984 = smul.addr %s981, 32
        %s985 = sadd.s32 %s983, %s984
        %s986 = smul.addr %s985, 4
        %s987 = scalar_lea.vmem %s3, %s986
      $region44: #{chopped_vgg19_forward.2} parent=39 // pred_fallthru
        _
    $region40: #{chopped_vgg19_forward.2} parent=5 // pred_fallthru
      _
  $region6: #{chopped_vgg19_forward.2} parent=0 // loop_footer
    %s13 = sadd.s32 1, %s9
  $region7: #{chopped_vgg19_forward.2} parent=0 // loop_footer_branch
    %8 = sbr.rel target = $region3
  $region8: #{chopped_vgg19_forward.2} parent=0 // loop_exit
    _

// kernel: chopped_vgg19_forward.3
$region0: #{chopped_vgg19_forward.3}
  #allocation0 [shape = 'u32[]', space=smem, size = 0x4, offset = 0x4, fixed_abs, tag = 'smem constant byte address 0x4 - core index']
  #allocation1 [shape = 'u32[72,128]{1,0:T(1,128)}', space=vmem, size = 0x9000, scoped, tag = 'internal scratch']
  %s0 = inlined_call_operand.vmem [shape: bf16[2,342,64], index: 0, kind: input, shape index: {}]
  %s1 = inlined_call_operand.vmem [shape: bf16[9,64,64], index: 1, kind: input, shape index: {}]
  %s2 = inlined_call_operand.vmem [shape: f32[1,64], index: 2, kind: input, shape index: {}]
  %s3 = inlined_call_operand.vmem [shape: bf16[2,16,16,64], index: 3, kind: output, shape index: {}]
  %s4 = sld [smem:[#allocation0]]
  $region45: #{chopped_vgg19_forward.3} parent=0
    _
  %s6 = ssub.s32 1, %s4
  %s7 = scalar_select 0, %s6, %s4
  loop: start=0, step=1, limit=4
  $region2: #{chopped_vgg19_forward.3} parent=0 // loop_pre_header
    _
  $region3: #{chopped_vgg19_forward.3} parent=0 // loop_header
    %s9 = sphi 0, %s13
    %p10 = scmp.ge.s32.totalorder %s9, 4
    %s16 = sphi 0, %s28
    %s17 = sphi 0, %s24
    %s18 = sphi 0, %s16
    %s19 = sphi 0, %s17
    %s20 = sphi 0, %s18
    %s21 = sphi 0, %s19
    %s31 = sphi 0, %s33
    %s34 = sphi 0, %s31
    %s35 = sphi 0, %s34
    %s51 = sphi 0, %s35
    %s57 = sphi 0, %s59
    %s60 = sphi 0, %s57
    %s61 = sphi 0, %s60
    %s77 = sphi 0, %s61
    %s83 = sphi 0, %s85
    %s86 = sphi 0, %s83
    %s87 = sphi 0, %s86
    %s103 = sphi 0, %s87
    %s111 = sphi 0, %s113
    %s114 = sphi 0, %s111
    %s115 = sphi 0, %s114
    %s131 = sphi 0, %s115
  $region4: #{chopped_vgg19_forward.3} parent=0 // loop_header_branch
    %12 = sbr.rel (%p10) target = $region8
  $region5: #{chopped_vgg19_forward.3} parent=0 // loop_body
    %s14 = ssub.s32 %s9, 1
    %s15 = ssub.s32 %s9, 2
    %s22 = sadd.s32 1, %s17
    %p23 = scmp.ge.s32.totalorder %s22, 2
    %s24 = scalar_select %p23, 0, %s22
    %s25 = sadd.s32 1, %s16
    %s26 = scalar_select %p23, %s25, %s16
    %p27 = scmp.ge.s32.totalorder %s26, 1
    %s28 = scalar_select %p27, 0, %s26
    %s29 = ssub.s32 %s17, %s24
    %p30 = scmp.eq.s32.totalorder %s29, 0
    %s32 = sadd.s32 %s31, 1
    %s33 = scalar_select %p30, %s31, %s32
    %p36 = pneg %p30
    %p37 = scmp.eq.s32.totalorder %s9, 1
    %p38 = por %p36, %p37
    %p39 = scmp.ne.s32.totalorder %s31, %s34
    %p40 = scmp.eq.s32.totalorder %s9, 0
    %p41 = por %p39, %p40
    %p42 = scmp.ne.s32.totalorder %s31, %s34
    %p43 = scmp.eq.s32.totalorder %s14, 1
    %p44 = por %p42, %p43
    %p45 = scmp.ne.s32.totalorder %s34, %s35
    %p46 = scmp.eq.s32.totalorder %s14, 0
    %p47 = por %p45, %p46
    %p48 = scmp.ne.s32.totalorder %s34, %s35
    %p49 = scmp.eq.s32.totalorder %s15, 1
    %p50 = por %p48, %p49
    %p52 = scmp.ne.s32.totalorder %s35, %s51
    %p53 = scmp.eq.s32.totalorder %s15, 0
    %p54 = por %p52, %p53
    %s55 = ssub.s32 %s16, %s28
    %p56 = scmp.eq.s32.totalorder %s55, 0
    %s58 = sadd.s32 %s57, 1
    %s59 = scalar_select %p56, %s57, %s58
    %p62 = pneg %p56
    %p63 = scmp.eq.s32.totalorder %s9, 1
    %p64 = por %p62, %p63
    %p65 = scmp.ne.s32.totalorder %s57, %s60
    %p66 = scmp.eq.s32.totalorder %s9, 0
    %p67 = por %p65, %p66
    %p68 = scmp.ne.s32.totalorder %s57, %s60
    %p69 = scmp.eq.s32.totalorder %s14, 1
    %p70 = por %p68, %p69
    %p71 = scmp.ne.s32.totalorder %s60, %s61
    %p72 = scmp.eq.s32.totalorder %s14, 0
    %p73 = por %p71, %p72
    %p74 = scmp.ne.s32.totalorder %s60, %s61
    %p75 = scmp.eq.s32.totalorder %s15, 1
    %p76 = por %p74, %p75
    %p78 = scmp.ne.s32.totalorder %s61, %s77
    %p79 = scmp.eq.s32.totalorder %s15, 0
    %p80 = por %p78, %p79
    %s81 = ssub.s32 %s16, %s28
    %p82 = scmp.eq.s32.totalorder %s81, 0
    %s84 = sadd.s32 %s83, 1
    %s85 = scalar_select %p82, %s83, %s84
    %p88 = pneg %p82
    %p89 = scmp.eq.s32.totalorder %s9, 1
    %p90 = por %p88, %p89
    %p91 = scmp.ne.s32.totalorder %s83, %s86
    %p92 = scmp.eq.s32.totalorder %s9, 0
    %p93 = por %p91, %p92
    %p94 = scmp.ne.s32.totalorder %s83, %s86
    %p95 = scmp.eq.s32.totalorder %s14, 1
    %p96 = por %p94, %p95
    %p97 = scmp.ne.s32.totalorder %s86, %s87
    %p98 = scmp.eq.s32.totalorder %s14, 0
    %p99 = por %p97, %p98
    %p100 = scmp.ne.s32.totalorder %s86, %s87
    %p101 = scmp.eq.s32.totalorder %s15, 1
    %p102 = por %p100, %p101
    %p104 = scmp.ne.s32.totalorder %s87, %s103
    %p105 = scmp.eq.s32.totalorder %s15, 0
    %p106 = por %p104, %p105
    %s107 = ssub.s32 %s17, %s24
    %s108 = ssub.s32 %s16, %s28
    %s109 = sor.u32 %s107, %s108
    %p110 = scmp.eq.s32.totalorder %s109, 0
    %s112 = sadd.s32 %s111, 1
    %s113 = scalar_select %p110, %s111, %s112
    %p116 = pneg %p110
    %p117 = scmp.eq.s32.totalorder %s9, 1
    %p118 = por %p116, %p117
    %p119 = scmp.ne.s32.totalorder %s111, %s114
    %p120 = scmp.eq.s32.totalorder %s9, 0
    %p121 = por %p119, %p120
    %p122 = scmp.ne.s32.totalorder %s111, %s114
    %p123 = scmp.eq.s32.totalorder %s14, 1
    %p124 = por %p122, %p123
    %p125 = scmp.ne.s32.totalorder %s114, %s115
    %p126 = scmp.eq.s32.totalorder %s14, 0
    %p127 = por %p125, %p126
    %p128 = scmp.ne.s32.totalorder %s114, %s115
    %p129 = scmp.eq.s32.totalorder %s15, 1
    %p130 = por %p128, %p129
    %p132 = scmp.ne.s32.totalorder %s115, %s131
    %p133 = scmp.eq.s32.totalorder %s15, 0
    %p134 = por %p132, %p133
    %p135 = scmp.le.s32.totalorder 1, %s9
    %p136 = scmp.lt.s32.totalorder %s9, 3
    %p137 = pnand %p135, %p136
    %p138 = pneg %p137
    // Predicated region
    $region9: #{chopped_vgg19_forward.3} parent=5 // pred_check
      _
    $region10: #{chopped_vgg19_forward.3} parent=5 // pred_check_branch
      %140 = sbr.rel (%p137) target = $region12
    $region11: #{chopped_vgg19_forward.3} parent=5 // pred_region
      %s141 = ssub.s32 %s9, 1
      // Predicated region
      $region13: #{chopped_vgg19_forward.3} parent=11 // pred_check
        %p142 = pneg %p73
      $region14: #{chopped_vgg19_forward.3} parent=11 // pred_check_branch
        %144 = sbr.rel (%p142) target = $region16
      $region15: #{chopped_vgg19_forward.3} parent=11 // pred_region
        %p145 = scmp.lt.s32.totalorder %s18, 0
        %s146 = scalar_select %p145, %s18, 0
        %s147 = smul.addr %s146, 4
        %s148 = scalar_lea.vmem %s1, %s147
      $region16: #{chopped_vgg19_forward.3} parent=11 // pred_fallthru
        _
      // Predicated region
      $region17: #{chopped_vgg19_forward.3} parent=11 // pred_check
        %p149 = pneg %p99
      $region18: #{chopped_vgg19_forward.3} parent=11 // pred_check_branch
        %151 = sbr.rel (%p149) target = $region20
      $region19: #{chopped_vgg19_forward.3} parent=11 // pred_region
        %p152 = scmp.lt.s32.totalorder %s18, 0
        %s153 = scalar_select %p152, %s18, 0
        %s154 = scalar_lea.vmem %s2, %s153
      $region20: #{chopped_vgg19_forward.3} parent=11 // pred_fallthru
        _
    $region12: #{chopped_vgg19_forward.3} parent=5 // pred_fallthru
      _
    %p155 = scmp.lt.s32.totalorder %s9, 2
    // Predicated region
    $region21: #{chopped_vgg19_forward.3} parent=5 // pred_check
      %p156 = pneg %p155
    $region22: #{chopped_vgg19_forward.3} parent=5 // pred_check_branch
      %158 = sbr.rel (%p156) target = $region24
    $region23: #{chopped_vgg19_forward.3} parent=5 // pred_region
      // Predicated region
      $region25: #{chopped_vgg19_forward.3} parent=23 // pred_check
        %p159 = pneg %p41
      $region26: #{chopped_vgg19_forward.3} parent=23 // pred_check_branch
        %161 = sbr.rel (%p159) target = $region28
      $region27: #{chopped_vgg19_forward.3} parent=23 // pred_region
        %p162 = scmp.lt.s32.totalorder %s17, 1
        %s163 = scalar_select %p162, %s17, 1
        %s164 = smul.addr %s163, 43
        %s165 = smul.addr %s164, 4
        %s166 = scalar_lea.vmem %s0, %s165
      $region28: #{chopped_vgg19_forward.3} parent=23 // pred_fallthru
        _
    $region24: #{chopped_vgg19_forward.3} parent=5 // pred_fallthru
      _
    %p167 = scmp.le.s32.totalorder 1, %s9
    %p168 = scmp.lt.s32.totalorder %s9, 3
    %p169 = pnand %p167, %p168
    %p170 = pneg %p169
    // Predicated region
    $region29: #{chopped_vgg19_forward.3} parent=5 // pred_check
      _
    $region30: #{chopped_vgg19_forward.3} parent=5 // pred_check_branch
      %172 = sbr.rel (%p169) target = $region32
    $region31: #{chopped_vgg19_forward.3} parent=5 // pred_region
      %s173 = ssub.s32 %s9, 1
      %p174 = scmp.lt.s32.totalorder %s19, 1
      %s175 = scalar_select %p174, %s19, 1
      %s176 = smul.addr %s175, 43
      %s177 = smul.addr %s176, 4
      %s178 = scalar_lea.vmem %s0, %s177
      %p179 = pneg %p47
      %p180 = pneg %p44
      %p181 = scmp.lt.s32.totalorder %s18, 0
      %s182 = scalar_select %p181, %s18, 0
      %s183 = smul.addr %s182, 4
      %s184 = scalar_lea.vmem %s1, %s183
      %p185 = pneg %p73
      %p186 = pneg %p70
      %p187 = scmp.lt.s32.totalorder %s18, 0
      %s188 = scalar_select %p187, %s18, 0
      %s189 = scalar_lea.vmem %s2, %s188
      %p190 = pneg %p99
      %p191 = pneg %p96
      %p192 = pneg %p127
      %p193 = pneg %p124
      %p194 = scmp.lt.s32.totalorder %s19, 1
      %s195 = scalar_select %p194, %s19, 1
      %p196 = scmp.lt.s32.totalorder %s18, 0
      %s197 = scalar_select %p196, %s18, 0
      %s198 = smul.addr %s195, 32
      %s199 = sadd.s32 %s197, %s198
      %s200 = smul.addr %s199, 4
      %s201 = scalar_lea.vmem %s3, %s200
      %p202 = scmp.lt.s32.totalorder %s19, 1
      %s203 = scalar_select %p202, %s19, 1
      %s204 = smul.addr %s203, 43
      %s205 = smul.addr %s204, 4
      %s206 = scalar_lea.vmem %s0, %s205
      %p207 = scmp.lt.s32.totalorder %s18, 0
      %s208 = scalar_select %p207, %s18, 0
      %s209 = smul.addr %s208, 4
      %s210 = scalar_lea.vmem %s1, %s209
      %p211 = scmp.lt.s32.totalorder %s18, 0
      %s212 = scalar_select %p211, %s18, 0
      %s213 = scalar_lea.vmem %s2, %s212
      %p214 = scmp.lt.s32.totalorder %s19, 1
      %s215 = scalar_select %p214, %s19, 1
      %p216 = scmp.lt.s32.totalorder %s18, 0
      %s217 = scalar_select %p216, %s18, 0
      %s218 = smul.addr %s215, 32
      %s219 = sadd.s32 %s217, %s218
      %s220 = smul.addr %s219, 4
      %s221 = scalar_lea.vmem %s3, %s220
      %v223 = vld [vmem:[%s206] sm:$0xf]
      %v224 = vld [vmem:[%s206 + $0x4] sm:$0xf]
      %v225 = vld [vmem:[%s206 + $0x8] sm:$0xf]
      %v226 = vld [vmem:[%s206 + $0xc] sm:$0xf]
      %v227 = vld [vmem:[%s206 + $0x10] sm:$0xf]
      %v228 = vld [vmem:[%s206 + $0x14] sm:$0xf]
      %v229 = vld [vmem:[%s206 + $0x18] sm:$0xf]
      %v230 = vld [vmem:[%s206 + $0x1c] sm:$0xf]
      %v231 = vld [vmem:[%s206 + $0x20] sm:$0xf]
      %v232 = vld [vmem:[%s206 + $0x24] sm:$0xf]
      %v233 = vld [vmem:[%s206 + $0x28] sm:$0xf]
      %v234 = vld [vmem:[%s206 + $0x2c] sm:$0xf]
      %v235 = vld [vmem:[%s206 + $0x30] sm:$0xf]
      %v236 = vld [vmem:[%s206 + $0x34] sm:$0xf]
      %v237 = vld [vmem:[%s206 + $0x38] sm:$0xf]
      %v238 = vld [vmem:[%s206 + $0x3c] sm:$0xf]
      %v239 = vld [vmem:[%s206 + $0x40] sm:$0xf]
      %v240 = vld [vmem:[%s206 + $0x44] sm:$0xf]
      %v241 = vld [vmem:[%s206 + $0x48] sm:$0xf]
      %v242 = vld [vmem:[%s206 + $0x4c] sm:$0xf]
      %v243 = vld [vmem:[%s206 + $0x50] sm:$0xf]
      %v244 = vld [vmem:[%s206 + $0x54] sm:$0xf]
      %v245 = vld [vmem:[%s206 + $0x58] sm:$0xf]
      %v246 = vld [vmem:[%s206 + $0x5c] sm:$0xf]
      %v247 = vld [vmem:[%s206 + $0x60] sm:$0xf]
      %v248 = vld [vmem:[%s206 + $0x64] sm:$0xf]
      %v249 = vld [vmem:[%s206 + $0x68] sm:$0xf]
      %v250 = vld [vmem:[%s206 + $0x6c] sm:$0xf]
      %v251 = vld [vmem:[%s206 + $0x70] sm:$0xf]
      %v252 = vld [vmem:[%s206 + $0x74] sm:$0xf]
      %v253 = vld [vmem:[%s206 + $0x78] sm:$0xf]
      %v254 = vld [vmem:[%s206 + $0x7c] sm:$0xf]
      %v255 = vld [vmem:[%s206 + $0x80] sm:$0xf]
      %v256 = vld [vmem:[%s206 + $0x84] sm:$0xf]
      %v257 = vld [vmem:[%s206 + $0x88] sm:$0xf]
      %v258 = vld [vmem:[%s206 + $0x8c] sm:$0xf]
      %v259 = vld [vmem:[%s206 + $0x90] sm:$0xf]
      %v260 = vld [vmem:[%s206 + $0x94] sm:$0xf]
      %v261 = vld [vmem:[%s206 + $0x98] sm:$0xf]
      %v262 = vld [vmem:[%s206 + $0x9c] sm:$0xf]
      %v263 = vld [vmem:[%s206 + $0xa0] sm:$0xf]
      %v264 = vld [vmem:[%s210] sm:$0xf]
      %v265 = vld [vmem:[%s210 + $0x4] sm:$0xf]
      %v266 = vld [vmem:[%s210 + $0x8] sm:$0xf]
      %v267 = vld [vmem:[%s210 + $0xc] sm:$0xf]
      %v268 = vld [vmem:[%s210 + $0x10] sm:$0xf]
      %v269 = vld [vmem:[%s210 + $0x14] sm:$0xf]
      %v270 = vld [vmem:[%s210 + $0x18] sm:$0xf]
      %v271 = vld [vmem:[%s210 + $0x1c] sm:$0xf]
      %s272 = scalar_lea.vmem %s210, 32
      %v273 = vld [vmem:[%s272] sm:$0xf]
      %v274 = vld [vmem:[%s272 + $0x4] sm:$0xf]
      %v275 = vld [vmem:[%s272 + $0x8] sm:$0xf]
      %v276 = vld [vmem:[%s272 + $0xc] sm:$0xf]
      %v277 = vld [vmem:[%s272 + $0x10] sm:$0xf]
      %v278 = vld [vmem:[%s272 + $0x14] sm:$0xf]
      %v279 = vld [vmem:[%s272 + $0x18] sm:$0xf]
      %v280 = vld [vmem:[%s272 + $0x1c] sm:$0xf]
      %v318 = vunpack.c.l.b16 %v223
      %v319 = vunpack.c.l.b16 %v224
      %v320 = vunpack.c.l.b16 %v225
      %v321 = vunpack.c.l.b16 %v226
      %v322 = vunpack.c.l.b16 %v227
      %v323 = vunpack.c.l.b16 %v228
      %v324 = vunpack.c.l.b16 %v229
      %v325 = vunpack.c.l.b16 %v230
      %v326 = vunpack.c.l.b16 %v231
      %v327 = vunpack.c.l.b16 %v232
      %v328 = vunpack.c.l.b16 %v233
      %v329 = vunpack.c.l.b16 %v234
      %v330 = vunpack.c.l.b16 %v235
      %v331 = vunpack.c.l.b16 %v236
      %v332 = vunpack.c.l.b16 %v237
      %v333 = vunpack.c.l.b16 %v238
      %v334 = vunpack.c.l.b16 %v239
      %v335 = vunpack.c.l.b16 %v240
      %v336 = vunpack.c.l.b16 %v241
      %v337 = vunpack.c.l.b16 %v242
      %v338 = vunpack.c.l.b16 %v243
      %v339 = vunpack.c.l.b16 %v244
      %v340 = vunpack.c.l.b16 %v245
      %v341 = vunpack.c.l.b16 %v246
      %v342 = vunpack.c.l.b16 %v247
      %v343 = vunpack.c.l.b16 %v248
      %v344 = vunpack.c.l.b16 %v249
      %v345 = vunpack.c.l.b16 %v250
      %v346 = vunpack.c.l.b16 %v251
      %v347 = vunpack.c.l.b16 %v252
      %v348 = vunpack.c.l.b16 %v253
      %v349 = vunpack.c.l.b16 %v254
      %v350 = vunpack.c.l.b16 %v255
      %v351 = vunpack.c.l.b16 %v256
      %v352 = vunpack.c.l.b16 %v257
      %v353 = vunpack.c.l.b16 %v258
      %v354 = vunpack.c.l.b16 %v259
      %v355 = vpack.c.b16 %v319, %v318
      %v356 = vpack.c.b16 %v321, %v320
      %v357 = vpack.c.b16 %v323, %v322
      %v358 = vpack.c.b16 %v325, %v324
      %v359 = vpack.c.b16 %v327, %v326
      %v360 = vpack.c.b16 %v329, %v328
      %v361 = vpack.c.b16 %v331, %v330
      %v362 = vpack.c.b16 %v333, %v332
      %v363 = vpack.c.b16 %v335, %v334
      %v364 = vpack.c.b16 %v337, %v336
      %v365 = vpack.c.b16 %v339, %v338
      %v366 = vpack.c.b16 %v341, %v340
      %v367 = vpack.c.b16 %v343, %v342
      %v368 = vpack.c.b16 %v345, %v344
      %v369 = vpack.c.b16 %v347, %v346
      %v370 = vpack.c.b16 %v349, %v348
      %v371 = vpack.c.b16 %v351, %v350
      %v372 = vpack.c.b16 %v353, %v352
      %v373 = vpack.c.b16 %v354, %v354
      %vm374 = vsmask.f32 7424
      %v376 = vshrl.u32 %v355, 16
      %v378 = vshll.u32 %v355, 16
      %v380 = vrot.slane %v378, 1
      %v381 = vor.u32 %v376, %v380
      %v383 = vshll.u32 %v356, 16
      %v385 = vrot.slane %v383, 1
      %v386 = vsel %vm374, %v381, %v385
      %v387 = vshrl.u32 %v356, 16
      %v389 = vor.u32 %v387, %v385
      %v391 = vshll.u32 %v357, 16
      %v393 = vrot.slane %v391, 1
      %v394 = vsel %vm374, %v389, %v393
      %v395 = vshrl.u32 %v357, 16
      %v397 = vor.u32 %v395, %v393
      %v399 = vshll.u32 %v358, 16
      %v401 = vrot.slane %v399, 1
      %v402 = vsel %vm374, %v397, %v401
      %v403 = vshrl.u32 %v358, 16
      %v405 = vor.u32 %v403, %v401
      %v407 = vshll.u32 %v359, 16
      %v409 = vrot.slane %v407, 1
      %v410 = vsel %vm374, %v405, %v409
      %v411 = vshrl.u32 %v359, 16
      %v413 = vor.u32 %v411, %v409
      %v415 = vshll.u32 %v360, 16
      %v417 = vrot.slane %v415, 1
      %v418 = vsel %vm374, %v413, %v417
      %v419 = vshrl.u32 %v360, 16
      %v421 = vor.u32 %v419, %v417
      %v423 = vshll.u32 %v361, 16
      %v425 = vrot.slane %v423, 1
      %v426 = vsel %vm374, %v421, %v425
      %v427 = vshrl.u32 %v361, 16
      %v429 = vor.u32 %v427, %v425
      %v431 = vshll.u32 %v362, 16
      %v433 = vrot.slane %v431, 1
      %v434 = vsel %vm374, %v429, %v433
      %v435 = vshrl.u32 %v362, 16
      %v437 = vor.u32 %v435, %v433
      %v439 = vshll.u32 %v363, 16
      %v441 = vrot.slane %v439, 1
      %v442 = vsel %vm374, %v437, %v441
      %v443 = vshrl.u32 %v363, 16
      %v445 = vor.u32 %v443, %v441
      %v447 = vshll.u32 %v364, 16
      %v449 = vrot.slane %v447, 1
      %v450 = vsel %vm374, %v445, %v449
      %v451 = vshrl.u32 %v364, 16
      %v453 = vor.u32 %v451, %v449
      %v455 = vshll.u32 %v365, 16
      %v457 = vrot.slane %v455, 1
      %v458 = vsel %vm374, %v453, %v457
      %v459 = vshrl.u32 %v365, 16
      %v461 = vor.u32 %v459, %v457
      %v463 = vshll.u32 %v366, 16
      %v465 = vrot.slane %v463, 1
      %v466 = vsel %vm374, %v461, %v465
      %v467 = vshrl.u32 %v366, 16
      %v469 = vor.u32 %v467, %v465
      %v471 = vshll.u32 %v367, 16
      %v473 = vrot.slane %v471, 1
      %v474 = vsel %vm374, %v469, %v473
      %v475 = vshrl.u32 %v367, 16
      %v477 = vor.u32 %v475, %v473
      %v479 = vshll.u32 %v368, 16
      %v481 = vrot.slane %v479, 1
      %v482 = vsel %vm374, %v477, %v481
      %v483 = vshrl.u32 %v368, 16
      %v485 = vor.u32 %v483, %v481
      %v487 = vshll.u32 %v369, 16
      %v489 = vrot.slane %v487, 1
      %v490 = vsel %vm374, %v485, %v489
      %v491 = vshrl.u32 %v369, 16
      %v493 = vor.u32 %v491, %v489
      %v495 = vshll.u32 %v370, 16
      %v497 = vrot.slane %v495, 1
      %v498 = vsel %vm374, %v493, %v497
      %v499 = vshrl.u32 %v370, 16
      %v501 = vor.u32 %v499, %v497
      %v503 = vshll.u32 %v371, 16
      %v505 = vrot.slane %v503, 1
      %v506 = vsel %vm374, %v501, %v505
      %v507 = vshrl.u32 %v371, 16
      %v509 = vor.u32 %v507, %v505
      %v511 = vshll.u32 %v372, 16
      %v513 = vrot.slane %v511, 1
      %v514 = vsel %vm374, %v509, %v513
      %v515 = vshrl.u32 %v372, 16
      %v517 = vor.u32 %v515, %v513
      %v519 = vshll.u32 %v373, 16
      %v521 = vrot.slane %v519, 1
      %v522 = vsel %vm374, %v517, %v521
      %v531 = vunpack.c.l.b16 %v273
      %v532 = vunpack.c.l.b16 %v274
      %v533 = vunpack.c.l.b16 %v275
      %v534 = vunpack.c.l.b16 %v276
      %v535 = vunpack.c.l.b16 %v277
      %v536 = vunpack.c.l.b16 %v278
      %v537 = vunpack.c.l.b16 %v279
      %v538 = vunpack.c.l.b16 %v280
      %v539 = vpack.c.b16 %v532, %v531
      %v540 = vpack.c.b16 %v534, %v533
      %v541 = vpack.c.b16 %v536, %v535
      %v542 = vpack.c.b16 %v538, %v537
      %vm547 = vcmask 523264
      %v549 = vsel %vm547, %v386, 0
      %v552 = vsel %vm547, %v394, 0
      %v555 = vsel %vm547, %v402, 0
      %v558 = vsel %vm547, %v410, 0
      %v561 = vsel %vm547, %v418, 0
      %v564 = vsel %vm547, %v426, 0
      %v567 = vsel %vm547, %v434, 0
      %v570 = vsel %vm547, %v442, 0
      %v573 = vsel %vm547, %v450, 0
      %v576 = vsel %vm547, %v458, 0
      %v579 = vsel %vm547, %v466, 0
      %v582 = vsel %vm547, %v474, 0
      %v585 = vsel %vm547, %v482, 0
      %v588 = vsel %vm547, %v490, 0
      %v591 = vsel %vm547, %v498, 0
      %v594 = vsel %vm547, %v506, 0
      %v597 = vsel %vm547, %v514, 0
      %v600 = vsel %vm547, %v522, 0
      %602 = vmatpush.bf16.msra.mxu0 0
      %603 = vmatpush.bf16.msra.mxu0 0
      %604 = vmatpush.bf16.msra.mxu0 0
      %605 = vmatpush.bf16.msra.mxu0 0
      %606 = vmatpush.bf16.msra.mxu0 %v542
      %607 = vmatpush.bf16.msra.mxu0 %v541
      %608 = vmatpush.bf16.msra.mxu0 %v540
      %609 = vmatpush.bf16.msra.mxu0 %v539
      %610 = vmatmul.bf16.gmra.mxu0 %v549
      %v611 = vpop.f32.mrf.mxu0
      %v612 = vadd.f32 0.0, %v611
      %v613 = vpop.f32.mrf.mxu0
      %v614 = vadd.f32 0.0, %v613
      %615 = vmatmul.bf16.gmra.mxu0 %v552
      %v616 = vpop.f32.mrf.mxu0
      %v617 = vadd.f32 0.0, %v616
      %v618 = vpop.f32.mrf.mxu0
      %v619 = vadd.f32 0.0, %v618
      %620 = vmatmul.bf16.gmra.mxu0 %v555
      %v621 = vpop.f32.mrf.mxu0
      %v622 = vadd.f32 0.0, %v621
      %v623 = vpop.f32.mrf.mxu0
      %v624 = vadd.f32 0.0, %v623
      %625 = vmatmul.bf16.gmra.mxu0 %v558
      %v626 = vpop.f32.mrf.mxu0
      %v627 = vadd.f32 0.0, %v626
      %v628 = vpop.f32.mrf.mxu0
      %v629 = vadd.f32 0.0, %v628
      %630 = vmatmul.bf16.gmra.mxu0 %v561
      %v631 = vpop.f32.mrf.mxu0
      %v632 = vadd.f32 0.0, %v631
      %v633 = vpop.f32.mrf.mxu0
      %v634 = vadd.f32 0.0, %v633
      %635 = vmatmul.bf16.gmra.mxu0 %v564
      %v636 = vpop.f32.mrf.mxu0
      %v637 = vadd.f32 0.0, %v636
      %v638 = vpop.f32.mrf.mxu0
      %v639 = vadd.f32 0.0, %v638
      %640 = vmatmul.bf16.gmra.mxu0 %v567
      %v641 = vpop.f32.mrf.mxu0
      %v642 = vadd.f32 0.0, %v641
      %v643 = vpop.f32.mrf.mxu0
      %v644 = vadd.f32 0.0, %v643
      %645 = vmatmul.bf16.gmra.mxu0 %v570
      %v646 = vpop.f32.mrf.mxu0
      %v647 = vadd.f32 0.0, %v646
      %v648 = vpop.f32.mrf.mxu0
      %v649 = vadd.f32 0.0, %v648
      %650 = vmatmul.bf16.gmra.mxu0 %v573
      %v651 = vpop.f32.mrf.mxu0
      %v652 = vadd.f32 0.0, %v651
      %v653 = vpop.f32.mrf.mxu0
      %v654 = vadd.f32 0.0, %v653
      %655 = vmatmul.bf16.gmra.mxu0 %v576
      %v656 = vpop.f32.mrf.mxu0
      %v657 = vadd.f32 0.0, %v656
      %v658 = vpop.f32.mrf.mxu0
      %v659 = vadd.f32 0.0, %v658
      %660 = vmatmul.bf16.gmra.mxu0 %v579
      %v661 = vpop.f32.mrf.mxu0
      %v662 = vadd.f32 0.0, %v661
      %v663 = vpop.f32.mrf.mxu0
      %v664 = vadd.f32 0.0, %v663
      %665 = vmatmul.bf16.gmra.mxu0 %v582
      %v666 = vpop.f32.mrf.mxu0
      %v667 = vadd.f32 0.0, %v666
      %v668 = vpop.f32.mrf.mxu0
      %v669 = vadd.f32 0.0, %v668
      %670 = vmatmul.bf16.gmra.mxu0 %v585
      %v671 = vpop.f32.mrf.mxu0
      %v672 = vadd.f32 0.0, %v671
      %v673 = vpop.f32.mrf.mxu0
      %v674 = vadd.f32 0.0, %v673
      %675 = vmatmul.bf16.gmra.mxu0 %v588
      %v676 = vpop.f32.mrf.mxu0
      %v677 = vadd.f32 0.0, %v676
      %v678 = vpop.f32.mrf.mxu0
      %v679 = vadd.f32 0.0, %v678
      %680 = vmatmul.bf16.gmra.mxu0 %v591
      %v681 = vpop.f32.mrf.mxu0
      %v682 = vadd.f32 0.0, %v681
      %v683 = vpop.f32.mrf.mxu0
      %v684 = vadd.f32 0.0, %v683
      %685 = vmatmul.bf16.gmra.mxu0 %v594
      %v686 = vpop.f32.mrf.mxu0
      %v687 = vadd.f32 0.0, %v686
      %v688 = vpop.f32.mrf.mxu0
      %v689 = vadd.f32 0.0, %v688
      %690 = vmatmul.bf16.gmra.mxu0 %v597
      %v691 = vpop.f32.mrf.mxu0
      %v692 = vadd.f32 0.0, %v691
      %v693 = vpop.f32.mrf.mxu0
      %v694 = vadd.f32 0.0, %v693
      %695 = vmatmul.bf16.gmra.mxu0 %v600
      %v696 = vpop.f32.mrf.mxu0
      %v697 = vadd.f32 0.0, %v696
      %v698 = vpop.f32.mrf.mxu0
      %v699 = vadd.f32 0.0, %v698
      %700 = vdwg.mxu0
      %v709 = vunpack.c.l.b16 %v264
      %v710 = vunpack.c.l.b16 %v265
      %v711 = vunpack.c.l.b16 %v266
      %v712 = vunpack.c.l.b16 %v267
      %v713 = vunpack.c.l.b16 %v268
      %v714 = vunpack.c.l.b16 %v269
      %v715 = vunpack.c.l.b16 %v270
      %v716 = vunpack.c.l.b16 %v271
      %v717 = vpack.c.b16 %v710, %v709
      %v718 = vpack.c.b16 %v712, %v711
      %v719 = vpack.c.b16 %v714, %v713
      %v720 = vpack.c.b16 %v716, %v715
      %v725 = vsel %vm547, %v355, 0
      %v727 = vsel %vm547, %v356, 0
      %v729 = vsel %vm547, %v357, 0
      %v731 = vsel %vm547, %v358, 0
      %v733 = vsel %vm547, %v359, 0
      %v735 = vsel %vm547, %v360, 0
      %v737 = vsel %vm547, %v361, 0
      %v739 = vsel %vm547, %v362, 0
      %v741 = vsel %vm547, %v363, 0
      %v743 = vsel %vm547, %v364, 0
      %v745 = vsel %vm547, %v365, 0
      %v747 = vsel %vm547, %v366, 0
      %v749 = vsel %vm547, %v367, 0
      %v751 = vsel %vm547, %v368, 0
      %v753 = vsel %vm547, %v369, 0
      %v755 = vsel %vm547, %v370, 0
      %v757 = vsel %vm547, %v371, 0
      %v759 = vsel %vm547, %v372, 0
      %761 = vmatpush.bf16.msra.mxu0 0
      %762 = vmatpush.bf16.msra.mxu0 0
      %763 = vmatpush.bf16.msra.mxu0 0
      %764 = vmatpush.bf16.msra.mxu0 0
      %765 = vmatpush.bf16.msra.mxu0 %v720
      %766 = vmatpush.bf16.msra.mxu0 %v719
      %767 = vmatpush.bf16.msra.mxu0 %v718
      %768 = vmatpush.bf16.msra.mxu0 %v717
      %769 = vmatmul.bf16.gmra.mxu0 %v725
      %v770 = vpop.f32.mrf.mxu0
      %v771 = vadd.f32 %v612, %v770
      %v772 = vpop.f32.mrf.mxu0
      %v773 = vadd.f32 %v614, %v772
      %774 = vmatmul.bf16.gmra.mxu0 %v727
      %v775 = vpop.f32.mrf.mxu0
      %v776 = vadd.f32 %v617, %v775
      %v777 = vpop.f32.mrf.mxu0
      %v778 = vadd.f32 %v619, %v777
      %779 = vmatmul.bf16.gmra.mxu0 %v729
      %v780 = vpop.f32.mrf.mxu0
      %v781 = vadd.f32 %v622, %v780
      %v782 = vpop.f32.mrf.mxu0
      %v783 = vadd.f32 %v624, %v782
      %784 = vmatmul.bf16.gmra.mxu0 %v731
      %v785 = vpop.f32.mrf.mxu0
      %v786 = vadd.f32 %v627, %v785
      %v787 = vpop.f32.mrf.mxu0
      %v788 = vadd.f32 %v629, %v787
      %789 = vmatmul.bf16.gmra.mxu0 %v733
      %v790 = vpop.f32.mrf.mxu0
      %v791 = vadd.f32 %v632, %v790
      %v792 = vpop.f32.mrf.mxu0
      %v793 = vadd.f32 %v634, %v792
      %794 = vmatmul.bf16.gmra.mxu0 %v735
      %v795 = vpop.f32.mrf.mxu0
      %v796 = vadd.f32 %v637, %v795
      %v797 = vpop.f32.mrf.mxu0
      %v798 = vadd.f32 %v639, %v797
      %799 = vmatmul.bf16.gmra.mxu0 %v737
      %v800 = vpop.f32.mrf.mxu0
      %v801 = vadd.f32 %v642, %v800
      %v802 = vpop.f32.mrf.mxu0
      %v803 = vadd.f32 %v644, %v802
      %804 = vmatmul.bf16.gmra.mxu0 %v739
      %v805 = vpop.f32.mrf.mxu0
      %v806 = vadd.f32 %v647, %v805
      %v807 = vpop.f32.mrf.mxu0
      %v808 = vadd.f32 %v649, %v807
      %809 = vmatmul.bf16.gmra.mxu0 %v741
      %v810 = vpop.f32.mrf.mxu0
      %v811 = vadd.f32 %v652, %v810
      %v812 = vpop.f32.mrf.mxu0
      %v813 = vadd.f32 %v654, %v812
      %814 = vmatmul.bf16.gmra.mxu0 %v743
      %v815 = vpop.f32.mrf.mxu0
      %v816 = vadd.f32 %v657, %v815
      %v817 = vpop.f32.mrf.mxu0
      %v818 = vadd.f32 %v659, %v817
      %819 = vmatmul.bf16.gmra.mxu0 %v745
      %v820 = vpop.f32.mrf.mxu0
      %v821 = vadd.f32 %v662, %v820
      %v822 = vpop.f32.mrf.mxu0
      %v823 = vadd.f32 %v664, %v822
      %824 = vmatmul.bf16.gmra.mxu0 %v747
      %v825 = vpop.f32.mrf.mxu0
      %v826 = vadd.f32 %v667, %v825
      %v827 = vpop.f32.mrf.mxu0
      %v828 = vadd.f32 %v669, %v827
      %829 = vmatmul.bf16.gmra.mxu0 %v749
      %v830 = vpop.f32.mrf.mxu0
      %v831 = vadd.f32 %v672, %v830
      %v832 = vpop.f32.mrf.mxu0
      %v833 = vadd.f32 %v674, %v832
      %834 = vmatmul.bf16.gmra.mxu0 %v751
      %v835 = vpop.f32.mrf.mxu0
      %v836 = vadd.f32 %v677, %v835
      %v837 = vpop.f32.mrf.mxu0
      %v838 = vadd.f32 %v679, %v837
      %839 = vmatmul.bf16.gmra.mxu0 %v753
      %v840 = vpop.f32.mrf.mxu0
      %v841 = vadd.f32 %v682, %v840
      %v842 = vpop.f32.mrf.mxu0
      %v843 = vadd.f32 %v684, %v842
      %844 = vmatmul.bf16.gmra.mxu0 %v755
      %v845 = vpop.f32.mrf.mxu0
      %v846 = vadd.f32 %v687, %v845
      %v847 = vpop.f32.mrf.mxu0
      %v848 = vadd.f32 %v689, %v847
      %849 = vmatmul.bf16.gmra.mxu0 %v757
      %v850 = vpop.f32.mrf.mxu0
      %v851 = vadd.f32 %v692, %v850
      %v852 = vpop.f32.mrf.mxu0
      %v853 = vadd.f32 %v694, %v852
      %854 = vmatmul.bf16.gmra.mxu0 %v759
      %v855 = vpop.f32.mrf.mxu0
      %v856 = vadd.f32 %v697, %v855
      %v857 = vpop.f32.mrf.mxu0
      %v858 = vadd.f32 %v699, %v857
      %859 = vdwg.mxu0
      %s860 = scalar_lea.vmem %s210, 64
      %v861 = vld [vmem:[%s860] sm:$0xf]
      %v862 = vld [vmem:[%s860 + $0x4] sm:$0xf]
      %v863 = vld [vmem:[%s860 + $0x8] sm:$0xf]
      %v864 = vld [vmem:[%s860 + $0xc] sm:$0xf]
      %v865 = vld [vmem:[%s860 + $0x10] sm:$0xf]
      %v866 = vld [vmem:[%s860 + $0x14] sm:$0xf]
      %v867 = vld [vmem:[%s860 + $0x18] sm:$0xf]
      %v868 = vld [vmem:[%s860 + $0x1c] sm:$0xf]
      %vm869 = vcmask 1046528
      %v870 = vrot.slane %v355, 1
      %v871 = vrot.slane %v356, 1
      %v872 = vsel %vm869, %v870, %v871
      %v873 = vrot.slane %v357, 1
      %v874 = vsel %vm869, %v871, %v873
      %v875 = vrot.slane %v358, 1
      %v876 = vsel %vm869, %v873, %v875
      %v877 = vrot.slane %v359, 1
      %v878 = vsel %vm869, %v875, %v877
      %v879 = vrot.slane %v360, 1
      %v880 = vsel %vm869, %v877, %v879
      %v881 = vrot.slane %v361, 1
      %v882 = vsel %vm869, %v879, %v881
      %v883 = vrot.slane %v362, 1
      %v884 = vsel %vm869, %v881, %v883
      %v885 = vrot.slane %v363, 1
      %v886 = vsel %vm869, %v883, %v885
      %v887 = vrot.slane %v364, 1
      %v888 = vsel %vm869, %v885, %v887
      %v889 = vrot.slane %v365, 1
      %v890 = vsel %vm869, %v887, %v889
      %v891 = vrot.slane %v366, 1
      %v892 = vsel %vm869, %v889, %v891
      %v893 = vrot.slane %v367, 1
      %v894 = vsel %vm869, %v891, %v893
      %v895 = vrot.slane %v368, 1
      %v896 = vsel %vm869, %v893, %v895
      %v897 = vrot.slane %v369, 1
      %v898 = vsel %vm869, %v895, %v897
      %v899 = vrot.slane %v370, 1
      %v900 = vsel %vm869, %v897, %v899
      %v901 = vrot.slane %v371, 1
      %v902 = vsel %vm869, %v899, %v901
      %v903 = vrot.slane %v372, 1
      %v904 = vsel %vm869, %v901, %v903
      %v905 = vrot.slane %v373, 1
      %v906 = vsel %vm869, %v903, %v905
      %v915 = vunpack.c.l.b16 %v861
      %v916 = vunpack.c.l.b16 %v862
      %v917 = vunpack.c.l.b16 %v863
      %v918 = vunpack.c.l.b16 %v864
      %v919 = vunpack.c.l.b16 %v865
      %v920 = vunpack.c.l.b16 %v866
      %v921 = vunpack.c.l.b16 %v867
      %v922 = vunpack.c.l.b16 %v868
      %v923 = vpack.c.b16 %v916, %v915
      %v924 = vpack.c.b16 %v918, %v917
      %v925 = vpack.c.b16 %v920, %v919
      %v926 = vpack.c.b16 %v922, %v921
      %v932 = vsel %vm547, %v872, 0
      %v935 = vsel %vm547, %v874, 0
      %v938 = vsel %vm547, %v876, 0
      %v941 = vsel %vm547, %v878, 0
      %v944 = vsel %vm547, %v880, 0
      %v947 = vsel %vm547, %v882, 0
      %v950 = vsel %vm547, %v884, 0
      %v953 = vsel %vm547, %v886, 0
      %v956 = vsel %vm547, %v888, 0
      %v959 = vsel %vm547, %v890, 0
      %v962 = vsel %vm547, %v892, 0
      %v965 = vsel %vm547, %v894, 0
      %v968 = vsel %vm547, %v896, 0
      %v971 = vsel %vm547, %v898, 0
      %v974 = vsel %vm547, %v900, 0
      %v977 = vsel %vm547, %v902, 0
      %v980 = vsel %vm547, %v904, 0
      %v983 = vsel %vm547, %v906, 0
      %985 = vmatpush.bf16.msra.mxu0 0
      %986 = vmatpush.bf16.msra.mxu0 0
      %987 = vmatpush.bf16.msra.mxu0 0
      %988 = vmatpush.bf16.msra.mxu0 0
      %989 = vmatpush.bf16.msra.mxu0 %v926
      %990 = vmatpush.bf16.msra.mxu0 %v925
      %991 = vmatpush.bf16.msra.mxu0 %v924
      %992 = vmatpush.bf16.msra.mxu0 %v923
      %993 = vmatmul.bf16.gmra.mxu0 %v932
      %v994 = vpop.f32.mrf.mxu0
      %v995 = vadd.f32 0.0, %v994
      %v996 = vpop.f32.mrf.mxu0
      %v997 = vadd.f32 0.0, %v996
      %998 = vmatmul.bf16.gmra.mxu0 %v935
      %v999 = vpop.f32.mrf.mxu0
      %v1000 = vadd.f32 0.0, %v999
      %v1001 = vpop.f32.mrf.mxu0
      %v1002 = vadd.f32 0.0, %v1001
      %1003 = vmatmul.bf16.gmra.mxu0 %v938
      %v1004 = vpop.f32.mrf.mxu0
      %v1005 = vadd.f32 0.0, %v1004
      %v1006 = vpop.f32.mrf.mxu0
      %v1007 = vadd.f32 0.0, %v1006
      %1008 = vmatmul.bf16.gmra.mxu0 %v941
      %v1009 = vpop.f32.mrf.mxu0
      %v1010 = vadd.f32 0.0, %v1009
      %v1011 = vpop.f32.mrf.mxu0
      %v1012 = vadd.f32 0.0, %v1011
      %1013 = vmatmul.bf16.gmra.mxu0 %v944
      %v1014 = vpop.f32.mrf.mxu0
      %v1015 = vadd.f32 0.0, %v1014
      %v1016 = vpop.f32.mrf.mxu0
      %v1017 = vadd.f32 0.0, %v1016
      %1018 = vmatmul.bf16.gmra.mxu0 %v947
      %v1019 = vpop.f32.mrf.mxu0
      %v1020 = vadd.f32 0.0, %v1019
      %v1021 = vpop.f32.mrf.mxu0
      %v1022 = vadd.f32 0.0, %v1021
      %1023 = vmatmul.bf16.gmra.mxu0 %v950
      %v1024 = vpop.f32.mrf.mxu0
      %v1025 = vadd.f32 0.0, %v1024
      %v1026 = vpop.f32.mrf.mxu0
      %v1027 = vadd.f32 0.0, %v1026
      %1028 = vmatmul.bf16.gmra.mxu0 %v953
      %v1029 = vpop.f32.mrf.mxu0
      %v1030 = vadd.f32 0.0, %v1029
      %v1031 = vpop.f32.mrf.mxu0
      %v1032 = vadd.f32 0.0, %v1031
      %1033 = vmatmul.bf16.gmra.mxu0 %v956
      %v1034 = vpop.f32.mrf.mxu0
      %v1035 = vadd.f32 0.0, %v1034
      %v1036 = vpop.f32.mrf.mxu0
      %v1037 = vadd.f32 0.0, %v1036
      %1038 = vmatmul.bf16.gmra.mxu0 %v959
      %v1039 = vpop.f32.mrf.mxu0
      %v1040 = vadd.f32 0.0, %v1039
      %v1041 = vpop.f32.mrf.mxu0
      %v1042 = vadd.f32 0.0, %v1041
      %1043 = vmatmul.bf16.gmra.mxu0 %v962
      %v1044 = vpop.f32.mrf.mxu0
      %v1045 = vadd.f32 0.0, %v1044
      %v1046 = vpop.f32.mrf.mxu0
      %v1047 = vadd.f32 0.0, %v1046
      %1048 = vmatmul.bf16.gmra.mxu0 %v965
      %v1049 = vpop.f32.mrf.mxu0
      %v1050 = vadd.f32 0.0, %v1049
      %v1051 = vpop.f32.mrf.mxu0
      %v1052 = vadd.f32 0.0, %v1051
      %1053 = vmatmul.bf16.gmra.mxu0 %v968
      %v1054 = vpop.f32.mrf.mxu0
      %v1055 = vadd.f32 0.0, %v1054
      %v1056 = vpop.f32.mrf.mxu0
      %v1057 = vadd.f32 0.0, %v1056
      %1058 = vmatmul.bf16.gmra.mxu0 %v971
      %v1059 = vpop.f32.mrf.mxu0
      %v1060 = vadd.f32 0.0, %v1059
      %v1061 = vpop.f32.mrf.mxu0
      %v1062 = vadd.f32 0.0, %v1061
      %1063 = vmatmul.bf16.gmra.mxu0 %v974
      %v1064 = vpop.f32.mrf.mxu0
      %v1065 = vadd.f32 0.0, %v1064
      %v1066 = vpop.f32.mrf.mxu0
      %v1067 = vadd.f32 0.0, %v1066
      %1068 = vmatmul.bf16.gmra.mxu0 %v977
      %v1069 = vpop.f32.mrf.mxu0
      %v1070 = vadd.f32 0.0, %v1069
      %v1071 = vpop.f32.mrf.mxu0
      %v1072 = vadd.f32 0.0, %v1071
      %1073 = vmatmul.bf16.gmra.mxu0 %v980
      %v1074 = vpop.f32.mrf.mxu0
      %v1075 = vadd.f32 0.0, %v1074
      %v1076 = vpop.f32.mrf.mxu0
      %v1077 = vadd.f32 0.0, %v1076
      %1078 = vmatmul.bf16.gmra.mxu0 %v983
      %v1079 = vpop.f32.mrf.mxu0
      %v1080 = vadd.f32 0.0, %v1079
      %v1081 = vpop.f32.mrf.mxu0
      %v1082 = vadd.f32 0.0, %v1081
      %1083 = vdwg.mxu0
      %v1084 = vadd.f32 %v771, %v995
      %v1085 = vadd.f32 %v773, %v997
      %v1086 = vadd.f32 %v776, %v1000
      %v1087 = vadd.f32 %v778, %v1002
      %v1088 = vadd.f32 %v781, %v1005
      %v1089 = vadd.f32 %v783, %v1007
      %v1090 = vadd.f32 %v786, %v1010
      %v1091 = vadd.f32 %v788, %v1012
      %v1092 = vadd.f32 %v791, %v1015
      %v1093 = vadd.f32 %v793, %v1017
      %v1094 = vadd.f32 %v796, %v1020
      %v1095 = vadd.f32 %v798, %v1022
      %v1096 = vadd.f32 %v801, %v1025
      %v1097 = vadd.f32 %v803, %v1027
      %v1098 = vadd.f32 %v806, %v1030
      %v1099 = vadd.f32 %v808, %v1032
      %v1100 = vadd.f32 %v811, %v1035
      %v1101 = vadd.f32 %v813, %v1037
      %v1102 = vadd.f32 %v816, %v1040
      %v1103 = vadd.f32 %v818, %v1042
      %v1104 = vadd.f32 %v821, %v1045
      %v1105 = vadd.f32 %v823, %v1047
      %v1106 = vadd.f32 %v826, %v1050
      %v1107 = vadd.f32 %v828, %v1052
      %v1108 = vadd.f32 %v831, %v1055
      %v1109 = vadd.f32 %v833, %v1057
      %v1110 = vadd.f32 %v836, %v1060
      %v1111 = vadd.f32 %v838, %v1062
      %v1112 = vadd.f32 %v841, %v1065
      %v1113 = vadd.f32 %v843, %v1067
      %v1114 = vadd.f32 %v846, %v1070
      %v1115 = vadd.f32 %v848, %v1072
      %v1116 = vadd.f32 %v851, %v1075
      %v1117 = vadd.f32 %v853, %v1077
      %v1118 = vadd.f32 %v856, %v1080
      %v1119 = vadd.f32 %v858, %v1082
      %s1120 = scalar_lea.vmem %s210, 96
      %v1121 = vld [vmem:[%s1120] sm:$0xf]
      %v1122 = vld [vmem:[%s1120 + $0x4] sm:$0xf]
      %v1123 = vld [vmem:[%s1120 + $0x8] sm:$0xf]
      %v1124 = vld [vmem:[%s1120 + $0xc] sm:$0xf]
      %v1125 = vld [vmem:[%s1120 + $0x10] sm:$0xf]
      %v1126 = vld [vmem:[%s1120 + $0x14] sm:$0xf]
      %v1127 = vld [vmem:[%s1120 + $0x18] sm:$0xf]
      %v1128 = vld [vmem:[%s1120 + $0x1c] sm:$0xf]
      %v1131 = vunpack.c.l.b16 %v260
      %v1132 = vunpack.c.l.b16 %v261
      %v1133 = vpack.c.b16 %v1131, %v354
      %v1134 = vpack.c.b16 %v1132, %v1132
      %v1135 = vrot.slane %v1133, 1
      %v1136 = vsel %vm869, %v903, %v1135
      %v1137 = vrot.slane %v1134, 1
      %v1138 = vsel %vm869, %v1135, %v1137
      %v1147 = vunpack.c.l.b16 %v1121
      %v1148 = vunpack.c.l.b16 %v1122
      %v1149 = vunpack.c.l.b16 %v1123
      %v1150 = vunpack.c.l.b16 %v1124
      %v1151 = vunpack.c.l.b16 %v1125
      %v1152 = vunpack.c.l.b16 %v1126
      %v1153 = vunpack.c.l.b16 %v1127
      %v1154 = vunpack.c.l.b16 %v1128
      %v1155 = vpack.c.b16 %v1148, %v1147
      %v1156 = vpack.c.b16 %v1150, %v1149
      %v1157 = vpack.c.b16 %v1152, %v1151
      %v1158 = vpack.c.b16 %v1154, %v1153
      %v1164 = vsel %vm547, %v1136, 0
      %v1167 = vsel %vm547, %v1138, 0
      %1169 = vmatpush.bf16.msra.mxu0 0
      %1170 = vmatpush.bf16.msra.mxu0 0
      %1171 = vmatpush.bf16.msra.mxu0 0
      %1172 = vmatpush.bf16.msra.mxu0 0
      %1173 = vmatpush.bf16.msra.mxu0 %v1158
      %1174 = vmatpush.bf16.msra.mxu0 %v1157
      %1175 = vmatpush.bf16.msra.mxu0 %v1156
      %1176 = vmatpush.bf16.msra.mxu0 %v1155
      %1177 = vmatmul.bf16.gmra.mxu0 %v935
      %v1178 = vpop.f32.mrf.mxu0
      %v1179 = vadd.f32 0.0, %v1178
      %v1180 = vpop.f32.mrf.mxu0
      %v1181 = vadd.f32 0.0, %v1180
      %1182 = vmatmul.bf16.gmra.mxu0 %v938
      %v1183 = vpop.f32.mrf.mxu0
      %v1184 = vadd.f32 0.0, %v1183
      %v1185 = vpop.f32.mrf.mxu0
      %v1186 = vadd.f32 0.0, %v1185
      %1187 = vmatmul.bf16.gmra.mxu0 %v941
      %v1188 = vpop.f32.mrf.mxu0
      %v1189 = vadd.f32 0.0, %v1188
      %v1190 = vpop.f32.mrf.mxu0
      %v1191 = vadd.f32 0.0, %v1190
      %1192 = vmatmul.bf16.gmra.mxu0 %v944
      %v1193 = vpop.f32.mrf.mxu0
      %v1194 = vadd.f32 0.0, %v1193
      %v1195 = vpop.f32.mrf.mxu0
      %v1196 = vadd.f32 0.0, %v1195
      %1197 = vmatmul.bf16.gmra.mxu0 %v947
      %v1198 = vpop.f32.mrf.mxu0
      %v1199 = vadd.f32 0.0, %v1198
      %v1200 = vpop.f32.mrf.mxu0
      %v1201 = vadd.f32 0.0, %v1200
      %1202 = vmatmul.bf16.gmra.mxu0 %v950
      %v1203 = vpop.f32.mrf.mxu0
      %v1204 = vadd.f32 0.0, %v1203
      %v1205 = vpop.f32.mrf.mxu0
      %v1206 = vadd.f32 0.0, %v1205
      %1207 = vmatmul.bf16.gmra.mxu0 %v953
      %v1208 = vpop.f32.mrf.mxu0
      %v1209 = vadd.f32 0.0, %v1208
      %v1210 = vpop.f32.mrf.mxu0
      %v1211 = vadd.f32 0.0, %v1210
      %1212 = vmatmul.bf16.gmra.mxu0 %v956
      %v1213 = vpop.f32.mrf.mxu0
      %v1214 = vadd.f32 0.0, %v1213
      %v1215 = vpop.f32.mrf.mxu0
      %v1216 = vadd.f32 0.0, %v1215
      %1217 = vmatmul.bf16.gmra.mxu0 %v959
      %v1218 = vpop.f32.mrf.mxu0
      %v1219 = vadd.f32 0.0, %v1218
      %v1220 = vpop.f32.mrf.mxu0
      %v1221 = vadd.f32 0.0, %v1220
      %1222 = vmatmul.bf16.gmra.mxu0 %v962
      %v1223 = vpop.f32.mrf.mxu0
      %v1224 = vadd.f32 0.0, %v1223
      %v1225 = vpop.f32.mrf.mxu0
      %v1226 = vadd.f32 0.0, %v1225
      %1227 = vmatmul.bf16.gmra.mxu0 %v965
      %v1228 = vpop.f32.mrf.mxu0
      %v1229 = vadd.f32 0.0, %v1228
      %v1230 = vpop.f32.mrf.mxu0
      %v1231 = vadd.f32 0.0, %v1230
      %1232 = vmatmul.bf16.gmra.mxu0 %v968
      %v1233 = vpop.f32.mrf.mxu0
      %v1234 = vadd.f32 0.0, %v1233
      %v1235 = vpop.f32.mrf.mxu0
      %v1236 = vadd.f32 0.0, %v1235
      %1237 = vmatmul.bf16.gmra.mxu0 %v971
      %v1238 = vpop.f32.mrf.mxu0
      %v1239 = vadd.f32 0.0, %v1238
      %v1240 = vpop.f32.mrf.mxu0
      %v1241 = vadd.f32 0.0, %v1240
      %1242 = vmatmul.bf16.gmra.mxu0 %v974
      %v1243 = vpop.f32.mrf.mxu0
      %v1244 = vadd.f32 0.0, %v1243
      %v1245 = vpop.f32.mrf.mxu0
      %v1246 = vadd.f32 0.0, %v1245
      %1247 = vmatmul.bf16.gmra.mxu0 %v977
      %v1248 = vpop.f32.mrf.mxu0
      %v1249 = vadd.f32 0.0, %v1248
      %v1250 = vpop.f32.mrf.mxu0
      %v1251 = vadd.f32 0.0, %v1250
      %1252 = vmatmul.bf16.gmra.mxu0 %v980
      %v1253 = vpop.f32.mrf.mxu0
      %v1254 = vadd.f32 0.0, %v1253
      %v1255 = vpop.f32.mrf.mxu0
      %v1256 = vadd.f32 0.0, %v1255
      %1257 = vmatmul.bf16.gmra.mxu0 %v1164
      %v1258 = vpop.f32.mrf.mxu0
      %v1259 = vadd.f32 0.0, %v1258
      %v1260 = vpop.f32.mrf.mxu0
      %v1261 = vadd.f32 0.0, %v1260
      %1262 = vmatmul.bf16.gmra.mxu0 %v1167
      %v1263 = vpop.f32.mrf.mxu0
      %v1264 = vadd.f32 0.0, %v1263
      %v1265 = vpop.f32.mrf.mxu0
      %v1266 = vadd.f32 0.0, %v1265
      %1267 = vdwg.mxu0
      %v1268 = vadd.f32 %v1084, %v1179
      %v1269 = vadd.f32 %v1085, %v1181
      %v1270 = vadd.f32 %v1086, %v1184
      %v1271 = vadd.f32 %v1087, %v1186
      %v1272 = vadd.f32 %v1088, %v1189
      %v1273 = vadd.f32 %v1089, %v1191
      %v1274 = vadd.f32 %v1090, %v1194
      %v1275 = vadd.f32 %v1091, %v1196
      %v1276 = vadd.f32 %v1092, %v1199
      %v1277 = vadd.f32 %v1093, %v1201
      %v1278 = vadd.f32 %v1094, %v1204
      %v1279 = vadd.f32 %v1095, %v1206
      %v1280 = vadd.f32 %v1096, %v1209
      %v1281 = vadd.f32 %v1097, %v1211
      %v1282 = vadd.f32 %v1098, %v1214
      %v1283 = vadd.f32 %v1099, %v1216
      %v1284 = vadd.f32 %v1100, %v1219
      %v1285 = vadd.f32 %v1101, %v1221
      %v1286 = vadd.f32 %v1102, %v1224
      %v1287 = vadd.f32 %v1103, %v1226
      %v1288 = vadd.f32 %v1104, %v1229
      %v1289 = vadd.f32 %v1105, %v1231
      %v1290 = vadd.f32 %v1106, %v1234
      %v1291 = vadd.f32 %v1107, %v1236
      %v1292 = vadd.f32 %v1108, %v1239
      %v1293 = vadd.f32 %v1109, %v1241
      %v1294 = vadd.f32 %v1110, %v1244
      %v1295 = vadd.f32 %v1111, %v1246
      %v1296 = vadd.f32 %v1112, %v1249
      %v1297 = vadd.f32 %v1113, %v1251
      %v1298 = vadd.f32 %v1114, %v1254
      %v1299 = vadd.f32 %v1115, %v1256
      %v1300 = vadd.f32 %v1116, %v1259
      %v1301 = vadd.f32 %v1117, %v1261
      %v1302 = vadd.f32 %v1118, %v1264
      %v1303 = vadd.f32 %v1119, %v1266
      %s1304 = scalar_lea.vmem %s210, 128
      %v1305 = vld [vmem:[%s1304] sm:$0xf]
      %v1306 = vld [vmem:[%s1304 + $0x4] sm:$0xf]
      %v1307 = vld [vmem:[%s1304 + $0x8] sm:$0xf]
      %v1308 = vld [vmem:[%s1304 + $0xc] sm:$0xf]
      %v1309 = vld [vmem:[%s1304 + $0x10] sm:$0xf]
      %v1310 = vld [vmem:[%s1304 + $0x14] sm:$0xf]
      %v1311 = vld [vmem:[%s1304 + $0x18] sm:$0xf]
      %v1312 = vld [vmem:[%s1304 + $0x1c] sm:$0xf]
      %vm1313 = vsmask.f32 6400
      %v1314 = vrot.slane %v387, 1
      %v1315 = vrot.slane %v383, 2
      %v1316 = vor.u32 %v1314, %v1315
      %v1317 = vrot.slane %v395, 1
      %v1318 = vrot.slane %v391, 2
      %v1319 = vor.u32 %v1317, %v1318
      %v1320 = vsel %vm1313, %v1316, %v1319
      %v1321 = vrot.slane %v403, 1
      %v1322 = vrot.slane %v399, 2
      %v1323 = vor.u32 %v1321, %v1322
      %v1324 = vsel %vm1313, %v1319, %v1323
      %v1325 = vrot.slane %v411, 1
      %v1326 = vrot.slane %v407, 2
      %v1327 = vor.u32 %v1325, %v1326
      %v1328 = vsel %vm1313, %v1323, %v1327
      %v1329 = vrot.slane %v419, 1
      %v1330 = vrot.slane %v415, 2
      %v1331 = vor.u32 %v1329, %v1330
      %v1332 = vsel %vm1313, %v1327, %v1331
      %v1333 = vrot.slane %v427, 1
      %v1334 = vrot.slane %v423, 2
      %v1335 = vor.u32 %v1333, %v1334
      %v1336 = vsel %vm1313, %v1331, %v1335
      %v1337 = vrot.slane %v435, 1
      %v1338 = vrot.slane %v431, 2
      %v1339 = vor.u32 %v1337, %v1338
      %v1340 = vsel %vm1313, %v1335, %v1339
      %v1341 = vrot.slane %v443, 1
      %v1342 = vrot.slane %v439, 2
      %v1343 = vor.u32 %v1341, %v1342
      %v1344 = vsel %vm1313, %v1339, %v1343
      %v1345 = vrot.slane %v451, 1
      %v1346 = vrot.slane %v447, 2
      %v1347 = vor.u32 %v1345, %v1346
      %v1348 = vsel %vm1313, %v1343, %v1347
      %v1349 = vrot.slane %v459, 1
      %v1350 = vrot.slane %v455, 2
      %v1351 = vor.u32 %v1349, %v1350
      %v1352 = vsel %vm1313, %v1347, %v1351
      %v1353 = vrot.slane %v467, 1
      %v1354 = vrot.slane %v463, 2
      %v1355 = vor.u32 %v1353, %v1354
      %v1356 = vsel %vm1313, %v1351, %v1355
      %v1357 = vrot.slane %v475, 1
      %v1358 = vrot.slane %v471, 2
      %v1359 = vor.u32 %v1357, %v1358
      %v1360 = vsel %vm1313, %v1355, %v1359
      %v1361 = vrot.slane %v483, 1
      %v1362 = vrot.slane %v479, 2
      %v1363 = vor.u32 %v1361, %v1362
      %v1364 = vsel %vm1313, %v1359, %v1363
      %v1365 = vrot.slane %v491, 1
      %v1366 = vrot.slane %v487, 2
      %v1367 = vor.u32 %v1365, %v1366
      %v1368 = vsel %vm1313, %v1363, %v1367
      %v1369 = vrot.slane %v499, 1
      %v1370 = vrot.slane %v495, 2
      %v1371 = vor.u32 %v1369, %v1370
      %v1372 = vsel %vm1313, %v1367, %v1371
      %v1373 = vrot.slane %v507, 1
      %v1374 = vrot.slane %v503, 2
      %v1375 = vor.u32 %v1373, %v1374
      %v1376 = vsel %vm1313, %v1371, %v1375
      %v1377 = vrot.slane %v515, 1
      %v1378 = vrot.slane %v511, 2
      %v1379 = vor.u32 %v1377, %v1378
      %v1380 = vsel %vm1313, %v1375, %v1379
      %v1382 = vshrl.u32 %v1133, 16
      %v1384 = vrot.slane %v1382, 1
      %v1385 = vshll.u32 %v1133, 16
      %v1387 = vrot.slane %v1385, 2
      %v1388 = vor.u32 %v1384, %v1387
      %v1389 = vsel %vm1313, %v1379, %v1388
      %v1391 = vshrl.u32 %v1134, 16
      %v1393 = vrot.slane %v1391, 1
      %v1394 = vshll.u32 %v1134, 16
      %v1396 = vrot.slane %v1394, 2
      %v1397 = vor.u32 %v1393, %v1396
      %v1398 = vsel %vm1313, %v1388, %v1397
      %v1407 = vunpack.c.l.b16 %v1305
      %v1408 = vunpack.c.l.b16 %v1306
      %v1409 = vunpack.c.l.b16 %v1307
      %v1410 = vunpack.c.l.b16 %v1308
      %v1411 = vunpack.c.l.b16 %v1309
      %v1412 = vunpack.c.l.b16 %v1310
      %v1413 = vunpack.c.l.b16 %v1311
      %v1414 = vunpack.c.l.b16 %v1312
      %v1415 = vpack.c.b16 %v1408, %v1407
      %v1416 = vpack.c.b16 %v1410, %v1409
      %v1417 = vpack.c.b16 %v1412, %v1411
      %v1418 = vpack.c.b16 %v1414, %v1413
      %v1424 = vsel %vm547, %v1320, 0
      %v1427 = vsel %vm547, %v1324, 0
      %v1430 = vsel %vm547, %v1328, 0
      %v1433 = vsel %vm547, %v1332, 0
      %v1436 = vsel %vm547, %v1336, 0
      %v1439 = vsel %vm547, %v1340, 0
      %v1442 = vsel %vm547, %v1344, 0
      %v1445 = vsel %vm547, %v1348, 0
      %v1448 = vsel %vm547, %v1352, 0
      %v1451 = vsel %vm547, %v1356, 0
      %v1454 = vsel %vm547, %v1360, 0
      %v1457 = vsel %vm547, %v1364, 0
      %v1460 = vsel %vm547, %v1368, 0
      %v1463 = vsel %vm547, %v1372, 0
      %v1466 = vsel %vm547, %v1376, 0
      %v1469 = vsel %vm547, %v1380, 0
      %v1472 = vsel %vm547, %v1389, 0
      %v1475 = vsel %vm547, %v1398, 0
      %1477 = vmatpush.bf16.msra.mxu0 0
      %1478 = vmatpush.bf16.msra.mxu0 0
      %1479 = vmatpush.bf16.msra.mxu0 0
      %1480 = vmatpush.bf16.msra.mxu0 0
      %1481 = vmatpush.bf16.msra.mxu0 %v1418
      %1482 = vmatpush.bf16.msra.mxu0 %v1417
      %1483 = vmatpush.bf16.msra.mxu0 %v1416
      %1484 = vmatpush.bf16.msra.mxu0 %v1415
      %1485 = vmatmul.bf16.gmra.mxu0 %v1424
      %v1486 = vpop.f32.mrf.mxu0
      %v1487 = vadd.f32 0.0, %v1486
      %v1488 = vpop.f32.mrf.mxu0
      %v1489 = vadd.f32 0.0, %v1488
      %1490 = vmatmul.bf16.gmra.mxu0 %v1427
      %v1491 = vpop.f32.mrf.mxu0
      %v1492 = vadd.f32 0.0, %v1491
      %v1493 = vpop.f32.mrf.mxu0
      %v1494 = vadd.f32 0.0, %v1493
      %1495 = vmatmul.bf16.gmra.mxu0 %v1430
      %v1496 = vpop.f32.mrf.mxu0
      %v1497 = vadd.f32 0.0, %v1496
      %v1498 = vpop.f32.mrf.mxu0
      %v1499 = vadd.f32 0.0, %v1498
      %1500 = vmatmul.bf16.gmra.mxu0 %v1433
      %v1501 = vpop.f32.mrf.mxu0
      %v1502 = vadd.f32 0.0, %v1501
      %v1503 = vpop.f32.mrf.mxu0
      %v1504 = vadd.f32 0.0, %v1503
      %1505 = vmatmul.bf16.gmra.mxu0 %v1436
      %v1506 = vpop.f32.mrf.mxu0
      %v1507 = vadd.f32 0.0, %v1506
      %v1508 = vpop.f32.mrf.mxu0
      %v1509 = vadd.f32 0.0, %v1508
      %1510 = vmatmul.bf16.gmra.mxu0 %v1439
      %v1511 = vpop.f32.mrf.mxu0
      %v1512 = vadd.f32 0.0, %v1511
      %v1513 = vpop.f32.mrf.mxu0
      %v1514 = vadd.f32 0.0, %v1513
      %1515 = vmatmul.bf16.gmra.mxu0 %v1442
      %v1516 = vpop.f32.mrf.mxu0
      %v1517 = vadd.f32 0.0, %v1516
      %v1518 = vpop.f32.mrf.mxu0
      %v1519 = vadd.f32 0.0, %v1518
      %1520 = vmatmul.bf16.gmra.mxu0 %v1445
      %v1521 = vpop.f32.mrf.mxu0
      %v1522 = vadd.f32 0.0, %v1521
      %v1523 = vpop.f32.mrf.mxu0
      %v1524 = vadd.f32 0.0, %v1523
      %1525 = vmatmul.bf16.gmra.mxu0 %v1448
      %v1526 = vpop.f32.mrf.mxu0
      %v1527 = vadd.f32 0.0, %v1526
      %v1528 = vpop.f32.mrf.mxu0
      %v1529 = vadd.f32 0.0, %v1528
      %1530 = vmatmul.bf16.gmra.mxu0 %v1451
      %v1531 = vpop.f32.mrf.mxu0
      %v1532 = vadd.f32 0.0, %v1531
      %v1533 = vpop.f32.mrf.mxu0
      %v1534 = vadd.f32 0.0, %v1533
      %1535 = vmatmul.bf16.gmra.mxu0 %v1454
      %v1536 = vpop.f32.mrf.mxu0
      %v1537 = vadd.f32 0.0, %v1536
      %v1538 = vpop.f32.mrf.mxu0
      %v1539 = vadd.f32 0.0, %v1538
      %1540 = vmatmul.bf16.gmra.mxu0 %v1457
      %v1541 = vpop.f32.mrf.mxu0
      %v1542 = vadd.f32 0.0, %v1541
      %v1543 = vpop.f32.mrf.mxu0
      %v1544 = vadd.f32 0.0, %v1543
      %1545 = vmatmul.bf16.gmra.mxu0 %v1460
      %v1546 = vpop.f32.mrf.mxu0
      %v1547 = vadd.f32 0.0, %v1546
      %v1548 = vpop.f32.mrf.mxu0
      %v1549 = vadd.f32 0.0, %v1548
      %1550 = vmatmul.bf16.gmra.mxu0 %v1463
      %v1551 = vpop.f32.mrf.mxu0
      %v1552 = vadd.f32 0.0, %v1551
      %v1553 = vpop.f32.mrf.mxu0
      %v1554 = vadd.f32 0.0, %v1553
      %1555 = vmatmul.bf16.gmra.mxu0 %v1466
      %v1556 = vpop.f32.mrf.mxu0
      %v1557 = vadd.f32 0.0, %v1556
      %v1558 = vpop.f32.mrf.mxu0
      %v1559 = vadd.f32 0.0, %v1558
      %1560 = vmatmul.bf16.gmra.mxu0 %v1469
      %v1561 = vpop.f32.mrf.mxu0
      %v1562 = vadd.f32 0.0, %v1561
      %v1563 = vpop.f32.mrf.mxu0
      %v1564 = vadd.f32 0.0, %v1563
      %1565 = vmatmul.bf16.gmra.mxu0 %v1472
      %v1566 = vpop.f32.mrf.mxu0
      %v1567 = vadd.f32 0.0, %v1566
      %v1568 = vpop.f32.mrf.mxu0
      %v1569 = vadd.f32 0.0, %v1568
      %1570 = vmatmul.bf16.gmra.mxu0 %v1475
      %v1571 = vpop.f32.mrf.mxu0
      %v1572 = vadd.f32 0.0, %v1571
      %v1573 = vpop.f32.mrf.mxu0
      %v1574 = vadd.f32 0.0, %v1573
      %1575 = vdwg.mxu0
      %v1576 = vadd.f32 %v1268, %v1487
      %v1577 = vadd.f32 %v1269, %v1489
      %v1578 = vadd.f32 %v1270, %v1492
      %v1579 = vadd.f32 %v1271, %v1494
      %v1580 = vadd.f32 %v1272, %v1497
      %v1581 = vadd.f32 %v1273, %v1499
      %v1582 = vadd.f32 %v1274, %v1502
      %v1583 = vadd.f32 %v1275, %v1504
      %v1584 = vadd.f32 %v1276, %v1507
      %v1585 = vadd.f32 %v1277, %v1509
      %v1586 = vadd.f32 %v1278, %v1512
      %v1587 = vadd.f32 %v1279, %v1514
      %v1588 = vadd.f32 %v1280, %v1517
      %v1589 = vadd.f32 %v1281, %v1519
      %v1590 = vadd.f32 %v1282, %v1522
      %v1591 = vadd.f32 %v1283, %v1524
      %v1592 = vadd.f32 %v1284, %v1527
      %v1593 = vadd.f32 %v1285, %v1529
      %v1594 = vadd.f32 %v1286, %v1532
      %v1595 = vadd.f32 %v1287, %v1534
      %v1596 = vadd.f32 %v1288, %v1537
      %v1597 = vadd.f32 %v1289, %v1539
      %v1598 = vadd.f32 %v1290, %v1542
      %v1599 = vadd.f32 %v1291, %v1544
      %v1600 = vadd.f32 %v1292, %v1547
      %v1601 = vadd.f32 %v1293, %v1549
      %v1602 = vadd.f32 %v1294, %v1552
      %v1603 = vadd.f32 %v1295, %v1554
      %v1604 = vadd.f32 %v1296, %v1557
      %v1605 = vadd.f32 %v1297, %v1559
      %v1606 = vadd.f32 %v1298, %v1562
      %v1607 = vadd.f32 %v1299, %v1564
      %v1608 = vadd.f32 %v1300, %v1567
      %v1609 = vadd.f32 %v1301, %v1569
      %v1610 = vadd.f32 %v1302, %v1572
      %v1611 = vadd.f32 %v1303, %v1574
      %s1612 = scalar_lea.vmem %s210, 160
      %v1613 = vld [vmem:[%s1612] sm:$0xf]
      %v1614 = vld [vmem:[%s1612 + $0x4] sm:$0xf]
      %v1615 = vld [vmem:[%s1612 + $0x8] sm:$0xf]
      %v1616 = vld [vmem:[%s1612 + $0xc] sm:$0xf]
      %v1617 = vld [vmem:[%s1612 + $0x10] sm:$0xf]
      %v1618 = vld [vmem:[%s1612 + $0x14] sm:$0xf]
      %v1619 = vld [vmem:[%s1612 + $0x18] sm:$0xf]
      %v1620 = vld [vmem:[%s1612 + $0x1c] sm:$0xf]
      %vm1621 = vcmask 1045504
      %v1622 = vrot.slane %v356, 2
      %v1623 = vrot.slane %v357, 2
      %v1624 = vsel %vm1621, %v1622, %v1623
      %v1625 = vrot.slane %v358, 2
      %v1626 = vsel %vm1621, %v1623, %v1625
      %v1627 = vrot.slane %v359, 2
      %v1628 = vsel %vm1621, %v1625, %v1627
      %v1629 = vrot.slane %v360, 2
      %v1630 = vsel %vm1621, %v1627, %v1629
      %v1631 = vrot.slane %v361, 2
      %v1632 = vsel %vm1621, %v1629, %v1631
      %v1633 = vrot.slane %v362, 2
      %v1634 = vsel %vm1621, %v1631, %v1633
      %v1635 = vrot.slane %v363, 2
      %v1636 = vsel %vm1621, %v1633, %v1635
      %v1637 = vrot.slane %v364, 2
      %v1638 = vsel %vm1621, %v1635, %v1637
      %v1639 = vrot.slane %v365, 2
      %v1640 = vsel %vm1621, %v1637, %v1639
      %v1641 = vrot.slane %v366, 2
      %v1642 = vsel %vm1621, %v1639, %v1641
      %v1643 = vrot.slane %v367, 2
      %v1644 = vsel %vm1621, %v1641, %v1643
      %v1645 = vrot.slane %v368, 2
      %v1646 = vsel %vm1621, %v1643, %v1645
      %v1647 = vrot.slane %v369, 2
      %v1648 = vsel %vm1621, %v1645, %v1647
      %v1649 = vrot.slane %v370, 2
      %v1650 = vsel %vm1621, %v1647, %v1649
      %v1651 = vrot.slane %v371, 2
      %v1652 = vsel %vm1621, %v1649, %v1651
      %v1653 = vrot.slane %v372, 2
      %v1654 = vsel %vm1621, %v1651, %v1653
      %v1655 = vrot.slane %v1133, 2
      %v1656 = vsel %vm1621, %v1653, %v1655
      %v1657 = vrot.slane %v1134, 2
      %v1658 = vsel %vm1621, %v1655, %v1657
      %v1667 = vunpack.c.l.b16 %v1613
      %v1668 = vunpack.c.l.b16 %v1614
      %v1669 = vunpack.c.l.b16 %v1615
      %v1670 = vunpack.c.l.b16 %v1616
      %v1671 = vunpack.c.l.b16 %v1617
      %v1672 = vunpack.c.l.b16 %v1618
      %v1673 = vunpack.c.l.b16 %v1619
      %v1674 = vunpack.c.l.b16 %v1620
      %v1675 = vpack.c.b16 %v1668, %v1667
      %v1676 = vpack.c.b16 %v1670, %v1669
      %v1677 = vpack.c.b16 %v1672, %v1671
      %v1678 = vpack.c.b16 %v1674, %v1673
      %v1684 = vsel %vm547, %v1624, 0
      %v1687 = vsel %vm547, %v1626, 0
      %v1690 = vsel %vm547, %v1628, 0
      %v1693 = vsel %vm547, %v1630, 0
      %v1696 = vsel %vm547, %v1632, 0
      %v1699 = vsel %vm547, %v1634, 0
      %v1702 = vsel %vm547, %v1636, 0
      %v1705 = vsel %vm547, %v1638, 0
      %v1708 = vsel %vm547, %v1640, 0
      %v1711 = vsel %vm547, %v1642, 0
      %v1714 = vsel %vm547, %v1644, 0
      %v1717 = vsel %vm547, %v1646, 0
      %v1720 = vsel %vm547, %v1648, 0
      %v1723 = vsel %vm547, %v1650, 0
      %v1726 = vsel %vm547, %v1652, 0
      %v1729 = vsel %vm547, %v1654, 0
      %v1732 = vsel %vm547, %v1656, 0
      %v1735 = vsel %vm547, %v1658, 0
      %1737 = vmatpush.bf16.msra.mxu0 0
      %1738 = vmatpush.bf16.msra.mxu0 0
      %1739 = vmatpush.bf16.msra.mxu0 0
      %1740 = vmatpush.bf16.msra.mxu0 0
      %1741 = vmatpush.bf16.msra.mxu0 %v1678
      %1742 = vmatpush.bf16.msra.mxu0 %v1677
      %1743 = vmatpush.bf16.msra.mxu0 %v1676
      %1744 = vmatpush.bf16.msra.mxu0 %v1675
      %1745 = vmatmul.bf16.gmra.mxu0 %v1684
      %v1746 = vpop.f32.mrf.mxu0
      %v1747 = vadd.f32 0.0, %v1746
      %v1748 = vpop.f32.mrf.mxu0
      %v1749 = vadd.f32 0.0, %v1748
      %1750 = vmatmul.bf16.gmra.mxu0 %v1687
      %v1751 = vpop.f32.mrf.mxu0
      %v1752 = vadd.f32 0.0, %v1751
      %v1753 = vpop.f32.mrf.mxu0
      %v1754 = vadd.f32 0.0, %v1753
      %1755 = vmatmul.bf16.gmra.mxu0 %v1690
      %v1756 = vpop.f32.mrf.mxu0
      %v1757 = vadd.f32 0.0, %v1756
      %v1758 = vpop.f32.mrf.mxu0
      %v1759 = vadd.f32 0.0, %v1758
      %1760 = vmatmul.bf16.gmra.mxu0 %v1693
      %v1761 = vpop.f32.mrf.mxu0
      %v1762 = vadd.f32 0.0, %v1761
      %v1763 = vpop.f32.mrf.mxu0
      %v1764 = vadd.f32 0.0, %v1763
      %1765 = vmatmul.bf16.gmra.mxu0 %v1696
      %v1766 = vpop.f32.mrf.mxu0
      %v1767 = vadd.f32 0.0, %v1766
      %v1768 = vpop.f32.mrf.mxu0
      %v1769 = vadd.f32 0.0, %v1768
      %1770 = vmatmul.bf16.gmra.mxu0 %v1699
      %v1771 = vpop.f32.mrf.mxu0
      %v1772 = vadd.f32 0.0, %v1771
      %v1773 = vpop.f32.mrf.mxu0
      %v1774 = vadd.f32 0.0, %v1773
      %1775 = vmatmul.bf16.gmra.mxu0 %v1702
      %v1776 = vpop.f32.mrf.mxu0
      %v1777 = vadd.f32 0.0, %v1776
      %v1778 = vpop.f32.mrf.mxu0
      %v1779 = vadd.f32 0.0, %v1778
      %1780 = vmatmul.bf16.gmra.mxu0 %v1705
      %v1781 = vpop.f32.mrf.mxu0
      %v1782 = vadd.f32 0.0, %v1781
      %v1783 = vpop.f32.mrf.mxu0
      %v1784 = vadd.f32 0.0, %v1783
      %1785 = vmatmul.bf16.gmra.mxu0 %v1708
      %v1786 = vpop.f32.mrf.mxu0
      %v1787 = vadd.f32 0.0, %v1786
      %v1788 = vpop.f32.mrf.mxu0
      %v1789 = vadd.f32 0.0, %v1788
      %1790 = vmatmul.bf16.gmra.mxu0 %v1711
      %v1791 = vpop.f32.mrf.mxu0
      %v1792 = vadd.f32 0.0, %v1791
      %v1793 = vpop.f32.mrf.mxu0
      %v1794 = vadd.f32 0.0, %v1793
      %1795 = vmatmul.bf16.gmra.mxu0 %v1714
      %v1796 = vpop.f32.mrf.mxu0
      %v1797 = vadd.f32 0.0, %v1796
      %v1798 = vpop.f32.mrf.mxu0
      %v1799 = vadd.f32 0.0, %v1798
      %1800 = vmatmul.bf16.gmra.mxu0 %v1717
      %v1801 = vpop.f32.mrf.mxu0
      %v1802 = vadd.f32 0.0, %v1801
      %v1803 = vpop.f32.mrf.mxu0
      %v1804 = vadd.f32 0.0, %v1803
      %1805 = vmatmul.bf16.gmra.mxu0 %v1720
      %v1806 = vpop.f32.mrf.mxu0
      %v1807 = vadd.f32 0.0, %v1806
      %v1808 = vpop.f32.mrf.mxu0
      %v1809 = vadd.f32 0.0, %v1808
      %1810 = vmatmul.bf16.gmra.mxu0 %v1723
      %v1811 = vpop.f32.mrf.mxu0
      %v1812 = vadd.f32 0.0, %v1811
      %v1813 = vpop.f32.mrf.mxu0
      %v1814 = vadd.f32 0.0, %v1813
      %1815 = vmatmul.bf16.gmra.mxu0 %v1726
      %v1816 = vpop.f32.mrf.mxu0
      %v1817 = vadd.f32 0.0, %v1816
      %v1818 = vpop.f32.mrf.mxu0
      %v1819 = vadd.f32 0.0, %v1818
      %1820 = vmatmul.bf16.gmra.mxu0 %v1729
      %v1821 = vpop.f32.mrf.mxu0
      %v1822 = vadd.f32 0.0, %v1821
      %v1823 = vpop.f32.mrf.mxu0
      %v1824 = vadd.f32 0.0, %v1823
      %1825 = vmatmul.bf16.gmra.mxu0 %v1732
      %v1826 = vpop.f32.mrf.mxu0
      %v1827 = vadd.f32 0.0, %v1826
      %v1828 = vpop.f32.mrf.mxu0
      %v1829 = vadd.f32 0.0, %v1828
      %1830 = vmatmul.bf16.gmra.mxu0 %v1735
      %v1831 = vpop.f32.mrf.mxu0
      %v1832 = vadd.f32 0.0, %v1831
      %v1833 = vpop.f32.mrf.mxu0
      %v1834 = vadd.f32 0.0, %v1833
      %1835 = vdwg.mxu0
      %v1836 = vadd.f32 %v1576, %v1747
      %v1837 = vadd.f32 %v1577, %v1749
      %v1838 = vadd.f32 %v1578, %v1752
      %v1839 = vadd.f32 %v1579, %v1754
      %v1840 = vadd.f32 %v1580, %v1757
      %v1841 = vadd.f32 %v1581, %v1759
      %v1842 = vadd.f32 %v1582, %v1762
      %v1843 = vadd.f32 %v1583, %v1764
      %v1844 = vadd.f32 %v1584, %v1767
      %v1845 = vadd.f32 %v1585, %v1769
      %v1846 = vadd.f32 %v1586, %v1772
      %v1847 = vadd.f32 %v1587, %v1774
      %v1848 = vadd.f32 %v1588, %v1777
      %v1849 = vadd.f32 %v1589, %v1779
      %v1850 = vadd.f32 %v1590, %v1782
      %v1851 = vadd.f32 %v1591, %v1784
      %v1852 = vadd.f32 %v1592, %v1787
      %v1853 = vadd.f32 %v1593, %v1789
      %v1854 = vadd.f32 %v1594, %v1792
      %v1855 = vadd.f32 %v1595, %v1794
      %v1856 = vadd.f32 %v1596, %v1797
      %v1857 = vadd.f32 %v1597, %v1799
      %v1858 = vadd.f32 %v1598, %v1802
      %v1859 = vadd.f32 %v1599, %v1804
      %v1860 = vadd.f32 %v1600, %v1807
      %v1861 = vadd.f32 %v1601, %v1809
      %v1862 = vadd.f32 %v1602, %v1812
      %v1863 = vadd.f32 %v1603, %v1814
      %v1864 = vadd.f32 %v1604, %v1817
      %v1865 = vadd.f32 %v1605, %v1819
      %v1866 = vadd.f32 %v1606, %v1822
      %v1867 = vadd.f32 %v1607, %v1824
      %v1868 = vadd.f32 %v1608, %v1827
      %v1869 = vadd.f32 %v1609, %v1829
      %v1870 = vadd.f32 %v1610, %v1832
      %v1871 = vadd.f32 %v1611, %v1834
      %s1872 = scalar_lea.vmem %s210, 192
      %v1873 = vld [vmem:[%s1872] sm:$0xf]
      %v1874 = vld [vmem:[%s1872 + $0x4] sm:$0xf]
      %v1875 = vld [vmem:[%s1872 + $0x8] sm:$0xf]
      %v1876 = vld [vmem:[%s1872 + $0xc] sm:$0xf]
      %v1877 = vld [vmem:[%s1872 + $0x10] sm:$0xf]
      %v1878 = vld [vmem:[%s1872 + $0x14] sm:$0xf]
      %v1879 = vld [vmem:[%s1872 + $0x18] sm:$0xf]
      %v1880 = vld [vmem:[%s1872 + $0x1c] sm:$0xf]
      %v1883 = vunpack.c.l.b16 %v262
      %v1884 = vunpack.c.l.b16 %v263
      %v1885 = vpack.c.b16 %v1883, %v1132
      %v1886 = vpack.c.b16 %v1884, %v1884
      %v1887 = vrot.slane %v1885, 2
      %v1888 = vsel %vm1621, %v1655, %v1887
      %v1889 = vrot.slane %v1886, 2
      %v1890 = vsel %vm1621, %v1887, %v1889
      %v1899 = vunpack.c.l.b16 %v1873
      %v1900 = vunpack.c.l.b16 %v1874
      %v1901 = vunpack.c.l.b16 %v1875
      %v1902 = vunpack.c.l.b16 %v1876
      %v1903 = vunpack.c.l.b16 %v1877
      %v1904 = vunpack.c.l.b16 %v1878
      %v1905 = vunpack.c.l.b16 %v1879
      %v1906 = vunpack.c.l.b16 %v1880
      %v1907 = vpack.c.b16 %v1900, %v1899
      %v1908 = vpack.c.b16 %v1902, %v1901
      %v1909 = vpack.c.b16 %v1904, %v1903
      %v1910 = vpack.c.b16 %v1906, %v1905
      %v1916 = vsel %vm547, %v1888, 0
      %v1919 = vsel %vm547, %v1890, 0
      %1921 = vmatpush.bf16.msra.mxu0 0
      %1922 = vmatpush.bf16.msra.mxu0 0
      %1923 = vmatpush.bf16.msra.mxu0 0
      %1924 = vmatpush.bf16.msra.mxu0 0
      %1925 = vmatpush.bf16.msra.mxu0 %v1910
      %1926 = vmatpush.bf16.msra.mxu0 %v1909
      %1927 = vmatpush.bf16.msra.mxu0 %v1908
      %1928 = vmatpush.bf16.msra.mxu0 %v1907
      %1929 = vmatmul.bf16.gmra.mxu0 %v1687
      %v1930 = vpop.f32.mrf.mxu0
      %v1931 = vadd.f32 0.0, %v1930
      %v1932 = vpop.f32.mrf.mxu0
      %v1933 = vadd.f32 0.0, %v1932
      %1934 = vmatmul.bf16.gmra.mxu0 %v1690
      %v1935 = vpop.f32.mrf.mxu0
      %v1936 = vadd.f32 0.0, %v1935
      %v1937 = vpop.f32.mrf.mxu0
      %v1938 = vadd.f32 0.0, %v1937
      %1939 = vmatmul.bf16.gmra.mxu0 %v1693
      %v1940 = vpop.f32.mrf.mxu0
      %v1941 = vadd.f32 0.0, %v1940
      %v1942 = vpop.f32.mrf.mxu0
      %v1943 = vadd.f32 0.0, %v1942
      %1944 = vmatmul.bf16.gmra.mxu0 %v1696
      %v1945 = vpop.f32.mrf.mxu0
      %v1946 = vadd.f32 0.0, %v1945
      %v1947 = vpop.f32.mrf.mxu0
      %v1948 = vadd.f32 0.0, %v1947
      %1949 = vmatmul.bf16.gmra.mxu0 %v1699
      %v1950 = vpop.f32.mrf.mxu0
      %v1951 = vadd.f32 0.0, %v1950
      %v1952 = vpop.f32.mrf.mxu0
      %v1953 = vadd.f32 0.0, %v1952
      %1954 = vmatmul.bf16.gmra.mxu0 %v1702
      %v1955 = vpop.f32.mrf.mxu0
      %v1956 = vadd.f32 0.0, %v1955
      %v1957 = vpop.f32.mrf.mxu0
      %v1958 = vadd.f32 0.0, %v1957
      %1959 = vmatmul.bf16.gmra.mxu0 %v1705
      %v1960 = vpop.f32.mrf.mxu0
      %v1961 = vadd.f32 0.0, %v1960
      %v1962 = vpop.f32.mrf.mxu0
      %v1963 = vadd.f32 0.0, %v1962
      %1964 = vmatmul.bf16.gmra.mxu0 %v1708
      %v1965 = vpop.f32.mrf.mxu0
      %v1966 = vadd.f32 0.0, %v1965
      %v1967 = vpop.f32.mrf.mxu0
      %v1968 = vadd.f32 0.0, %v1967
      %1969 = vmatmul.bf16.gmra.mxu0 %v1711
      %v1970 = vpop.f32.mrf.mxu0
      %v1971 = vadd.f32 0.0, %v1970
      %v1972 = vpop.f32.mrf.mxu0
      %v1973 = vadd.f32 0.0, %v1972
      %1974 = vmatmul.bf16.gmra.mxu0 %v1714
      %v1975 = vpop.f32.mrf.mxu0
      %v1976 = vadd.f32 0.0, %v1975
      %v1977 = vpop.f32.mrf.mxu0
      %v1978 = vadd.f32 0.0, %v1977
      %1979 = vmatmul.bf16.gmra.mxu0 %v1717
      %v1980 = vpop.f32.mrf.mxu0
      %v1981 = vadd.f32 0.0, %v1980
      %v1982 = vpop.f32.mrf.mxu0
      %v1983 = vadd.f32 0.0, %v1982
      %1984 = vmatmul.bf16.gmra.mxu0 %v1720
      %v1985 = vpop.f32.mrf.mxu0
      %v1986 = vadd.f32 0.0, %v1985
      %v1987 = vpop.f32.mrf.mxu0
      %v1988 = vadd.f32 0.0, %v1987
      %1989 = vmatmul.bf16.gmra.mxu0 %v1723
      %v1990 = vpop.f32.mrf.mxu0
      %v1991 = vadd.f32 0.0, %v1990
      %v1992 = vpop.f32.mrf.mxu0
      %v1993 = vadd.f32 0.0, %v1992
      %1994 = vmatmul.bf16.gmra.mxu0 %v1726
      %v1995 = vpop.f32.mrf.mxu0
      %v1996 = vadd.f32 0.0, %v1995
      %v1997 = vpop.f32.mrf.mxu0
      %v1998 = vadd.f32 0.0, %v1997
      %1999 = vmatmul.bf16.gmra.mxu0 %v1729
      %v2000 = vpop.f32.mrf.mxu0
      %v2001 = vadd.f32 0.0, %v2000
      %v2002 = vpop.f32.mrf.mxu0
      %v2003 = vadd.f32 0.0, %v2002
      %2004 = vmatmul.bf16.gmra.mxu0 %v1732
      %v2005 = vpop.f32.mrf.mxu0
      %v2006 = vadd.f32 0.0, %v2005
      %v2007 = vpop.f32.mrf.mxu0
      %v2008 = vadd.f32 0.0, %v2007
      %2009 = vmatmul.bf16.gmra.mxu0 %v1916
      %v2010 = vpop.f32.mrf.mxu0
      %v2011 = vadd.f32 0.0, %v2010
      %v2012 = vpop.f32.mrf.mxu0
      %v2013 = vadd.f32 0.0, %v2012
      %2014 = vmatmul.bf16.gmra.mxu0 %v1919
      %v2015 = vpop.f32.mrf.mxu0
      %v2016 = vadd.f32 0.0, %v2015
      %v2017 = vpop.f32.mrf.mxu0
      %v2018 = vadd.f32 0.0, %v2017
      %2019 = vdwg.mxu0
      %v2020 = vadd.f32 %v1836, %v1931
      %v2021 = vadd.f32 %v1837, %v1933
      %v2022 = vadd.f32 %v1838, %v1936
      %v2023 = vadd.f32 %v1839, %v1938
      %v2024 = vadd.f32 %v1840, %v1941
      %v2025 = vadd.f32 %v1841, %v1943
      %v2026 = vadd.f32 %v1842, %v1946
      %v2027 = vadd.f32 %v1843, %v1948
      %v2028 = vadd.f32 %v1844, %v1951
      %v2029 = vadd.f32 %v1845, %v1953
      %v2030 = vadd.f32 %v1846, %v1956
      %v2031 = vadd.f32 %v1847, %v1958
      %v2032 = vadd.f32 %v1848, %v1961
      %v2033 = vadd.f32 %v1849, %v1963
      %v2034 = vadd.f32 %v1850, %v1966
      %v2035 = vadd.f32 %v1851, %v1968
      %v2036 = vadd.f32 %v1852, %v1971
      %v2037 = vadd.f32 %v1853, %v1973
      %v2038 = vadd.f32 %v1854, %v1976
      %v2039 = vadd.f32 %v1855, %v1978
      %v2040 = vadd.f32 %v1856, %v1981
      %v2041 = vadd.f32 %v1857, %v1983
      %v2042 = vadd.f32 %v1858, %v1986
      %v2043 = vadd.f32 %v1859, %v1988
      %v2044 = vadd.f32 %v1860, %v1991
      %v2045 = vadd.f32 %v1861, %v1993
      %v2046 = vadd.f32 %v1862, %v1996
      %v2047 = vadd.f32 %v1863, %v1998
      %v2048 = vadd.f32 %v1864, %v2001
      %v2049 = vadd.f32 %v1865, %v2003
      %v2050 = vadd.f32 %v1866, %v2006
      %v2051 = vadd.f32 %v1867, %v2008
      %v2052 = vadd.f32 %v1868, %v2011
      %v2053 = vadd.f32 %v1869, %v2013
      %v2054 = vadd.f32 %v1870, %v2016
      %v2055 = vadd.f32 %v1871, %v2018
      %s2056 = scalar_lea.vmem %s210, 224
      %v2057 = vld [vmem:[%s2056] sm:$0xf]
      %v2058 = vld [vmem:[%s2056 + $0x4] sm:$0xf]
      %v2059 = vld [vmem:[%s2056 + $0x8] sm:$0xf]
      %v2060 = vld [vmem:[%s2056 + $0xc] sm:$0xf]
      %v2061 = vld [vmem:[%s2056 + $0x10] sm:$0xf]
      %v2062 = vld [vmem:[%s2056 + $0x14] sm:$0xf]
      %v2063 = vld [vmem:[%s2056 + $0x18] sm:$0xf]
      %v2064 = vld [vmem:[%s2056 + $0x1c] sm:$0xf]
      %vm2065 = vsmask.f32 5376
      %v2066 = vrot.slane %v395, 2
      %v2067 = vrot.slane %v391, 3
      %v2068 = vor.u32 %v2066, %v2067
      %v2069 = vrot.slane %v403, 2
      %v2070 = vrot.slane %v399, 3
      %v2071 = vor.u32 %v2069, %v2070
      %v2072 = vsel %vm2065, %v2068, %v2071
      %v2073 = vrot.slane %v411, 2
      %v2074 = vrot.slane %v407, 3
      %v2075 = vor.u32 %v2073, %v2074
      %v2076 = vsel %vm2065, %v2071, %v2075
      %v2077 = vrot.slane %v419, 2
      %v2078 = vrot.slane %v415, 3
      %v2079 = vor.u32 %v2077, %v2078
      %v2080 = vsel %vm2065, %v2075, %v2079
      %v2081 = vrot.slane %v427, 2
      %v2082 = vrot.slane %v423, 3
      %v2083 = vor.u32 %v2081, %v2082
      %v2084 = vsel %vm2065, %v2079, %v2083
      %v2085 = vrot.slane %v435, 2
      %v2086 = vrot.slane %v431, 3
      %v2087 = vor.u32 %v2085, %v2086
      %v2088 = vsel %vm2065, %v2083, %v2087
      %v2089 = vrot.slane %v443, 2
      %v2090 = vrot.slane %v439, 3
      %v2091 = vor.u32 %v2089, %v2090
      %v2092 = vsel %vm2065, %v2087, %v2091
      %v2093 = vrot.slane %v451, 2
      %v2094 = vrot.slane %v447, 3
      %v2095 = vor.u32 %v2093, %v2094
      %v2096 = vsel %vm2065, %v2091, %v2095
      %v2097 = vrot.slane %v459, 2
      %v2098 = vrot.slane %v455, 3
      %v2099 = vor.u32 %v2097, %v2098
      %v2100 = vsel %vm2065, %v2095, %v2099
      %v2101 = vrot.slane %v467, 2
      %v2102 = vrot.slane %v463, 3
      %v2103 = vor.u32 %v2101, %v2102
      %v2104 = vsel %vm2065, %v2099, %v2103
      %v2105 = vrot.slane %v475, 2
      %v2106 = vrot.slane %v471, 3
      %v2107 = vor.u32 %v2105, %v2106
      %v2108 = vsel %vm2065, %v2103, %v2107
      %v2109 = vrot.slane %v483, 2
      %v2110 = vrot.slane %v479, 3
      %v2111 = vor.u32 %v2109, %v2110
      %v2112 = vsel %vm2065, %v2107, %v2111
      %v2113 = vrot.slane %v491, 2
      %v2114 = vrot.slane %v487, 3
      %v2115 = vor.u32 %v2113, %v2114
      %v2116 = vsel %vm2065, %v2111, %v2115
      %v2117 = vrot.slane %v499, 2
      %v2118 = vrot.slane %v495, 3
      %v2119 = vor.u32 %v2117, %v2118
      %v2120 = vsel %vm2065, %v2115, %v2119
      %v2121 = vrot.slane %v507, 2
      %v2122 = vrot.slane %v503, 3
      %v2123 = vor.u32 %v2121, %v2122
      %v2124 = vsel %vm2065, %v2119, %v2123
      %v2125 = vrot.slane %v515, 2
      %v2126 = vrot.slane %v511, 3
      %v2127 = vor.u32 %v2125, %v2126
      %v2128 = vsel %vm2065, %v2123, %v2127
      %v2129 = vrot.slane %v1382, 2
      %v2130 = vrot.slane %v1385, 3
      %v2131 = vor.u32 %v2129, %v2130
      %v2132 = vsel %vm2065, %v2127, %v2131
      %v2134 = vshrl.u32 %v1885, 16
      %v2136 = vrot.slane %v2134, 2
      %v2137 = vshll.u32 %v1885, 16
      %v2139 = vrot.slane %v2137, 3
      %v2140 = vor.u32 %v2136, %v2139
      %v2141 = vsel %vm2065, %v2131, %v2140
      %v2143 = vshrl.u32 %v1886, 16
      %v2145 = vrot.slane %v2143, 2
      %v2146 = vshll.u32 %v1886, 16
      %v2148 = vrot.slane %v2146, 3
      %v2149 = vor.u32 %v2145, %v2148
      %v2150 = vsel %vm2065, %v2140, %v2149
      %v2159 = vunpack.c.l.b16 %v2057
      %v2160 = vunpack.c.l.b16 %v2058
      %v2161 = vunpack.c.l.b16 %v2059
      %v2162 = vunpack.c.l.b16 %v2060
      %v2163 = vunpack.c.l.b16 %v2061
      %v2164 = vunpack.c.l.b16 %v2062
      %v2165 = vunpack.c.l.b16 %v2063
      %v2166 = vunpack.c.l.b16 %v2064
      %v2167 = vpack.c.b16 %v2160, %v2159
      %v2168 = vpack.c.b16 %v2162, %v2161
      %v2169 = vpack.c.b16 %v2164, %v2163
      %v2170 = vpack.c.b16 %v2166, %v2165
      %v2176 = vsel %vm547, %v2072, 0
      %v2179 = vsel %vm547, %v2076, 0
      %v2182 = vsel %vm547, %v2080, 0
      %v2185 = vsel %vm547, %v2084, 0
      %v2188 = vsel %vm547, %v2088, 0
      %v2191 = vsel %vm547, %v2092, 0
      %v2194 = vsel %vm547, %v2096, 0
      %v2197 = vsel %vm547, %v2100, 0
      %v2200 = vsel %vm547, %v2104, 0
      %v2203 = vsel %vm547, %v2108, 0
      %v2206 = vsel %vm547, %v2112, 0
      %v2209 = vsel %vm547, %v2116, 0
      %v2212 = vsel %vm547, %v2120, 0
      %v2215 = vsel %vm547, %v2124, 0
      %v2218 = vsel %vm547, %v2128, 0
      %v2221 = vsel %vm547, %v2132, 0
      %v2224 = vsel %vm547, %v2141, 0
      %v2227 = vsel %vm547, %v2150, 0
      %2229 = vmatpush.bf16.msra.mxu0 0
      %2230 = vmatpush.bf16.msra.mxu0 0
      %2231 = vmatpush.bf16.msra.mxu0 0
      %2232 = vmatpush.bf16.msra.mxu0 0
      %2233 = vmatpush.bf16.msra.mxu0 %v2170
      %2234 = vmatpush.bf16.msra.mxu0 %v2169
      %2235 = vmatpush.bf16.msra.mxu0 %v2168
      %2236 = vmatpush.bf16.msra.mxu0 %v2167
      %2237 = vmatmul.bf16.gmra.mxu0 %v2176
      %v2238 = vpop.f32.mrf.mxu0
      %v2239 = vadd.f32 0.0, %v2238
      %v2240 = vpop.f32.mrf.mxu0
      %v2241 = vadd.f32 0.0, %v2240
      %2242 = vmatmul.bf16.gmra.mxu0 %v2179
      %v2243 = vpop.f32.mrf.mxu0
      %v2244 = vadd.f32 0.0, %v2243
      %v2245 = vpop.f32.mrf.mxu0
      %v2246 = vadd.f32 0.0, %v2245
      %2247 = vmatmul.bf16.gmra.mxu0 %v2182
      %v2248 = vpop.f32.mrf.mxu0
      %v2249 = vadd.f32 0.0, %v2248
      %v2250 = vpop.f32.mrf.mxu0
      %v2251 = vadd.f32 0.0, %v2250
      %2252 = vmatmul.bf16.gmra.mxu0 %v2185
      %v2253 = vpop.f32.mrf.mxu0
      %v2254 = vadd.f32 0.0, %v2253
      %v2255 = vpop.f32.mrf.mxu0
      %v2256 = vadd.f32 0.0, %v2255
      %2257 = vmatmul.bf16.gmra.mxu0 %v2188
      %v2258 = vpop.f32.mrf.mxu0
      %v2259 = vadd.f32 0.0, %v2258
      %v2260 = vpop.f32.mrf.mxu0
      %v2261 = vadd.f32 0.0, %v2260
      %2262 = vmatmul.bf16.gmra.mxu0 %v2191
      %v2263 = vpop.f32.mrf.mxu0
      %v2264 = vadd.f32 0.0, %v2263
      %v2265 = vpop.f32.mrf.mxu0
      %v2266 = vadd.f32 0.0, %v2265
      %2267 = vmatmul.bf16.gmra.mxu0 %v2194
      %v2268 = vpop.f32.mrf.mxu0
      %v2269 = vadd.f32 0.0, %v2268
      %v2270 = vpop.f32.mrf.mxu0
      %v2271 = vadd.f32 0.0, %v2270
      %2272 = vmatmul.bf16.gmra.mxu0 %v2197
      %v2273 = vpop.f32.mrf.mxu0
      %v2274 = vadd.f32 0.0, %v2273
      %v2275 = vpop.f32.mrf.mxu0
      %v2276 = vadd.f32 0.0, %v2275
      %2277 = vmatmul.bf16.gmra.mxu0 %v2200
      %v2278 = vpop.f32.mrf.mxu0
      %v2279 = vadd.f32 0.0, %v2278
      %v2280 = vpop.f32.mrf.mxu0
      %v2281 = vadd.f32 0.0, %v2280
      %2282 = vmatmul.bf16.gmra.mxu0 %v2203
      %v2283 = vpop.f32.mrf.mxu0
      %v2284 = vadd.f32 0.0, %v2283
      %v2285 = vpop.f32.mrf.mxu0
      %v2286 = vadd.f32 0.0, %v2285
      %2287 = vmatmul.bf16.gmra.mxu0 %v2206
      %v2288 = vpop.f32.mrf.mxu0
      %v2289 = vadd.f32 0.0, %v2288
      %v2290 = vpop.f32.mrf.mxu0
      %v2291 = vadd.f32 0.0, %v2290
      %2292 = vmatmul.bf16.gmra.mxu0 %v2209
      %v2293 = vpop.f32.mrf.mxu0
      %v2294 = vadd.f32 0.0, %v2293
      %v2295 = vpop.f32.mrf.mxu0
      %v2296 = vadd.f32 0.0, %v2295
      %2297 = vmatmul.bf16.gmra.mxu0 %v2212
      %v2298 = vpop.f32.mrf.mxu0
      %v2299 = vadd.f32 0.0, %v2298
      %v2300 = vpop.f32.mrf.mxu0
      %v2301 = vadd.f32 0.0, %v2300
      %2302 = vmatmul.bf16.gmra.mxu0 %v2215
      %v2303 = vpop.f32.mrf.mxu0
      %v2304 = vadd.f32 0.0, %v2303
      %v2305 = vpop.f32.mrf.mxu0
      %v2306 = vadd.f32 0.0, %v2305
      %2307 = vmatmul.bf16.gmra.mxu0 %v2218
      %v2308 = vpop.f32.mrf.mxu0
      %v2309 = vadd.f32 0.0, %v2308
      %v2310 = vpop.f32.mrf.mxu0
      %v2311 = vadd.f32 0.0, %v2310
      %2312 = vmatmul.bf16.gmra.mxu0 %v2221
      %v2313 = vpop.f32.mrf.mxu0
      %v2314 = vadd.f32 0.0, %v2313
      %v2315 = vpop.f32.mrf.mxu0
      %v2316 = vadd.f32 0.0, %v2315
      %2317 = vmatmul.bf16.gmra.mxu0 %v2224
      %v2318 = vpop.f32.mrf.mxu0
      %v2319 = vadd.f32 0.0, %v2318
      %v2320 = vpop.f32.mrf.mxu0
      %v2321 = vadd.f32 0.0, %v2320
      %2322 = vmatmul.bf16.gmra.mxu0 %v2227
      %v2323 = vpop.f32.mrf.mxu0
      %v2324 = vadd.f32 0.0, %v2323
      %v2325 = vpop.f32.mrf.mxu0
      %v2326 = vadd.f32 0.0, %v2325
      %2327 = vdwg.mxu0
      %v2328 = vadd.f32 %v2020, %v2239
      %v2329 = vadd.f32 %v2021, %v2241
      %v2330 = vadd.f32 %v2022, %v2244
      %v2331 = vadd.f32 %v2023, %v2246
      %v2332 = vadd.f32 %v2024, %v2249
      %v2333 = vadd.f32 %v2025, %v2251
      %v2334 = vadd.f32 %v2026, %v2254
      %v2335 = vadd.f32 %v2027, %v2256
      %v2336 = vadd.f32 %v2028, %v2259
      %v2337 = vadd.f32 %v2029, %v2261
      %v2338 = vadd.f32 %v2030, %v2264
      %v2339 = vadd.f32 %v2031, %v2266
      %v2340 = vadd.f32 %v2032, %v2269
      %v2341 = vadd.f32 %v2033, %v2271
      %v2342 = vadd.f32 %v2034, %v2274
      %v2343 = vadd.f32 %v2035, %v2276
      %v2344 = vadd.f32 %v2036, %v2279
      %v2345 = vadd.f32 %v2037, %v2281
      %v2346 = vadd.f32 %v2038, %v2284
      %v2347 = vadd.f32 %v2039, %v2286
      %v2348 = vadd.f32 %v2040, %v2289
      %v2349 = vadd.f32 %v2041, %v2291
      %v2350 = vadd.f32 %v2042, %v2294
      %v2351 = vadd.f32 %v2043, %v2296
      %v2352 = vadd.f32 %v2044, %v2299
      %v2353 = vadd.f32 %v2045, %v2301
      %v2354 = vadd.f32 %v2046, %v2304
      %v2355 = vadd.f32 %v2047, %v2306
      %v2356 = vadd.f32 %v2048, %v2309
      %v2357 = vadd.f32 %v2049, %v2311
      %v2358 = vadd.f32 %v2050, %v2314
      %v2359 = vadd.f32 %v2051, %v2316
      %v2360 = vadd.f32 %v2052, %v2319
      %v2361 = vadd.f32 %v2053, %v2321
      %v2362 = vadd.f32 %v2054, %v2324
      %v2363 = vadd.f32 %v2055, %v2326
      %s2364 = scalar_lea.vmem %s210, 256
      %v2365 = vld [vmem:[%s2364] sm:$0xf]
      %v2366 = vld [vmem:[%s2364 + $0x4] sm:$0xf]
      %v2367 = vld [vmem:[%s2364 + $0x8] sm:$0xf]
      %v2368 = vld [vmem:[%s2364 + $0xc] sm:$0xf]
      %v2369 = vld [vmem:[%s2364 + $0x10] sm:$0xf]
      %v2370 = vld [vmem:[%s2364 + $0x14] sm:$0xf]
      %v2371 = vld [vmem:[%s2364 + $0x18] sm:$0xf]
      %v2372 = vld [vmem:[%s2364 + $0x1c] sm:$0xf]
      %vm2373 = vcmask 1044480
      %v2374 = vrot.slane %v357, 3
      %v2375 = vrot.slane %v358, 3
      %v2376 = vsel %vm2373, %v2374, %v2375
      %v2377 = vrot.slane %v359, 3
      %v2378 = vsel %vm2373, %v2375, %v2377
      %v2379 = vrot.slane %v360, 3
      %v2380 = vsel %vm2373, %v2377, %v2379
      %v2381 = vrot.slane %v361, 3
      %v2382 = vsel %vm2373, %v2379, %v2381
      %v2383 = vrot.slane %v362, 3
      %v2384 = vsel %vm2373, %v2381, %v2383
      %v2385 = vrot.slane %v363, 3
      %v2386 = vsel %vm2373, %v2383, %v2385
      %v2387 = vrot.slane %v364, 3
      %v2388 = vsel %vm2373, %v2385, %v2387
      %v2389 = vrot.slane %v365, 3
      %v2390 = vsel %vm2373, %v2387, %v2389
      %v2391 = vrot.slane %v366, 3
      %v2392 = vsel %vm2373, %v2389, %v2391
      %v2393 = vrot.slane %v367, 3
      %v2394 = vsel %vm2373, %v2391, %v2393
      %v2395 = vrot.slane %v368, 3
      %v2396 = vsel %vm2373, %v2393, %v2395
      %v2397 = vrot.slane %v369, 3
      %v2398 = vsel %vm2373, %v2395, %v2397
      %v2399 = vrot.slane %v370, 3
      %v2400 = vsel %vm2373, %v2397, %v2399
      %v2401 = vrot.slane %v371, 3
      %v2402 = vsel %vm2373, %v2399, %v2401
      %v2403 = vrot.slane %v372, 3
      %v2404 = vsel %vm2373, %v2401, %v2403
      %v2405 = vrot.slane %v1133, 3
      %v2406 = vsel %vm2373, %v2403, %v2405
      %v2407 = vrot.slane %v1885, 3
      %v2408 = vsel %vm2373, %v2405, %v2407
      %v2409 = vrot.slane %v1886, 3
      %v2410 = vsel %vm2373, %v2407, %v2409
      %v2419 = vunpack.c.l.b16 %v2365
      %v2420 = vunpack.c.l.b16 %v2366
      %v2421 = vunpack.c.l.b16 %v2367
      %v2422 = vunpack.c.l.b16 %v2368
      %v2423 = vunpack.c.l.b16 %v2369
      %v2424 = vunpack.c.l.b16 %v2370
      %v2425 = vunpack.c.l.b16 %v2371
      %v2426 = vunpack.c.l.b16 %v2372
      %v2427 = vpack.c.b16 %v2420, %v2419
      %v2428 = vpack.c.b16 %v2422, %v2421
      %v2429 = vpack.c.b16 %v2424, %v2423
      %v2430 = vpack.c.b16 %v2426, %v2425
      %v2436 = vsel %vm547, %v2376, 0
      %v2439 = vsel %vm547, %v2378, 0
      %v2442 = vsel %vm547, %v2380, 0
      %v2445 = vsel %vm547, %v2382, 0
      %v2448 = vsel %vm547, %v2384, 0
      %v2451 = vsel %vm547, %v2386, 0
      %v2454 = vsel %vm547, %v2388, 0
      %v2457 = vsel %vm547, %v2390, 0
      %v2460 = vsel %vm547, %v2392, 0
      %v2463 = vsel %vm547, %v2394, 0
      %v2466 = vsel %vm547, %v2396, 0
      %v2469 = vsel %vm547, %v2398, 0
      %v2472 = vsel %vm547, %v2400, 0
      %v2475 = vsel %vm547, %v2402, 0
      %v2478 = vsel %vm547, %v2404, 0
      %v2481 = vsel %vm547, %v2406, 0
      %v2484 = vsel %vm547, %v2408, 0
      %v2487 = vsel %vm547, %v2410, 0
      %2489 = vmatpush.bf16.msra.mxu0 0
      %2490 = vmatpush.bf16.msra.mxu0 0
      %2491 = vmatpush.bf16.msra.mxu0 0
      %2492 = vmatpush.bf16.msra.mxu0 0
      %2493 = vmatpush.bf16.msra.mxu0 %v2430
      %2494 = vmatpush.bf16.msra.mxu0 %v2429
      %2495 = vmatpush.bf16.msra.mxu0 %v2428
      %2496 = vmatpush.bf16.msra.mxu0 %v2427
      %2497 = vmatmul.bf16.gmra.mxu0 %v2436
      %v2498 = vpop.f32.mrf.mxu0
      %v2499 = vadd.f32 0.0, %v2498
      %v2500 = vpop.f32.mrf.mxu0
      %v2501 = vadd.f32 0.0, %v2500
      %2502 = vmatmul.bf16.gmra.mxu0 %v2439
      %v2503 = vpop.f32.mrf.mxu0
      %v2504 = vadd.f32 0.0, %v2503
      %v2505 = vpop.f32.mrf.mxu0
      %v2506 = vadd.f32 0.0, %v2505
      %2507 = vmatmul.bf16.gmra.mxu0 %v2442
      %v2508 = vpop.f32.mrf.mxu0
      %v2509 = vadd.f32 0.0, %v2508
      %v2510 = vpop.f32.mrf.mxu0
      %v2511 = vadd.f32 0.0, %v2510
      %2512 = vmatmul.bf16.gmra.mxu0 %v2445
      %v2513 = vpop.f32.mrf.mxu0
      %v2514 = vadd.f32 0.0, %v2513
      %v2515 = vpop.f32.mrf.mxu0
      %v2516 = vadd.f32 0.0, %v2515
      %2517 = vmatmul.bf16.gmra.mxu0 %v2448
      %v2518 = vpop.f32.mrf.mxu0
      %v2519 = vadd.f32 0.0, %v2518
      %v2520 = vpop.f32.mrf.mxu0
      %v2521 = vadd.f32 0.0, %v2520
      %2522 = vmatmul.bf16.gmra.mxu0 %v2451
      %v2523 = vpop.f32.mrf.mxu0
      %v2524 = vadd.f32 0.0, %v2523
      %v2525 = vpop.f32.mrf.mxu0
      %v2526 = vadd.f32 0.0, %v2525
      %2527 = vmatmul.bf16.gmra.mxu0 %v2454
      %v2528 = vpop.f32.mrf.mxu0
      %v2529 = vadd.f32 0.0, %v2528
      %v2530 = vpop.f32.mrf.mxu0
      %v2531 = vadd.f32 0.0, %v2530
      %2532 = vmatmul.bf16.gmra.mxu0 %v2457
      %v2533 = vpop.f32.mrf.mxu0
      %v2534 = vadd.f32 0.0, %v2533
      %v2535 = vpop.f32.mrf.mxu0
      %v2536 = vadd.f32 0.0, %v2535
      %2537 = vmatmul.bf16.gmra.mxu0 %v2460
      %v2538 = vpop.f32.mrf.mxu0
      %v2539 = vadd.f32 0.0, %v2538
      %v2540 = vpop.f32.mrf.mxu0
      %v2541 = vadd.f32 0.0, %v2540
      %2542 = vmatmul.bf16.gmra.mxu0 %v2463
      %v2543 = vpop.f32.mrf.mxu0
      %v2544 = vadd.f32 0.0, %v2543
      %v2545 = vpop.f32.mrf.mxu0
      %v2546 = vadd.f32 0.0, %v2545
      %2547 = vmatmul.bf16.gmra.mxu0 %v2466
      %v2548 = vpop.f32.mrf.mxu0
      %v2549 = vadd.f32 0.0, %v2548
      %v2550 = vpop.f32.mrf.mxu0
      %v2551 = vadd.f32 0.0, %v2550
      %2552 = vmatmul.bf16.gmra.mxu0 %v2469
      %v2553 = vpop.f32.mrf.mxu0
      %v2554 = vadd.f32 0.0, %v2553
      %v2555 = vpop.f32.mrf.mxu0
      %v2556 = vadd.f32 0.0, %v2555
      %2557 = vmatmul.bf16.gmra.mxu0 %v2472
      %v2558 = vpop.f32.mrf.mxu0
      %v2559 = vadd.f32 0.0, %v2558
      %v2560 = vpop.f32.mrf.mxu0
      %v2561 = vadd.f32 0.0, %v2560
      %2562 = vmatmul.bf16.gmra.mxu0 %v2475
      %v2563 = vpop.f32.mrf.mxu0
      %v2564 = vadd.f32 0.0, %v2563
      %v2565 = vpop.f32.mrf.mxu0
      %v2566 = vadd.f32 0.0, %v2565
      %2567 = vmatmul.bf16.gmra.mxu0 %v2478
      %v2568 = vpop.f32.mrf.mxu0
      %v2569 = vadd.f32 0.0, %v2568
      %v2570 = vpop.f32.mrf.mxu0
      %v2571 = vadd.f32 0.0, %v2570
      %2572 = vmatmul.bf16.gmra.mxu0 %v2481
      %v2573 = vpop.f32.mrf.mxu0
      %v2574 = vadd.f32 0.0, %v2573
      %v2575 = vpop.f32.mrf.mxu0
      %v2576 = vadd.f32 0.0, %v2575
      %2577 = vmatmul.bf16.gmra.mxu0 %v2484
      %v2578 = vpop.f32.mrf.mxu0
      %v2579 = vadd.f32 0.0, %v2578
      %v2580 = vpop.f32.mrf.mxu0
      %v2581 = vadd.f32 0.0, %v2580
      %2582 = vmatmul.bf16.gmra.mxu0 %v2487
      %v2583 = vpop.f32.mrf.mxu0
      %v2584 = vadd.f32 0.0, %v2583
      %v2585 = vpop.f32.mrf.mxu0
      %v2586 = vadd.f32 0.0, %v2585
      %2587 = vdwg.mxu0
      %v2588 = vadd.f32 %v2328, %v2499
      %v2589 = vadd.f32 %v2329, %v2501
      %v2590 = vadd.f32 %v2330, %v2504
      %v2591 = vadd.f32 %v2331, %v2506
      %v2592 = vadd.f32 %v2332, %v2509
      %v2593 = vadd.f32 %v2333, %v2511
      %v2594 = vadd.f32 %v2334, %v2514
      %v2595 = vadd.f32 %v2335, %v2516
      %v2596 = vadd.f32 %v2336, %v2519
      %v2597 = vadd.f32 %v2337, %v2521
      %v2598 = vadd.f32 %v2338, %v2524
      %v2599 = vadd.f32 %v2339, %v2526
      %v2600 = vadd.f32 %v2340, %v2529
      %v2601 = vadd.f32 %v2341, %v2531
      %v2602 = vadd.f32 %v2342, %v2534
      %v2603 = vadd.f32 %v2343, %v2536
      %v2604 = vadd.f32 %v2344, %v2539
      %v2605 = vadd.f32 %v2345, %v2541
      %v2606 = vadd.f32 %v2346, %v2544
      %v2607 = vadd.f32 %v2347, %v2546
      %v2608 = vadd.f32 %v2348, %v2549
      %v2609 = vadd.f32 %v2349, %v2551
      %v2610 = vadd.f32 %v2350, %v2554
      %v2611 = vadd.f32 %v2351, %v2556
      %v2612 = vadd.f32 %v2352, %v2559
      %v2613 = vadd.f32 %v2353, %v2561
      %v2614 = vadd.f32 %v2354, %v2564
      %v2615 = vadd.f32 %v2355, %v2566
      %v2616 = vadd.f32 %v2356, %v2569
      %v2617 = vadd.f32 %v2357, %v2571
      %v2618 = vadd.f32 %v2358, %v2574
      %v2619 = vadd.f32 %v2359, %v2576
      %v2620 = vadd.f32 %v2360, %v2579
      %v2621 = vadd.f32 %v2361, %v2581
      %v2622 = vadd.f32 %v2362, %v2584
      %v2623 = vadd.f32 %v2363, %v2586
      %v2624 = vld [vmem:[%s213] sm:$0x1]
      %v2626 = vperm.slane %v2624, 0
      %v2628 = vadd.f32 %v2588, %v2626
      %v2629 = vadd.f32 %v2589, %v2626
      %v2630 = vadd.f32 %v2590, %v2626
      %v2631 = vadd.f32 %v2591, %v2626
      %v2632 = vadd.f32 %v2592, %v2626
      %v2633 = vadd.f32 %v2593, %v2626
      %v2634 = vadd.f32 %v2594, %v2626
      %v2635 = vadd.f32 %v2595, %v2626
      %v2636 = vadd.f32 %v2596, %v2626
      %v2637 = vadd.f32 %v2597, %v2626
      %v2638 = vadd.f32 %v2598, %v2626
      %v2639 = vadd.f32 %v2599, %v2626
      %v2640 = vadd.f32 %v2600, %v2626
      %v2641 = vadd.f32 %v2601, %v2626
      %v2642 = vadd.f32 %v2602, %v2626
      %v2643 = vadd.f32 %v2603, %v2626
      %v2644 = vadd.f32 %v2604, %v2626
      %v2645 = vadd.f32 %v2605, %v2626
      %v2646 = vadd.f32 %v2606, %v2626
      %v2647 = vadd.f32 %v2607, %v2626
      %v2648 = vadd.f32 %v2608, %v2626
      %v2649 = vadd.f32 %v2609, %v2626
      %v2650 = vadd.f32 %v2610, %v2626
      %v2651 = vadd.f32 %v2611, %v2626
      %v2652 = vadd.f32 %v2612, %v2626
      %v2653 = vadd.f32 %v2613, %v2626
      %v2654 = vadd.f32 %v2614, %v2626
      %v2655 = vadd.f32 %v2615, %v2626
      %v2656 = vadd.f32 %v2616, %v2626
      %v2657 = vadd.f32 %v2617, %v2626
      %v2658 = vadd.f32 %v2618, %v2626
      %v2659 = vadd.f32 %v2619, %v2626
      %v2660 = vadd.f32 %v2620, %v2626
      %v2661 = vadd.f32 %v2621, %v2626
      %v2662 = vadd.f32 %v2622, %v2626
      %v2663 = vadd.f32 %v2623, %v2626
      %v2664 = vmax.f32 %v2628, 0.0
      %v2665 = vmax.f32 %v2629, 0.0
      %v2666 = vmax.f32 %v2630, 0.0
      %v2667 = vmax.f32 %v2631, 0.0
      %v2668 = vmax.f32 %v2632, 0.0
      %v2669 = vmax.f32 %v2633, 0.0
      %v2670 = vmax.f32 %v2634, 0.0
      %v2671 = vmax.f32 %v2635, 0.0
      %v2672 = vmax.f32 %v2636, 0.0
      %v2673 = vmax.f32 %v2637, 0.0
      %v2674 = vmax.f32 %v2638, 0.0
      %v2675 = vmax.f32 %v2639, 0.0
      %v2676 = vmax.f32 %v2640, 0.0
      %v2677 = vmax.f32 %v2641, 0.0
      %v2678 = vmax.f32 %v2642, 0.0
      %v2679 = vmax.f32 %v2643, 0.0
      %v2680 = vmax.f32 %v2644, 0.0
      %v2681 = vmax.f32 %v2645, 0.0
      %v2682 = vmax.f32 %v2646, 0.0
      %v2683 = vmax.f32 %v2647, 0.0
      %v2684 = vmax.f32 %v2648, 0.0
      %v2685 = vmax.f32 %v2649, 0.0
      %v2686 = vmax.f32 %v2650, 0.0
      %v2687 = vmax.f32 %v2651, 0.0
      %v2688 = vmax.f32 %v2652, 0.0
      %v2689 = vmax.f32 %v2653, 0.0
      %v2690 = vmax.f32 %v2654, 0.0
      %v2691 = vmax.f32 %v2655, 0.0
      %v2692 = vmax.f32 %v2656, 0.0
      %v2693 = vmax.f32 %v2657, 0.0
      %v2694 = vmax.f32 %v2658, 0.0
      %v2695 = vmax.f32 %v2659, 0.0
      %v2696 = vmax.f32 %v2660, 0.0
      %v2697 = vmax.f32 %v2661, 0.0
      %v2698 = vmax.f32 %v2662, 0.0
      %v2699 = vmax.f32 %v2663, 0.0
      %v2736 = vrot.slane %v2664, 2
      %v2737 = vrot.slane %v2664, 4
      %v2738 = vrot.slane %v2664, 6
      %v2739 = vrot.slane %v2665, 2
      %v2740 = vrot.slane %v2665, 4
      %v2741 = vrot.slane %v2665, 6
      %v2742 = vrot.slane %v2666, 2
      %v2743 = vrot.slane %v2666, 4
      %v2744 = vrot.slane %v2666, 6
      %v2745 = vrot.slane %v2667, 2
      %v2746 = vrot.slane %v2667, 4
      %v2747 = vrot.slane %v2667, 6
      %v2748 = vrot.slane %v2668, 4
      %v2749 = vrot.slane %v2668, 6
      %v2750 = vrot.slane %v2669, 2
      %v2751 = vrot.slane %v2669, 4
      %v2752 = vrot.slane %v2669, 6
      %v2753 = vrot.slane %v2670, 2
      %v2754 = vrot.slane %v2670, 6
      %v2755 = vrot.slane %v2671, 2
      %v2756 = vrot.slane %v2671, 4
      %v2757 = vrot.slane %v2671, 6
      %v2758 = vrot.slane %v2672, 2
      %v2759 = vrot.slane %v2672, 4
      %v2760 = vrot.slane %v2673, 2
      %v2761 = vrot.slane %v2673, 4
      %v2762 = vrot.slane %v2673, 6
      %v2763 = vrot.slane %v2674, 2
      %v2764 = vrot.slane %v2674, 4
      %v2765 = vrot.slane %v2674, 6
      %v2766 = vrot.slane %v2675, 2
      %v2767 = vrot.slane %v2675, 4
      %v2768 = vrot.slane %v2675, 6
      %v2769 = vrot.slane %v2676, 2
      %v2770 = vrot.slane %v2676, 4
      %v2771 = vrot.slane %v2676, 6
      %v2772 = vrot.slane %v2677, 4
      %v2773 = vrot.slane %v2677, 6
      %v2774 = vrot.slane %v2678, 2
      %v2775 = vrot.slane %v2678, 4
      %v2776 = vrot.slane %v2678, 6
      %v2777 = vrot.slane %v2679, 2
      %v2778 = vrot.slane %v2679, 6
      %v2779 = vrot.slane %v2680, 2
      %v2780 = vrot.slane %v2680, 4
      %v2781 = vrot.slane %v2680, 6
      %v2782 = vrot.slane %v2681, 2
      %v2783 = vrot.slane %v2681, 4
      %v2784 = vrot.slane %v2682, 2
      %v2785 = vrot.slane %v2682, 4
      %v2786 = vrot.slane %v2682, 6
      %v2787 = vrot.slane %v2683, 2
      %v2788 = vrot.slane %v2683, 4
      %v2789 = vrot.slane %v2683, 6
      %v2790 = vrot.slane %v2684, 2
      %v2791 = vrot.slane %v2684, 4
      %v2792 = vrot.slane %v2684, 6
      %v2793 = vrot.slane %v2685, 2
      %v2794 = vrot.slane %v2685, 4
      %v2795 = vrot.slane %v2685, 6
      %v2796 = vrot.slane %v2686, 4
      %v2797 = vrot.slane %v2686, 6
      %v2798 = vrot.slane %v2687, 2
      %v2799 = vrot.slane %v2687, 4
      %v2800 = vrot.slane %v2687, 6
      %v2801 = vrot.slane %v2688, 2
      %v2802 = vrot.slane %v2688, 6
      %v2803 = vrot.slane %v2689, 2
      %v2804 = vrot.slane %v2689, 4
      %v2805 = vrot.slane %v2689, 6
      %v2806 = vrot.slane %v2690, 2
      %v2807 = vrot.slane %v2690, 4
      %v2808 = vrot.slane %v2691, 2
      %v2809 = vrot.slane %v2691, 4
      %v2810 = vrot.slane %v2691, 6
      %v2811 = vrot.slane %v2692, 2
      %v2812 = vrot.slane %v2692, 4
      %v2813 = vrot.slane %v2692, 6
      %v2814 = vrot.slane %v2693, 2
      %v2815 = vrot.slane %v2693, 4
      %v2816 = vrot.slane %v2693, 6
      %v2817 = vrot.slane %v2694, 2
      %v2818 = vrot.slane %v2694, 4
      %v2819 = vrot.slane %v2694, 6
      %v2820 = vrot.slane %v2695, 4
      %v2821 = vrot.slane %v2695, 6
      %v2822 = vrot.slane %v2696, 2
      %v2823 = vrot.slane %v2696, 4
      %v2824 = vrot.slane %v2696, 6
      %v2825 = vrot.slane %v2697, 2
      %v2826 = vrot.slane %v2697, 6
      %v2827 = vrot.slane %v2698, 2
      %v2828 = vrot.slane %v2698, 4
      %v2829 = vrot.slane %v2698, 6
      %v2830 = vrot.slane %v2699, 2
      %v2831 = vrot.slane %v2699, 4
      %2832 = vst [vmem:[#allocation1] ss:$4 sm:$0xff] %v2664
      %s2833 = scalar_lea.vmem [#allocation1], 1
      %2834 = vst [vmem:[%s2833] ss:$4 sm:$0xff] %v2736
      %s2835 = scalar_lea.vmem [#allocation1], 2
      %2836 = vst [vmem:[%s2835] ss:$4 sm:$0xff] %v2737
      %s2837 = scalar_lea.vmem [#allocation1], 3
      %2838 = vst [vmem:[%s2837] ss:$4 sm:$0xff] %v2738
      %s2839 = scalar_lea.vmem [#allocation1], 32
      %2840 = vst [vmem:[%s2839] ss:$4 sm:$0xff] %v2665
      %s2841 = scalar_lea.vmem [#allocation1], 33
      %2842 = vst [vmem:[%s2841] ss:$4 sm:$0xff] %v2739
      %s2843 = scalar_lea.vmem [#allocation1], 34
      %2844 = vst [vmem:[%s2843] ss:$4 sm:$0xff] %v2740
      %s2845 = scalar_lea.vmem [#allocation1], 35
      %2846 = vst [vmem:[%s2845] ss:$4 sm:$0xff] %v2741
      %v2847 = vld.sshfl [vmem:[#allocation1] sm:$0xff pattern:$0x73625140]
      %v2848 = vld.sshfl [vmem:[#allocation1 + $0x20] sm:$0xff pattern:$0x73625140]
      %2849 = vst [vmem:[#allocation1] ss:$4 sm:$0xff] %v2742
      %2850 = vst [vmem:[%s2833] ss:$4 sm:$0xff] %v2743
      %2851 = vst [vmem:[%s2835] ss:$4 sm:$0xff] %v2744
      %2852 = vst [vmem:[%s2837] ss:$4 sm:$0xff] %v2667
      %2853 = vst [vmem:[%s2839] ss:$4 sm:$0xff] %v2745
      %2854 = vst [vmem:[%s2841] ss:$4 sm:$0xff] %v2746
      %2855 = vst [vmem:[%s2843] ss:$4 sm:$0xff] %v2747
      %2856 = vst [vmem:[%s2845] ss:$4 sm:$0xff] %v2668
      %v2857 = vld.sshfl [vmem:[#allocation1] sm:$0xff pattern:$0x73625140]
      %v2858 = vld.sshfl [vmem:[#allocation1 + $0x20] sm:$0xff pattern:$0x73625140]
      %2859 = vst [vmem:[#allocation1] ss:$4 sm:$0xff] %v2748
      %2860 = vst [vmem:[%s2833] ss:$4 sm:$0xff] %v2749
      %2861 = vst [vmem:[%s2835] ss:$4 sm:$0xff] %v2669
      %2862 = vst [vmem:[%s2837] ss:$4 sm:$0xff] %v2750
      %2863 = vst [vmem:[%s2839] ss:$4 sm:$0xff] %v2751
      %2864 = vst [vmem:[%s2841] ss:$4 sm:$0xff] %v2752
      %2865 = vst [vmem:[%s2843] ss:$4 sm:$0xff] %v2670
      %2866 = vst [vmem:[%s2845] ss:$4 sm:$0xff] %v2753
      %v2867 = vld.sshfl [vmem:[#allocation1] sm:$0xff pattern:$0x73625140]
      %v2868 = vld.sshfl [vmem:[#allocation1 + $0x20] sm:$0xff pattern:$0x73625140]
      %2869 = vst [vmem:[#allocation1] ss:$4 sm:$0xff] %v2754
      %2870 = vst [vmem:[%s2833] ss:$4 sm:$0xff] %v2671
      %2871 = vst [vmem:[%s2835] ss:$4 sm:$0xff] %v2755
      %2872 = vst [vmem:[%s2837] ss:$4 sm:$0xff] %v2756
      %2873 = vst [vmem:[%s2839] ss:$4 sm:$0xff] %v2757
      %2874 = vst [vmem:[%s2841] ss:$4 sm:$0xff] %v2672
      %2875 = vst [vmem:[%s2843] ss:$4 sm:$0xff] %v2758
      %2876 = vst [vmem:[%s2845] ss:$4 sm:$0xff] %v2759
      %v2877 = vld.sshfl [vmem:[#allocation1] sm:$0xff pattern:$0x73625140]
      %v2878 = vld.sshfl [vmem:[#allocation1 + $0x20] sm:$0xff pattern:$0x73625140]
      %2879 = vst [vmem:[#allocation1] ss:$4 sm:$0xff] %v2673
      %2880 = vst [vmem:[%s2833] ss:$4 sm:$0xff] %v2760
      %2881 = vst [vmem:[%s2835] ss:$4 sm:$0xff] %v2761
      %2882 = vst [vmem:[%s2837] ss:$4 sm:$0xff] %v2762
      %2883 = vst [vmem:[%s2839] ss:$4 sm:$0xff] %v2674
      %2884 = vst [vmem:[%s2841] ss:$4 sm:$0xff] %v2763
      %2885 = vst [vmem:[%s2843] ss:$4 sm:$0xff] %v2764
      %2886 = vst [vmem:[%s2845] ss:$4 sm:$0xff] %v2765
      %v2887 = vld.sshfl [vmem:[#allocation1] sm:$0xff pattern:$0x73625140]
      %v2888 = vld.sshfl [vmem:[#allocation1 + $0x20] sm:$0xff pattern:$0x73625140]
      %2889 = vst [vmem:[#allocation1] ss:$4 sm:$0xff] %v2766
      %2890 = vst [vmem:[%s2833] ss:$4 sm:$0xff] %v2767
      %2891 = vst [vmem:[%s2835] ss:$4 sm:$0xff] %v2768
      %2892 = vst [vmem:[%s2837] ss:$4 sm:$0xff] %v2676
      %2893 = vst [vmem:[%s2839] ss:$4 sm:$0xff] %v2769
      %2894 = vst [vmem:[%s2841] ss:$4 sm:$0xff] %v2770
      %2895 = vst [vmem:[%s2843] ss:$4 sm:$0xff] %v2771
      %2896 = vst [vmem:[%s2845] ss:$4 sm:$0xff] %v2677
      %v2897 = vld.sshfl [vmem:[#allocation1] sm:$0xff pattern:$0x73625140]
      %v2898 = vld.sshfl [vmem:[#allocation1 + $0x20] sm:$0xff pattern:$0x73625140]
      %2899 = vst [vmem:[#allocation1] ss:$4 sm:$0xff] %v2772
      %2900 = vst [vmem:[%s2833] ss:$4 sm:$0xff] %v2773
      %2901 = vst [vmem:[%s2835] ss:$4 sm:$0xff] %v2678
      %2902 = vst [vmem:[%s2837] ss:$4 sm:$0xff] %v2774
      %2903 = vst [vmem:[%s2839] ss:$4 sm:$0xff] %v2775
      %2904 = vst [vmem:[%s2841] ss:$4 sm:$0xff] %v2776
      %2905 = vst [vmem:[%s2843] ss:$4 sm:$0xff] %v2679
      %2906 = vst [vmem:[%s2845] ss:$4 sm:$0xff] %v2777
      %v2907 = vld.sshfl [vmem:[#allocation1] sm:$0xff pattern:$0x73625140]
      %v2908 = vld.sshfl [vmem:[#allocation1 + $0x20] sm:$0xff pattern:$0x73625140]
      %2909 = vst [vmem:[#allocation1] ss:$4 sm:$0xff] %v2778
      %2910 = vst [vmem:[%s2833] ss:$4 sm:$0xff] %v2680
      %2911 = vst [vmem:[%s2835] ss:$4 sm:$0xff] %v2779
      %2912 = vst [vmem:[%s2837] ss:$4 sm:$0xff] %v2780
      %2913 = vst [vmem:[%s2839] ss:$4 sm:$0xff] %v2781
      %2914 = vst [vmem:[%s2841] ss:$4 sm:$0xff] %v2681
      %2915 = vst [vmem:[%s2843] ss:$4 sm:$0xff] %v2782
      %2916 = vst [vmem:[%s2845] ss:$4 sm:$0xff] %v2783
      %v2917 = vld.sshfl [vmem:[#allocation1] sm:$0xff pattern:$0x73625140]
      %v2918 = vld.sshfl [vmem:[#allocation1 + $0x20] sm:$0xff pattern:$0x73625140]
      %2919 = vst [vmem:[#allocation1] ss:$4 sm:$0xff] %v2682
      %2920 = vst [vmem:[%s2833] ss:$4 sm:$0xff] %v2784
      %2921 = vst [vmem:[%s2835] ss:$4 sm:$0xff] %v2785
      %2922 = vst [vmem:[%s2837] ss:$4 sm:$0xff] %v2786
      %2923 = vst [vmem:[%s2839] ss:$4 sm:$0xff] %v2683
      %2924 = vst [vmem:[%s2841] ss:$4 sm:$0xff] %v2787
      %2925 = vst [vmem:[%s2843] ss:$4 sm:$0xff] %v2788
      %2926 = vst [vmem:[%s2845] ss:$4 sm:$0xff] %v2789
      %v2927 = vld.sshfl [vmem:[#allocation1] sm:$0xff pattern:$0x73625140]
      %v2928 = vld.sshfl [vmem:[#allocation1 + $0x20] sm:$0xff pattern:$0x73625140]
      %2929 = vst [vmem:[#allocation1] ss:$4 sm:$0xff] %v2790
      %2930 = vst [vmem:[%s2833] ss:$4 sm:$0xff] %v2791
      %2931 = vst [vmem:[%s2835] ss:$4 sm:$0xff] %v2792
      %2932 = vst [vmem:[%s2837] ss:$4 sm:$0xff] %v2685
      %2933 = vst [vmem:[%s2839] ss:$4 sm:$0xff] %v2793
      %2934 = vst [vmem:[%s2841] ss:$4 sm:$0xff] %v2794
      %2935 = vst [vmem:[%s2843] ss:$4 sm:$0xff] %v2795
      %2936 = vst [vmem:[%s2845] ss:$4 sm:$0xff] %v2686
      %v2937 = vld.sshfl [vmem:[#allocation1] sm:$0xff pattern:$0x73625140]
      %v2938 = vld.sshfl [vmem:[#allocation1 + $0x20] sm:$0xff pattern:$0x73625140]
      %2939 = vst [vmem:[#allocation1] ss:$4 sm:$0xff] %v2796
      %2940 = vst [vmem:[%s2833] ss:$4 sm:$0xff] %v2797
      %2941 = vst [vmem:[%s2835] ss:$4 sm:$0xff] %v2687
      %2942 = vst [vmem:[%s2837] ss:$4 sm:$0xff] %v2798
      %2943 = vst [vmem:[%s2839] ss:$4 sm:$0xff] %v2799
      %2944 = vst [vmem:[%s2841] ss:$4 sm:$0xff] %v2800
      %2945 = vst [vmem:[%s2843] ss:$4 sm:$0xff] %v2688
      %2946 = vst [vmem:[%s2845] ss:$4 sm:$0xff] %v2801
      %v2947 = vld.sshfl [vmem:[#allocation1] sm:$0xff pattern:$0x73625140]
      %v2948 = vld.sshfl [vmem:[#allocation1 + $0x20] sm:$0xff pattern:$0x73625140]
      %2949 = vst [vmem:[#allocation1] ss:$4 sm:$0xff] %v2802
      %2950 = vst [vmem:[%s2833] ss:$4 sm:$0xff] %v2689
      %2951 = vst [vmem:[%s2835] ss:$4 sm:$0xff] %v2803
      %2952 = vst [vmem:[%s2837] ss:$4 sm:$0xff] %v2804
      %2953 = vst [vmem:[%s2839] ss:$4 sm:$0xff] %v2805
      %2954 = vst [vmem:[%s2841] ss:$4 sm:$0xff] %v2690
      %2955 = vst [vmem:[%s2843] ss:$4 sm:$0xff] %v2806
      %2956 = vst [vmem:[%s2845] ss:$4 sm:$0xff] %v2807
      %v2957 = vld.sshfl [vmem:[#allocation1] sm:$0xff pattern:$0x73625140]
      %v2958 = vld.sshfl [vmem:[#allocation1 + $0x20] sm:$0xff pattern:$0x73625140]
      %2959 = vst [vmem:[#allocation1] ss:$4 sm:$0xff] %v2691
      %2960 = vst [vmem:[%s2833] ss:$4 sm:$0xff] %v2808
      %2961 = vst [vmem:[%s2835] ss:$4 sm:$0xff] %v2809
      %2962 = vst [vmem:[%s2837] ss:$4 sm:$0xff] %v2810
      %2963 = vst [vmem:[%s2839] ss:$4 sm:$0xff] %v2692
      %2964 = vst [vmem:[%s2841] ss:$4 sm:$0xff] %v2811
      %2965 = vst [vmem:[%s2843] ss:$4 sm:$0xff] %v2812
      %2966 = vst [vmem:[%s2845] ss:$4 sm:$0xff] %v2813
      %v2967 = vld.sshfl [vmem:[#allocation1] sm:$0xff pattern:$0x73625140]
      %v2968 = vld.sshfl [vmem:[#allocation1 + $0x20] sm:$0xff pattern:$0x73625140]
      %2969 = vst [vmem:[#allocation1] ss:$4 sm:$0xff] %v2814
      %2970 = vst [vmem:[%s2833] ss:$4 sm:$0xff] %v2815
      %2971 = vst [vmem:[%s2835] ss:$4 sm:$0xff] %v2816
      %2972 = vst [vmem:[%s2837] ss:$4 sm:$0xff] %v2694
      %2973 = vst [vmem:[%s2839] ss:$4 sm:$0xff] %v2817
      %2974 = vst [vmem:[%s2841] ss:$4 sm:$0xff] %v2818
      %2975 = vst [vmem:[%s2843] ss:$4 sm:$0xff] %v2819
      %2976 = vst [vmem:[%s2845] ss:$4 sm:$0xff] %v2695
      %v2977 = vld.sshfl [vmem:[#allocation1] sm:$0xff pattern:$0x73625140]
      %v2978 = vld.sshfl [vmem:[#allocation1 + $0x20] sm:$0xff pattern:$0x73625140]
      %2979 = vst [vmem:[#allocation1] ss:$4 sm:$0xff] %v2820
      %2980 = vst [vmem:[%s2833] ss:$4 sm:$0xff] %v2821
      %2981 = vst [vmem:[%s2835] ss:$4 sm:$0xff] %v2696
      %2982 = vst [vmem:[%s2837] ss:$4 sm:$0xff] %v2822
      %2983 = vst [vmem:[%s2839] ss:$4 sm:$0xff] %v2823
      %2984 = vst [vmem:[%s2841] ss:$4 sm:$0xff] %v2824
      %2985 = vst [vmem:[%s2843] ss:$4 sm:$0xff] %v2697
      %2986 = vst [vmem:[%s2845] ss:$4 sm:$0xff] %v2825
      %v2987 = vld.sshfl [vmem:[#allocation1] sm:$0xff pattern:$0x73625140]
      %v2988 = vld.sshfl [vmem:[#allocation1 + $0x20] sm:$0xff pattern:$0x73625140]
      %2989 = vst [vmem:[#allocation1] ss:$4 sm:$0xff] %v2826
      %2990 = vst [vmem:[%s2833] ss:$4 sm:$0xff] %v2698
      %2991 = vst [vmem:[%s2835] ss:$4 sm:$0xff] %v2827
      %2992 = vst [vmem:[%s2837] ss:$4 sm:$0xff] %v2828
      %2993 = vst [vmem:[%s2839] ss:$4 sm:$0xff] %v2829
      %2994 = vst [vmem:[%s2841] ss:$4 sm:$0xff] %v2699
      %2995 = vst [vmem:[%s2843] ss:$4 sm:$0xff] %v2830
      %2996 = vst [vmem:[%s2845] ss:$4 sm:$0xff] %v2831
      %v2997 = vld.sshfl [vmem:[#allocation1] sm:$0xff pattern:$0x73625140]
      %v2998 = vld.sshfl [vmem:[#allocation1 + $0x20] sm:$0xff pattern:$0x73625140]
      %v3031 = vpack.c.bf16 %v2847, %v2847
      %v3032 = vpack.c.bf16 %v2848, %v2848
      %v3033 = vpack.c.bf16 %v2857, %v2857
      %v3034 = vpack.c.bf16 %v2858, %v2858
      %v3035 = vpack.c.bf16 %v2867, %v2867
      %v3036 = vpack.c.bf16 %v2868, %v2868
      %v3037 = vpack.c.bf16 %v2877, %v2877
      %v3038 = vpack.c.bf16 %v2878, %v2878
      %v3039 = vpack.c.bf16 %v2887, %v2887
      %v3040 = vpack.c.bf16 %v2888, %v2888
      %v3041 = vpack.c.bf16 %v2897, %v2897
      %v3042 = vpack.c.bf16 %v2898, %v2898
      %v3043 = vpack.c.bf16 %v2907, %v2907
      %v3044 = vpack.c.bf16 %v2908, %v2908
      %v3045 = vpack.c.bf16 %v2917, %v2917
      %v3046 = vpack.c.bf16 %v2918, %v2918
      %v3047 = vpack.c.bf16 %v2927, %v2927
      %v3048 = vpack.c.bf16 %v2928, %v2928
      %v3049 = vpack.c.bf16 %v2937, %v2937
      %v3050 = vpack.c.bf16 %v2938, %v2938
      %v3051 = vpack.c.bf16 %v2947, %v2947
      %v3052 = vpack.c.bf16 %v2948, %v2948
      %v3053 = vpack.c.bf16 %v2957, %v2957
      %v3054 = vpack.c.bf16 %v2958, %v2958
      %v3055 = vpack.c.bf16 %v2967, %v2967
      %v3056 = vpack.c.bf16 %v2968, %v2968
      %v3057 = vpack.c.bf16 %v2977, %v2977
      %v3058 = vpack.c.bf16 %v2978, %v2978
      %v3059 = vpack.c.bf16 %v2987, %v2987
      %v3060 = vpack.c.bf16 %v2988, %v2988
      %v3061 = vpack.c.bf16 %v2997, %v2997
      %v3062 = vpack.c.bf16 %v2998, %v2998
      %vm3063 = vcmask 519168
      %3064 = vst.msk [vmem:[%s221] sm:$0xf] %vm3063, %v3031
      %3065 = vst.msk [vmem:[%s221 + $0x4] sm:$0xf] %vm3063, %v3032
      %3066 = vst.msk [vmem:[%s221 + $0x8] sm:$0xf] %vm3063, %v3033
      %3067 = vst.msk [vmem:[%s221 + $0xc] sm:$0xf] %vm3063, %v3034
      %3068 = vst.msk [vmem:[%s221 + $0x10] sm:$0xf] %vm3063, %v3035
      %3069 = vst.msk [vmem:[%s221 + $0x14] sm:$0xf] %vm3063, %v3036
      %3070 = vst.msk [vmem:[%s221 + $0x18] sm:$0xf] %vm3063, %v3037
      %3071 = vst.msk [vmem:[%s221 + $0x1c] sm:$0xf] %vm3063, %v3038
      %3072 = vst.msk [vmem:[%s221 + $0x20] sm:$0xf] %vm3063, %v3039
      %3073 = vst.msk [vmem:[%s221 + $0x24] sm:$0xf] %vm3063, %v3040
      %3074 = vst.msk [vmem:[%s221 + $0x28] sm:$0xf] %vm3063, %v3041
      %3075 = vst.msk [vmem:[%s221 + $0x2c] sm:$0xf] %vm3063, %v3042
      %3076 = vst.msk [vmem:[%s221 + $0x30] sm:$0xf] %vm3063, %v3043
      %3077 = vst.msk [vmem:[%s221 + $0x34] sm:$0xf] %vm3063, %v3044
      %3078 = vst.msk [vmem:[%s221 + $0x38] sm:$0xf] %vm3063, %v3045
      %3079 = vst.msk [vmem:[%s221 + $0x3c] sm:$0xf] %vm3063, %v3046
      %3080 = vst.msk [vmem:[%s221 + $0x40] sm:$0xf] %vm3063, %v3047
      %3081 = vst.msk [vmem:[%s221 + $0x44] sm:$0xf] %vm3063, %v3048
      %3082 = vst.msk [vmem:[%s221 + $0x48] sm:$0xf] %vm3063, %v3049
      %3083 = vst.msk [vmem:[%s221 + $0x4c] sm:$0xf] %vm3063, %v3050
      %3084 = vst.msk [vmem:[%s221 + $0x50] sm:$0xf] %vm3063, %v3051
      %3085 = vst.msk [vmem:[%s221 + $0x54] sm:$0xf] %vm3063, %v3052
      %3086 = vst.msk [vmem:[%s221 + $0x58] sm:$0xf] %vm3063, %v3053
      %3087 = vst.msk [vmem:[%s221 + $0x5c] sm:$0xf] %vm3063, %v3054
      %3088 = vst.msk [vmem:[%s221 + $0x60] sm:$0xf] %vm3063, %v3055
      %3089 = vst.msk [vmem:[%s221 + $0x64] sm:$0xf] %vm3063, %v3056
      %3090 = vst.msk [vmem:[%s221 + $0x68] sm:$0xf] %vm3063, %v3057
      %3091 = vst.msk [vmem:[%s221 + $0x6c] sm:$0xf] %vm3063, %v3058
      %3092 = vst.msk [vmem:[%s221 + $0x70] sm:$0xf] %vm3063, %v3059
      %3093 = vst.msk [vmem:[%s221 + $0x74] sm:$0xf] %vm3063, %v3060
      %3094 = vst.msk [vmem:[%s221 + $0x78] sm:$0xf] %vm3063, %v3061
      %3095 = vst.msk [vmem:[%s221 + $0x7c] sm:$0xf] %vm3063, %v3062
      %p3096 = scmp.lt.s32.totalorder %s19, 1
      %s3097 = scalar_select %p3096, %s19, 1
      %p3098 = scmp.lt.s32.totalorder %s18, 0
      %s3099 = scalar_select %p3098, %s18, 0
      %s3100 = smul.addr %s3097, 32
      %s3101 = sadd.s32 %s3099, %s3100
      %s3102 = smul.addr %s3101, 4
      %s3103 = scalar_lea.vmem %s3, %s3102
      // Predicated region
      $region33: #{chopped_vgg19_forward.3} parent=31 // pred_check
        %p3104 = pneg %p124
      $region34: #{chopped_vgg19_forward.3} parent=31 // pred_check_branch
        %3106 = sbr.rel (%p3104) target = $region36
      $region35: #{chopped_vgg19_forward.3} parent=31 // pred_region
        _
      $region36: #{chopped_vgg19_forward.3} parent=31 // pred_fallthru
        _
    $region32: #{chopped_vgg19_forward.3} parent=5 // pred_fallthru
      _
    %p3107 = scmp.le.s32.totalorder 2, %s9
    // Predicated region
    $region37: #{chopped_vgg19_forward.3} parent=5 // pred_check
      %p3108 = pneg %p3107
    $region38: #{chopped_vgg19_forward.3} parent=5 // pred_check_branch
      %3110 = sbr.rel (%p3108) target = $region40
    $region39: #{chopped_vgg19_forward.3} parent=5 // pred_region
      %s3111 = ssub.s32 %s9, 2
      // Predicated region
      $region41: #{chopped_vgg19_forward.3} parent=39 // pred_check
        %p3112 = pneg %p130
      $region42: #{chopped_vgg19_forward.3} parent=39 // pred_check_branch
        %3114 = sbr.rel (%p3112) target = $region44
      $region43: #{chopped_vgg19_forward.3} parent=39 // pred_region
        %p3115 = scmp.lt.s32.totalorder %s21, 1
        %s3116 = scalar_select %p3115, %s21, 1
        %p3117 = scmp.lt.s32.totalorder %s20, 0
        %s3118 = scalar_select %p3117, %s20, 0
        %s3119 = smul.addr %s3116, 32
        %s3120 = sadd.s32 %s3118, %s3119
        %s3121 = smul.addr %s3120, 4
        %s3122 = scalar_lea.vmem %s3, %s3121
      $region44: #{chopped_vgg19_forward.3} parent=39 // pred_fallthru
        _
    $region40: #{chopped_vgg19_forward.3} parent=5 // pred_fallthru
      _
  $region6: #{chopped_vgg19_forward.3} parent=0 // loop_footer
    %s13 = sadd.s32 1, %s9
  $region7: #{chopped_vgg19_forward.3} parent=0 // loop_footer_branch
    %8 = sbr.rel target = $region3
  $region8: #{chopped_vgg19_forward.3} parent=0 // loop_exit
    _

</llo_original>
